<compile_context>
chip_gen: v6e
topology: v6e:2x2x1
jax: 0.10.0
libtpu: 0.0.40
codegen_flags: <defaults>
</compile_context>

<pallas_src>
import jax
import jax.numpy as jnp
from jax.experimental import pallas as pl
from jax.experimental.pallas import tpu as pltpu  # noqa: F401

# ---------------- config (small, consistent with cfg.*) ----------------
DIM = 32            # cfg.dim
HEADS = 4           # cfg.n_heads
DH = DIM // HEADS   # dim_head
N_LAYERS = 2        # cfg.n_layers
VOCAB = 50          # cfg.vocab_size
MAX_LEN = 16        # cfg.max_len
N_SEG = 2           # cfg.n_segments
B = 2               # batch
N = 8               # seq len
BN = B * N
STEP = 0.1          # ista step_size
LAMBD = 0.1         # FeedForward.lambd
EPS = 1e-5          # nn.LayerNorm default eps
SCALE = DH ** -0.5

# padded one-hot contraction dims (padding rows are zero)
VOCAB_PAD = 64
SEG_PAD = 8

# ---------------- packed parameter row layout (single (TOTAL_ROWS, 32) operand) --
R_TOK = 0                              # tok embedding table  (VOCAB_PAD rows)
R_SEG = R_TOK + VOCAB_PAD              # 64  seg embedding table (SEG_PAD rows)
R_POS = R_SEG + SEG_PAD                # 72  positional rows, tiled per batch (BN rows)
R_NMASK = R_POS + BN                   # 88  (1-mask[b,:]) repeated per query (BN rows)
R_EG = R_NMASK + BN                    # 104 embedding LN gamma (1 row)
R_EB = R_EG + 1                        # 105 embedding LN beta  (1 row)
R_LAYER0 = 112                         # per-layer blocks start (8-aligned)
# per-layer row offsets (weights start on 8-row boundaries)
OFF_LN1G, OFF_LN1B, OFF_BOUT, OFF_LN2G, OFF_LN2B = 0, 1, 2, 3, 4
OFF_WQKVT = 8                          # Wqkv^T  (DIM rows)
OFF_WOUTT = OFF_WQKVT + DIM            # 40  Wout^T (DIM rows)
OFF_WFFT = OFF_WOUTT + DIM             # 72  Wff^T  (DIM rows)
OFF_WFF = OFF_WFFT + DIM               # 104 Wff    (DIM rows)
LAYER_ROWS = OFF_WFF + DIM             # 136
TOTAL_ROWS = R_LAYER0 + N_LAYERS * LAYER_ROWS   # 384


# ---------------- in-kernel helper ----------------
def _layernorm(v, g, b):
    mu = jnp.mean(v, axis=-1, keepdims=True)
    var = jnp.mean((v - mu) ** 2, axis=-1, keepdims=True)
    return (v - mu) * jax.lax.rsqrt(var + EPS) * g + b


# ---------------- fused forward kernel (one invocation, no grid) ----------------
def fused_kernel(ids_ref, p_ref, o_ref):
    # ---- embeddings: gather via one-hot matmuls (tables already in VMEM) ----
    tok_ids = ids_ref[0]                                   # (BN, 1) int32
    seg_ids = ids_ref[1]                                   # (BN, 1) int32
    tok_oh = (tok_ids == jax.lax.broadcasted_iota(
        jnp.int32, (BN, VOCAB_PAD), 1)).astype(jnp.float32)
    seg_oh = (seg_ids == jax.lax.broadcasted_iota(
        jnp.int32, (BN, SEG_PAD), 1)).astype(jnp.float32)
    e = (jnp.dot(tok_oh, p_ref[R_TOK:R_TOK + VOCAB_PAD, :],
                 preferred_element_type=jnp.float32)
         + jnp.dot(seg_oh, p_ref[R_SEG:R_SEG + SEG_PAD, :],
                   preferred_element_type=jnp.float32)
         + p_ref[R_POS:R_POS + BN, :])
    x = _layernorm(e, p_ref[R_EG:R_EG + 1, :], p_ref[R_EB:R_EB + 1, :])   # (BN, D)

    # (1 - mask) laid out per query row -> (B, Nq, Nk) via safe leading split
    negmask = p_ref[R_NMASK:R_NMASK + BN, 0:N].reshape(B, N, N)

    for l in range(N_LAYERS):                               # static unroll over layers
        base = R_LAYER0 + l * LAYER_ROWS
        ln1g = p_ref[base + OFF_LN1G:base + OFF_LN1G + 1, :]
        ln1b = p_ref[base + OFF_LN1B:base + OFF_LN1B + 1, :]
        bout = p_ref[base + OFF_BOUT:base + OFF_BOUT + 1, :]
        ln2g = p_ref[base + OFF_LN2G:base + OFF_LN2G + 1, :]
        ln2b = p_ref[base + OFF_LN2B:base + OFF_LN2B + 1, :]
        wqkvt = p_ref[base + OFF_WQKVT:base + OFF_WQKVT + DIM, :]   # (D, D)
        woutt = p_ref[base + OFF_WOUTT:base + OFF_WOUTT + DIM, :]   # (D, D)
        wfft = p_ref[base + OFF_WFFT:base + OFF_WFFT + DIM, :]      # (D, D)
        wff = p_ref[base + OFF_WFF:base + OFF_WFF + DIM, :]         # (D, D)

        # ---------------- PreNorm + Attention (+ residual) ----------------
        h = _layernorm(x, ln1g, ln1b)                               # (BN, D)
        wh = jnp.dot(h, wqkvt, preferred_element_type=jnp.float32)  # ONE matmul (BN, D)

        out_heads = []
        for hh in range(HEADS):                                     # static head loop
            wh_h = wh[:, hh * DH:(hh + 1) * DH].reshape(B, N, DH)   # 8-aligned lane slice
            d_h = jnp.einsum('bnd,bmd->bnm', wh_h, wh_h,
                             preferred_element_type=jnp.float32) * SCALE
            d_h = d_h - jnp.max(d_h, axis=-1, keepdims=True)
            p_h = jnp.exp(d_h)
            a_h = p_h * pl.reciprocal(jnp.sum(p_h, axis=-1, keepdims=True), approx=True)
            a_h = a_h * negmask                                     # post-softmax mask
            o_h = jnp.einsum('bnm,bmd->bnd', a_h, wh_h,
                             preferred_element_type=jnp.float32)    # (B, N, DH)
            out_heads.append(o_h.reshape(BN, DH))
        attn_out = jnp.concatenate(out_heads, axis=-1)              # (BN, D) concat-heads

        gx = (jnp.dot(attn_out, woutt, preferred_element_type=jnp.float32)  # ONE matmul
              + bout + x)                                            # bias + residual

        # ---------------- PreNorm + ISTA FeedForward ----------------
        h2 = _layernorm(gx, ln2g, ln2b)
        x1 = jnp.dot(h2, wfft, preferred_element_type=jnp.float32)  # h2 @ Wff^T
        # grad_2 - grad_1 == (h2 - x1) @ Wff   (saves one matmul)
        upd = STEP * jnp.dot(h2 - x1, wff,
                             preferred_element_type=jnp.float32) - STEP * LAMBD
        x = jnp.maximum(h2 + upd, 0.0)

    o_ref[...] = x                                                   # (BN, D)


# ---------------- host-side operand packing (trace-time, fused by XLA) ----------------
def _prep(tok_ids, seg_ids, mask, embed_params, layer_params_list):
    tok_tab, pos_tab, seg_tab, eg, eb = embed_params

    def rows32(a, nrows):
        out = jnp.zeros((nrows, DIM), jnp.float32)
        return out.at[:a.shape[0], :a.shape[1]].set(a.astype(jnp.float32))

    pieces = [
        rows32(tok_tab, VOCAB_PAD),                                         # R_TOK
        rows32(seg_tab, SEG_PAD),                                           # R_SEG
        jnp.tile(pos_tab[:N].astype(jnp.float32), (B, 1)),                  # R_POS (BN, D)
        rows32(jnp.repeat(1.0 - mask.astype(jnp.float32), N, axis=0), BN),  # R_NMASK
        eg.reshape(1, DIM).astype(jnp.float32),                             # R_EG
        eb.reshape(1, DIM).astype(jnp.float32),                             # R_EB
        jnp.zeros((R_LAYER0 - (R_EB + 1), DIM), jnp.float32),               # pad to 112
    ]
    for (l1g, l1b, wqkv, wout, bo, l2g, l2b, wf) in layer_params_list:
        pieces.append(jnp.stack([l1g, l1b, bo, l2g, l2b], axis=0).astype(jnp.float32))
        pieces.append(jnp.zeros((OFF_WQKVT - 5, DIM), jnp.float32))         # pad to 8
        pieces.append(wqkv.T.astype(jnp.float32))   # for h  @ Wqkv^T
        pieces.append(wout.T.astype(jnp.float32))   # for out @ Wout^T
        pieces.append(wf.T.astype(jnp.float32))     # for h2 @ Wff^T
        pieces.append(wf.astype(jnp.float32))       # for (h2-x1) @ Wff
    params = jnp.concatenate(pieces, axis=0)
    assert params.shape == (TOTAL_ROWS, DIM), params.shape

    ids = jnp.stack([tok_ids.reshape(BN, 1), seg_ids.reshape(BN, 1)],
                    axis=0).astype(jnp.int32)                               # (2, BN, 1)
    return ids, params


@jax.jit
def transformer_forward(tok_ids, seg_ids, mask, embed_params, layer_params_list):
    ids, params = _prep(tok_ids, seg_ids, mask, embed_params, layer_params_list)
    out2d = pl.pallas_call(
        fused_kernel,
        out_shape=jax.ShapeDtypeStruct((BN, DIM), jnp.float32),
        cost_estimate=pl.CostEstimate(flops=400_000, transcendentals=1_500,
                                      bytes_accessed=56_000),
    )(ids, params)
    return out2d.reshape(B, N, DIM)


# ---------------- pure-JAX reference (for correctness check) ----------------
def _ref_ln(v, g, b):
    mu = v.mean(-1, keepdims=True)
    var = ((v - mu) ** 2).mean(-1, keepdims=True)
    return (v - mu) / jnp.sqrt(var + EPS) * g + b


def ref_forward(tok_ids, seg_ids, mask, embed_params, layer_params_list):
    tok_tab, pos_tab, seg_tab, eg, eb = embed_params
    pos = jnp.arange(tok_ids.shape[1], dtype=jnp.int32)
    e = tok_tab[tok_ids] + pos_tab[pos][None, :, :] + seg_tab[seg_ids]
    x = _ref_ln(e, eg, eb)
    for (ln1g, ln1b, wqkv, wout, bout, ln2g, ln2b, wff) in layer_params_list:
        h = _ref_ln(x, ln1g, ln1b)
        w = h @ wqkv.T
        Bb, Nn, Dd = w.shape
        wh = w.reshape(Bb, Nn, HEADS, DH).transpose(0, 2, 1, 3)
        dots = jnp.einsum('bhnd,bhmd->bhnm', wh, wh) * SCALE
        attn = jax.nn.softmax(dots, axis=-1)
        attn = attn * (1.0 - mask[:, None, None, :])
        out = jnp.einsum('bhnm,bhmd->bhnd', attn, wh)
        out = out.transpose(0, 2, 1, 3).reshape(Bb, Nn, Dd)
        out = out @ wout.T + bout
        gx = out + x
        h2 = _ref_ln(gx, ln2g, ln2b)
        x1 = h2 @ wff.T
        g1 = x1 @ wff
        g2 = h2 @ wff
        x = jax.nn.relu(h2 + STEP * (g2 - g1) - STEP * LAMBD)
    return x


# ---------------- deterministic parameter init ----------------
def init_params(key):
    ks = jax.random.split(key, 4 + 3 * N_LAYERS)
    tok_tab = 0.02 * jax.random.normal(ks[0], (VOCAB, DIM), jnp.float32)
    pos_tab = 0.02 * jax.random.normal(ks[1], (MAX_LEN, DIM), jnp.float32)
    seg_tab = 0.02 * jax.random.normal(ks[2], (N_SEG, DIM), jnp.float32)
    eg = jnp.ones((DIM,), jnp.float32)
    eb = jnp.zeros((DIM,), jnp.float32)
    layers = []
    bound = float(jnp.sqrt(6.0 / DIM))   # kaiming_uniform-like for Wff
    for l in range(N_LAYERS):
        k1, k2, k3 = ks[4 + 3 * l: 4 + 3 * l + 3]
        ln1g = jnp.ones((DIM,), jnp.float32)
        ln1b = jnp.zeros((DIM,), jnp.float32)
        wqkv = jax.random.normal(k1, (DIM, DIM), jnp.float32) / jnp.sqrt(DIM)
        wout = jax.random.normal(k2, (DIM, DIM), jnp.float32) / jnp.sqrt(DIM)
        bout = jnp.zeros((DIM,), jnp.float32)
        ln2g = jnp.ones((DIM,), jnp.float32)
        ln2b = jnp.zeros((DIM,), jnp.float32)
        wff = jax.random.uniform(k3, (DIM, DIM), jnp.float32, -bound, bound)
        layers.append((ln1g, ln1b, wqkv, wout, bout, ln2g, ln2b, wff))
    return (tok_tab, pos_tab, seg_tab, eg, eb), layers


if __name__ == "__main__":
    key = jax.random.PRNGKey(0)
    k = jax.random.split(key, 4)
    tok_ids = jax.random.randint(k[0], (B, N), 0, VOCAB, dtype=jnp.int32)
    seg_ids = jax.random.randint(k[1], (B, N), 0, N_SEG, dtype=jnp.int32)
    mask = jax.random.bernoulli(k[2], 0.25, (B, N)).astype(jnp.float32)

    embed_params, layer_params = init_params(k[3])

    out = transformer_forward(tok_ids, seg_ids, mask, embed_params, layer_params)
    out = jax.block_until_ready(out)

    ref = ref_forward(tok_ids, seg_ids, mask, embed_params, layer_params)
    assert out.shape == (B, N, DIM), out.shape
    err = float(jnp.max(jnp.abs(out - ref)))
    assert jnp.allclose(out, ref, atol=2e-2, rtol=2e-2), f"max abs err = {err}"
    print("KERNEL_OK")
</pallas_src>

<mosaic_0001>
module attributes {stable_mosaic.version = 11 : i64} {
  func.func @fused_kernel(%arg0: memref<2x16x1xi32, #tpu.memory_space<vmem>>, %arg1: memref<384x32xf32, #tpu.memory_space<vmem>>, %arg2: memref<16x32xf32, #tpu.memory_space<vmem>>) attributes {dimension_semantics = [], scalar_prefetch = 0 : i64, scratch_operands = 0 : i64, tpu.core_type = #tpu.core_type<tc>} {
    %c0 = arith.constant 0 : index
    %c0_0 = arith.constant 0 : index
    %c0_1 = arith.constant 0 : index
    %0 = vector.load %arg0[%c0, %c0_0, %c0_1] : memref<2x16x1xi32, #tpu.memory_space<vmem>>, vector<1x16x1xi32>
    %1 = vector.shape_cast %0 : vector<1x16x1xi32> to vector<16x1xi32>
    %c1 = arith.constant 1 : index
    %c0_2 = arith.constant 0 : index
    %c0_3 = arith.constant 0 : index
    %2 = vector.load %arg0[%c1, %c0_2, %c0_3] : memref<2x16x1xi32, #tpu.memory_space<vmem>>, vector<1x16x1xi32>
    %3 = vector.shape_cast %2 : vector<1x16x1xi32> to vector<16x1xi32>
    %4 = tpu.iota {dimensions = array<i32: 1>} : vector<16x64xi32>
    %5 = vector.broadcast %1 : vector<16x1xi32> to vector<16x64xi32>
    %6 = arith.cmpi eq, %5, %4 : vector<16x64xi32>
    %7 = arith.extui %6 : vector<16x64xi1> to vector<16x64xi32>
    %8 = arith.sitofp %7 : vector<16x64xi32> to vector<16x64xf32>
    %9 = tpu.iota {dimensions = array<i32: 1>} : vector<16x8xi32>
    %10 = vector.broadcast %3 : vector<16x1xi32> to vector<16x8xi32>
    %11 = arith.cmpi eq, %10, %9 : vector<16x8xi32>
    %12 = arith.extui %11 : vector<16x8xi1> to vector<16x8xi32>
    %13 = arith.sitofp %12 : vector<16x8xi32> to vector<16x8xf32>
    %c0_4 = arith.constant 0 : index
    %c0_5 = arith.constant 0 : index
    %14 = vector.load %arg1[%c0_4, %c0_5] : memref<384x32xf32, #tpu.memory_space<vmem>>, vector<64x32xf32>
    %cst = arith.constant dense<0.000000e+00> : vector<16x32xf32>
    %15 = tpu.matmul %8, %14, %cst {dimension_numbers = #tpu.dot_dimension_numbers<[1], [0], [0], [1], [0, 0, 1, 1], [], []>} : vector<16x64xf32>, vector<64x32xf32>, vector<16x32xf32> -> vector<16x32xf32>
    %c64 = arith.constant 64 : index
    %c0_6 = arith.constant 0 : index
    %16 = vector.load %arg1[%c64, %c0_6] : memref<384x32xf32, #tpu.memory_space<vmem>>, vector<8x32xf32>
    %cst_7 = arith.constant dense<0.000000e+00> : vector<16x32xf32>
    %17 = tpu.matmul %13, %16, %cst_7 {dimension_numbers = #tpu.dot_dimension_numbers<[1], [0], [0], [1], [0, 0, 1, 1], [], []>} : vector<16x8xf32>, vector<8x32xf32>, vector<16x32xf32> -> vector<16x32xf32>
    %18 = arith.addf %15, %17 : vector<16x32xf32>
    %c72 = arith.constant 72 : index
    %c0_8 = arith.constant 0 : index
    %19 = vector.load %arg1[%c72, %c0_8] : memref<384x32xf32, #tpu.memory_space<vmem>>, vector<16x32xf32>
    %20 = arith.addf %18, %19 : vector<16x32xf32>
    %c104 = arith.constant 104 : index
    %c0_9 = arith.constant 0 : index
    %21 = vector.load %arg1[%c104, %c0_9] : memref<384x32xf32, #tpu.memory_space<vmem>>, vector<1x32xf32>
    %c105 = arith.constant 105 : index
    %c0_10 = arith.constant 0 : index
    %22 = vector.load %arg1[%c105, %c0_10] : memref<384x32xf32, #tpu.memory_space<vmem>>, vector<1x32xf32>
    %cst_11 = arith.constant dense<0.000000e+00> : vector<16xf32>
    %23 = vector.multi_reduction <add>, %20, %cst_11 [1] : vector<16x32xf32> to vector<16xf32>
    %24 = vector.shape_cast %23 : vector<16xf32> to vector<16x1xf32>
    %cst_12 = arith.constant 3.200000e+01 : f32
    %25 = vector.broadcast %cst_12 : f32 to vector<16x1xf32>
    %26 = arith.divf %24, %25 : vector<16x1xf32>
    %27 = vector.broadcast %26 : vector<16x1xf32> to vector<16x32xf32>
    %28 = arith.subf %20, %27 : vector<16x32xf32>
    %29 = arith.mulf %28, %28 : vector<16x32xf32>
    %cst_13 = arith.constant dense<0.000000e+00> : vector<16xf32>
    %30 = vector.multi_reduction <add>, %29, %cst_13 [1] : vector<16x32xf32> to vector<16xf32>
    %31 = vector.shape_cast %30 : vector<16xf32> to vector<16x1xf32>
    %cst_14 = arith.constant 3.200000e+01 : f32
    %32 = vector.broadcast %cst_14 : f32 to vector<16x1xf32>
    %33 = arith.divf %31, %32 : vector<16x1xf32>
    %34 = vector.broadcast %26 : vector<16x1xf32> to vector<16x32xf32>
    %35 = arith.subf %20, %34 : vector<16x32xf32>
    %cst_15 = arith.constant 9.99999974E-6 : f32
    %36 = vector.broadcast %cst_15 : f32 to vector<16x1xf32>
    %37 = arith.addf %33, %36 : vector<16x1xf32>
    %38 = math.rsqrt %37 : vector<16x1xf32>
    %39 = vector.broadcast %38 : vector<16x1xf32> to vector<16x32xf32>
    %40 = arith.mulf %35, %39 : vector<16x32xf32>
    %41 = vector.broadcast %21 : vector<1x32xf32> to vector<16x32xf32>
    %42 = arith.mulf %40, %41 : vector<16x32xf32>
    %43 = vector.broadcast %22 : vector<1x32xf32> to vector<16x32xf32>
    %44 = arith.addf %42, %43 : vector<16x32xf32>
    %c88 = arith.constant 88 : index
    %c0_16 = arith.constant 0 : index
    %45 = vector.load %arg1[%c88, %c0_16] : memref<384x32xf32, #tpu.memory_space<vmem>>, vector<16x8xf32>
    %46 = vector.shape_cast %45 : vector<16x8xf32> to vector<2x8x8xf32>
    %c112 = arith.constant 112 : index
    %c0_17 = arith.constant 0 : index
    %47 = vector.load %arg1[%c112, %c0_17] : memref<384x32xf32, #tpu.memory_space<vmem>>, vector<1x32xf32>
    %c113 = arith.constant 113 : index
    %c0_18 = arith.constant 0 : index
    %48 = vector.load %arg1[%c113, %c0_18] : memref<384x32xf32, #tpu.memory_space<vmem>>, vector<1x32xf32>
    %c114 = arith.constant 114 : index
    %c0_19 = arith.constant 0 : index
    %49 = vector.load %arg1[%c114, %c0_19] : memref<384x32xf32, #tpu.memory_space<vmem>>, vector<1x32xf32>
    %c115 = arith.constant 115 : index
    %c0_20 = arith.constant 0 : index
    %50 = vector.load %arg1[%c115, %c0_20] : memref<384x32xf32, #tpu.memory_space<vmem>>, vector<1x32xf32>
    %c116 = arith.constant 116 : index
    %c0_21 = arith.constant 0 : index
    %51 = vector.load %arg1[%c116, %c0_21] : memref<384x32xf32, #tpu.memory_space<vmem>>, vector<1x32xf32>
    %c120 = arith.constant 120 : index
    %c0_22 = arith.constant 0 : index
    %52 = vector.load %arg1[%c120, %c0_22] : memref<384x32xf32, #tpu.memory_space<vmem>>, vector<32x32xf32>
    %c152 = arith.constant 152 : index
    %c0_23 = arith.constant 0 : index
    %53 = vector.load %arg1[%c152, %c0_23] : memref<384x32xf32, #tpu.memory_space<vmem>>, vector<32x32xf32>
    %c184 = arith.constant 184 : index
    %c0_24 = arith.constant 0 : index
    %54 = vector.load %arg1[%c184, %c0_24] : memref<384x32xf32, #tpu.memory_space<vmem>>, vector<32x32xf32>
    %c216 = arith.constant 216 : index
    %c0_25 = arith.constant 0 : index
    %55 = vector.load %arg1[%c216, %c0_25] : memref<384x32xf32, #tpu.memory_space<vmem>>, vector<32x32xf32>
    %cst_26 = arith.constant dense<0.000000e+00> : vector<16xf32>
    %56 = vector.multi_reduction <add>, %44, %cst_26 [1] : vector<16x32xf32> to vector<16xf32>
    %57 = vector.shape_cast %56 : vector<16xf32> to vector<16x1xf32>
    %cst_27 = arith.constant 3.200000e+01 : f32
    %58 = vector.broadcast %cst_27 : f32 to vector<16x1xf32>
    %59 = arith.divf %57, %58 : vector<16x1xf32>
    %60 = vector.broadcast %59 : vector<16x1xf32> to vector<16x32xf32>
    %61 = arith.subf %44, %60 : vector<16x32xf32>
    %62 = arith.mulf %61, %61 : vector<16x32xf32>
    %cst_28 = arith.constant dense<0.000000e+00> : vector<16xf32>
    %63 = vector.multi_reduction <add>, %62, %cst_28 [1] : vector<16x32xf32> to vector<16xf32>
    %64 = vector.shape_cast %63 : vector<16xf32> to vector<16x1xf32>
    %cst_29 = arith.constant 3.200000e+01 : f32
    %65 = vector.broadcast %cst_29 : f32 to vector<16x1xf32>
    %66 = arith.divf %64, %65 : vector<16x1xf32>
    %67 = vector.broadcast %59 : vector<16x1xf32> to vector<16x32xf32>
    %68 = arith.subf %44, %67 : vector<16x32xf32>
    %cst_30 = arith.constant 9.99999974E-6 : f32
    %69 = vector.broadcast %cst_30 : f32 to vector<16x1xf32>
    %70 = arith.addf %66, %69 : vector<16x1xf32>
    %71 = math.rsqrt %70 : vector<16x1xf32>
    %72 = vector.broadcast %71 : vector<16x1xf32> to vector<16x32xf32>
    %73 = arith.mulf %68, %72 : vector<16x32xf32>
    %74 = vector.broadcast %47 : vector<1x32xf32> to vector<16x32xf32>
    %75 = arith.mulf %73, %74 : vector<16x32xf32>
    %76 = vector.broadcast %48 : vector<1x32xf32> to vector<16x32xf32>
    %77 = arith.addf %75, %76 : vector<16x32xf32>
    %cst_31 = arith.constant dense<0.000000e+00> : vector<16x32xf32>
    %78 = tpu.matmul %77, %52, %cst_31 {dimension_numbers = #tpu.dot_dimension_numbers<[1], [0], [0], [1], [0, 0, 1, 1], [], []>} : vector<16x32xf32>, vector<32x32xf32>, vector<16x32xf32> -> vector<16x32xf32>
    %79 = vector.extract_strided_slice %78 {offsets = [0, 0], sizes = [16, 8], strides = [1, 1]} : vector<16x32xf32> to vector<16x8xf32>
    %80 = vector.shape_cast %79 : vector<16x8xf32> to vector<2x8x8xf32>
    "tpu.trace_start"() <{level = 10 : i32, message = "bnd,bmd->bnm"}> : () -> ()
    %cst_32 = arith.constant dense<0.000000e+00> : vector<2x8x8xf32>
    %81 = tpu.matmul %80, %80, %cst_32 {dimension_numbers = #tpu.dot_dimension_numbers<[2], [2], [1], [1], [0, 0, 0, 1, 1, 1], [0], [0]>} : vector<2x8x8xf32>, vector<2x8x8xf32>, vector<2x8x8xf32> -> vector<2x8x8xf32>
    "tpu.trace_stop"() : () -> ()
    %cst_33 = arith.constant 0.353553385 : f32
    %82 = vector.broadcast %cst_33 : f32 to vector<2x8x8xf32>
    %83 = arith.mulf %81, %82 : vector<2x8x8xf32>
    %cst_34 = arith.constant dense<0xFF800000> : vector<2x8xf32>
    %84 = vector.multi_reduction <maximumf>, %83, %cst_34 [2] : vector<2x8x8xf32> to vector<2x8xf32>
    %85 = vector.shape_cast %84 : vector<2x8xf32> to vector<2x8x1xf32>
    %86 = vector.broadcast %85 : vector<2x8x1xf32> to vector<2x8x8xf32>
    %87 = arith.subf %83, %86 : vector<2x8x8xf32>
    %88 = math.exp %87 : vector<2x8x8xf32>
    %cst_35 = arith.constant dense<0.000000e+00> : vector<2x8xf32>
    %89 = vector.multi_reduction <add>, %88, %cst_35 [2] : vector<2x8x8xf32> to vector<2x8xf32>
    %90 = vector.shape_cast %89 : vector<2x8xf32> to vector<2x8x1xf32>
    %91 = tpu.reciprocal %90 {approx = true} : vector<2x8x1xf32> -> vector<2x8x1xf32>
    %92 = vector.broadcast %91 : vector<2x8x1xf32> to vector<2x8x8xf32>
    %93 = arith.mulf %88, %92 : vector<2x8x8xf32>
    %94 = arith.mulf %93, %46 : vector<2x8x8xf32>
    "tpu.trace_start"() <{level = 10 : i32, message = "bnm,bmd->bnd"}> : () -> ()
    %cst_36 = arith.constant dense<0.000000e+00> : vector<2x8x8xf32>
    %95 = tpu.matmul %94, %80, %cst_36 {dimension_numbers = #tpu.dot_dimension_numbers<[2], [1], [1], [2], [0, 0, 0, 1, 1, 2], [0], [0]>} : vector<2x8x8xf32>, vector<2x8x8xf32>, vector<2x8x8xf32> -> vector<2x8x8xf32>
    "tpu.trace_stop"() : () -> ()
    %96 = vector.shape_cast %95 : vector<2x8x8xf32> to vector<16x8xf32>
    %97 = vector.extract_strided_slice %78 {offsets = [0, 8], sizes = [16, 8], strides = [1, 1]} : vector<16x32xf32> to vector<16x8xf32>
    %98 = vector.shape_cast %97 : vector<16x8xf32> to vector<2x8x8xf32>
    "tpu.trace_start"() <{level = 10 : i32, message = "bnd,bmd->bnm"}> : () -> ()
    %cst_37 = arith.constant dense<0.000000e+00> : vector<2x8x8xf32>
    %99 = tpu.matmul %98, %98, %cst_37 {dimension_numbers = #tpu.dot_dimension_numbers<[2], [2], [1], [1], [0, 0, 0, 1, 1, 1], [0], [0]>} : vector<2x8x8xf32>, vector<2x8x8xf32>, vector<2x8x8xf32> -> vector<2x8x8xf32>
    "tpu.trace_stop"() : () -> ()
    %cst_38 = arith.constant 0.353553385 : f32
    %100 = vector.broadcast %cst_38 : f32 to vector<2x8x8xf32>
    %101 = arith.mulf %99, %100 : vector<2x8x8xf32>
    %cst_39 = arith.constant dense<0xFF800000> : vector<2x8xf32>
    %102 = vector.multi_reduction <maximumf>, %101, %cst_39 [2] : vector<2x8x8xf32> to vector<2x8xf32>
    %103 = vector.shape_cast %102 : vector<2x8xf32> to vector<2x8x1xf32>
    %104 = vector.broadcast %103 : vector<2x8x1xf32> to vector<2x8x8xf32>
    %105 = arith.subf %101, %104 : vector<2x8x8xf32>
    %106 = math.exp %105 : vector<2x8x8xf32>
    %cst_40 = arith.constant dense<0.000000e+00> : vector<2x8xf32>
    %107 = vector.multi_reduction <add>, %106, %cst_40 [2] : vector<2x8x8xf32> to vector<2x8xf32>
    %108 = vector.shape_cast %107 : vector<2x8xf32> to vector<2x8x1xf32>
    %109 = tpu.reciprocal %108 {approx = true} : vector<2x8x1xf32> -> vector<2x8x1xf32>
    %110 = vector.broadcast %109 : vector<2x8x1xf32> to vector<2x8x8xf32>
    %111 = arith.mulf %106, %110 : vector<2x8x8xf32>
    %112 = arith.mulf %111, %46 : vector<2x8x8xf32>
    "tpu.trace_start"() <{level = 10 : i32, message = "bnm,bmd->bnd"}> : () -> ()
    %cst_41 = arith.constant dense<0.000000e+00> : vector<2x8x8xf32>
    %113 = tpu.matmul %112, %98, %cst_41 {dimension_numbers = #tpu.dot_dimension_numbers<[2], [1], [1], [2], [0, 0, 0, 1, 1, 2], [0], [0]>} : vector<2x8x8xf32>, vector<2x8x8xf32>, vector<2x8x8xf32> -> vector<2x8x8xf32>
    "tpu.trace_stop"() : () -> ()
    %114 = vector.shape_cast %113 : vector<2x8x8xf32> to vector<16x8xf32>
    %115 = vector.extract_strided_slice %78 {offsets = [0, 16], sizes = [16, 8], strides = [1, 1]} : vector<16x32xf32> to vector<16x8xf32>
    %116 = vector.shape_cast %115 : vector<16x8xf32> to vector<2x8x8xf32>
    "tpu.trace_start"() <{level = 10 : i32, message = "bnd,bmd->bnm"}> : () -> ()
    %cst_42 = arith.constant dense<0.000000e+00> : vector<2x8x8xf32>
    %117 = tpu.matmul %116, %116, %cst_42 {dimension_numbers = #tpu.dot_dimension_numbers<[2], [2], [1], [1], [0, 0, 0, 1, 1, 1], [0], [0]>} : vector<2x8x8xf32>, vector<2x8x8xf32>, vector<2x8x8xf32> -> vector<2x8x8xf32>
    "tpu.trace_stop"() : () -> ()
    %cst_43 = arith.constant 0.353553385 : f32
    %118 = vector.broadcast %cst_43 : f32 to vector<2x8x8xf32>
    %119 = arith.mulf %117, %118 : vector<2x8x8xf32>
    %cst_44 = arith.constant dense<0xFF800000> : vector<2x8xf32>
    %120 = vector.multi_reduction <maximumf>, %119, %cst_44 [2] : vector<2x8x8xf32> to vector<2x8xf32>
    %121 = vector.shape_cast %120 : vector<2x8xf32> to vector<2x8x1xf32>
    %122 = vector.broadcast %121 : vector<2x8x1xf32> to vector<2x8x8xf32>
    %123 = arith.subf %119, %122 : vector<2x8x8xf32>
    %124 = math.exp %123 : vector<2x8x8xf32>
    %cst_45 = arith.constant dense<0.000000e+00> : vector<2x8xf32>
    %125 = vector.multi_reduction <add>, %124, %cst_45 [2] : vector<2x8x8xf32> to vector<2x8xf32>
    %126 = vector.shape_cast %125 : vector<2x8xf32> to vector<2x8x1xf32>
    %127 = tpu.reciprocal %126 {approx = true} : vector<2x8x1xf32> -> vector<2x8x1xf32>
    %128 = vector.broadcast %127 : vector<2x8x1xf32> to vector<2x8x8xf32>
    %129 = arith.mulf %124, %128 : vector<2x8x8xf32>
    %130 = arith.mulf %129, %46 : vector<2x8x8xf32>
    "tpu.trace_start"() <{level = 10 : i32, message = "bnm,bmd->bnd"}> : () -> ()
    %cst_46 = arith.constant dense<0.000000e+00> : vector<2x8x8xf32>
    %131 = tpu.matmul %130, %116, %cst_46 {dimension_numbers = #tpu.dot_dimension_numbers<[2], [1], [1], [2], [0, 0, 0, 1, 1, 2], [0], [0]>} : vector<2x8x8xf32>, vector<2x8x8xf32>, vector<2x8x8xf32> -> vector<2x8x8xf32>
    "tpu.trace_stop"() : () -> ()
    %132 = vector.shape_cast %131 : vector<2x8x8xf32> to vector<16x8xf32>
    %133 = vector.extract_strided_slice %78 {offsets = [0, 24], sizes = [16, 8], strides = [1, 1]} : vector<16x32xf32> to vector<16x8xf32>
    %134 = vector.shape_cast %133 : vector<16x8xf32> to vector<2x8x8xf32>
    "tpu.trace_start"() <{level = 10 : i32, message = "bnd,bmd->bnm"}> : () -> ()
    %cst_47 = arith.constant dense<0.000000e+00> : vector<2x8x8xf32>
    %135 = tpu.matmul %134, %134, %cst_47 {dimension_numbers = #tpu.dot_dimension_numbers<[2], [2], [1], [1], [0, 0, 0, 1, 1, 1], [0], [0]>} : vector<2x8x8xf32>, vector<2x8x8xf32>, vector<2x8x8xf32> -> vector<2x8x8xf32>
    "tpu.trace_stop"() : () -> ()
    %cst_48 = arith.constant 0.353553385 : f32
    %136 = vector.broadcast %cst_48 : f32 to vector<2x8x8xf32>
    %137 = arith.mulf %135, %136 : vector<2x8x8xf32>
    %cst_49 = arith.constant dense<0xFF800000> : vector<2x8xf32>
    %138 = vector.multi_reduction <maximumf>, %137, %cst_49 [2] : vector<2x8x8xf32> to vector<2x8xf32>
    %139 = vector.shape_cast %138 : vector<2x8xf32> to vector<2x8x1xf32>
    %140 = vector.broadcast %139 : vector<2x8x1xf32> to vector<2x8x8xf32>
    %141 = arith.subf %137, %140 : vector<2x8x8xf32>
    %142 = math.exp %141 : vector<2x8x8xf32>
    %cst_50 = arith.constant dense<0.000000e+00> : vector<2x8xf32>
    %143 = vector.multi_reduction <add>, %142, %cst_50 [2] : vector<2x8x8xf32> to vector<2x8xf32>
    %144 = vector.shape_cast %143 : vector<2x8xf32> to vector<2x8x1xf32>
    %145 = tpu.reciprocal %144 {approx = true} : vector<2x8x1xf32> -> vector<2x8x1xf32>
    %146 = vector.broadcast %145 : vector<2x8x1xf32> to vector<2x8x8xf32>
    %147 = arith.mulf %142, %146 : vector<2x8x8xf32>
    %148 = arith.mulf %147, %46 : vector<2x8x8xf32>
    "tpu.trace_start"() <{level = 10 : i32, message = "bnm,bmd->bnd"}> : () -> ()
    %cst_51 = arith.constant dense<0.000000e+00> : vector<2x8x8xf32>
    %149 = tpu.matmul %148, %134, %cst_51 {dimension_numbers = #tpu.dot_dimension_numbers<[2], [1], [1], [2], [0, 0, 0, 1, 1, 2], [0], [0]>} : vector<2x8x8xf32>, vector<2x8x8xf32>, vector<2x8x8xf32> -> vector<2x8x8xf32>
    "tpu.trace_stop"() : () -> ()
    %150 = vector.shape_cast %149 : vector<2x8x8xf32> to vector<16x8xf32>
    %151 = tpu.concatenate %96, %114, %132, %150 in 1 : vector<16x8xf32>, vector<16x8xf32>, vector<16x8xf32>, vector<16x8xf32> -> vector<16x32xf32>
    %cst_52 = arith.constant dense<0.000000e+00> : vector<16x32xf32>
    %152 = tpu.matmul %151, %53, %cst_52 {dimension_numbers = #tpu.dot_dimension_numbers<[1], [0], [0], [1], [0, 0, 1, 1], [], []>} : vector<16x32xf32>, vector<32x32xf32>, vector<16x32xf32> -> vector<16x32xf32>
    %153 = vector.broadcast %49 : vector<1x32xf32> to vector<16x32xf32>
    %154 = arith.addf %152, %153 : vector<16x32xf32>
    %155 = arith.addf %154, %44 : vector<16x32xf32>
    %cst_53 = arith.constant dense<0.000000e+00> : vector<16xf32>
    %156 = vector.multi_reduction <add>, %155, %cst_53 [1] : vector<16x32xf32> to vector<16xf32>
    %157 = vector.shape_cast %156 : vector<16xf32> to vector<16x1xf32>
    %cst_54 = arith.constant 3.200000e+01 : f32
    %158 = vector.broadcast %cst_54 : f32 to vector<16x1xf32>
    %159 = arith.divf %157, %158 : vector<16x1xf32>
    %160 = vector.broadcast %159 : vector<16x1xf32> to vector<16x32xf32>
    %161 = arith.subf %155, %160 : vector<16x32xf32>
    %162 = arith.mulf %161, %161 : vector<16x32xf32>
    %cst_55 = arith.constant dense<0.000000e+00> : vector<16xf32>
    %163 = vector.multi_reduction <add>, %162, %cst_55 [1] : vector<16x32xf32> to vector<16xf32>
    %164 = vector.shape_cast %163 : vector<16xf32> to vector<16x1xf32>
    %cst_56 = arith.constant 3.200000e+01 : f32
    %165 = vector.broadcast %cst_56 : f32 to vector<16x1xf32>
    %166 = arith.divf %164, %165 : vector<16x1xf32>
    %167 = vector.broadcast %159 : vector<16x1xf32> to vector<16x32xf32>
    %168 = arith.subf %155, %167 : vector<16x32xf32>
    %cst_57 = arith.constant 9.99999974E-6 : f32
    %169 = vector.broadcast %cst_57 : f32 to vector<16x1xf32>
    %170 = arith.addf %166, %169 : vector<16x1xf32>
    %171 = math.rsqrt %170 : vector<16x1xf32>
    %172 = vector.broadcast %171 : vector<16x1xf32> to vector<16x32xf32>
    %173 = arith.mulf %168, %172 : vector<16x32xf32>
    %174 = vector.broadcast %50 : vector<1x32xf32> to vector<16x32xf32>
    %175 = arith.mulf %173, %174 : vector<16x32xf32>
    %176 = vector.broadcast %51 : vector<1x32xf32> to vector<16x32xf32>
    %177 = arith.addf %175, %176 : vector<16x32xf32>
    %cst_58 = arith.constant dense<0.000000e+00> : vector<16x32xf32>
    %178 = tpu.matmul %177, %54, %cst_58 {dimension_numbers = #tpu.dot_dimension_numbers<[1], [0], [0], [1], [0, 0, 1, 1], [], []>} : vector<16x32xf32>, vector<32x32xf32>, vector<16x32xf32> -> vector<16x32xf32>
    %179 = arith.subf %177, %178 : vector<16x32xf32>
    %cst_59 = arith.constant dense<0.000000e+00> : vector<16x32xf32>
    %180 = tpu.matmul %179, %55, %cst_59 {dimension_numbers = #tpu.dot_dimension_numbers<[1], [0], [0], [1], [0, 0, 1, 1], [], []>} : vector<16x32xf32>, vector<32x32xf32>, vector<16x32xf32> -> vector<16x32xf32>
    %cst_60 = arith.constant 1.000000e-01 : f32
    %181 = vector.broadcast %cst_60 : f32 to vector<16x32xf32>
    %182 = arith.mulf %181, %180 : vector<16x32xf32>
    %cst_61 = arith.constant 0.00999999977 : f32
    %183 = vector.broadcast %cst_61 : f32 to vector<16x32xf32>
    %184 = arith.subf %182, %183 : vector<16x32xf32>
    %185 = arith.addf %177, %184 : vector<16x32xf32>
    %cst_62 = arith.constant 0.000000e+00 : f32
    %186 = vector.broadcast %cst_62 : f32 to vector<16x32xf32>
    %187 = arith.maximumf %185, %186 : vector<16x32xf32>
    %c248 = arith.constant 248 : index
    %c0_63 = arith.constant 0 : index
    %188 = vector.load %arg1[%c248, %c0_63] : memref<384x32xf32, #tpu.memory_space<vmem>>, vector<1x32xf32>
    %c249 = arith.constant 249 : index
    %c0_64 = arith.constant 0 : index
    %189 = vector.load %arg1[%c249, %c0_64] : memref<384x32xf32, #tpu.memory_space<vmem>>, vector<1x32xf32>
    %c250 = arith.constant 250 : index
    %c0_65 = arith.constant 0 : index
    %190 = vector.load %arg1[%c250, %c0_65] : memref<384x32xf32, #tpu.memory_space<vmem>>, vector<1x32xf32>
    %c251 = arith.constant 251 : index
    %c0_66 = arith.constant 0 : index
    %191 = vector.load %arg1[%c251, %c0_66] : memref<384x32xf32, #tpu.memory_space<vmem>>, vector<1x32xf32>
    %c252 = arith.constant 252 : index
    %c0_67 = arith.constant 0 : index
    %192 = vector.load %arg1[%c252, %c0_67] : memref<384x32xf32, #tpu.memory_space<vmem>>, vector<1x32xf32>
    %c256 = arith.constant 256 : index
    %c0_68 = arith.constant 0 : index
    %193 = vector.load %arg1[%c256, %c0_68] : memref<384x32xf32, #tpu.memory_space<vmem>>, vector<32x32xf32>
    %c288 = arith.constant 288 : index
    %c0_69 = arith.constant 0 : index
    %194 = vector.load %arg1[%c288, %c0_69] : memref<384x32xf32, #tpu.memory_space<vmem>>, vector<32x32xf32>
    %c320 = arith.constant 320 : index
    %c0_70 = arith.constant 0 : index
    %195 = vector.load %arg1[%c320, %c0_70] : memref<384x32xf32, #tpu.memory_space<vmem>>, vector<32x32xf32>
    %c352 = arith.constant 352 : index
    %c0_71 = arith.constant 0 : index
    %196 = vector.load %arg1[%c352, %c0_71] : memref<384x32xf32, #tpu.memory_space<vmem>>, vector<32x32xf32>
    %cst_72 = arith.constant dense<0.000000e+00> : vector<16xf32>
    %197 = vector.multi_reduction <add>, %187, %cst_72 [1] : vector<16x32xf32> to vector<16xf32>
    %198 = vector.shape_cast %197 : vector<16xf32> to vector<16x1xf32>
    %cst_73 = arith.constant 3.200000e+01 : f32
    %199 = vector.broadcast %cst_73 : f32 to vector<16x1xf32>
    %200 = arith.divf %198, %199 : vector<16x1xf32>
    %201 = vector.broadcast %200 : vector<16x1xf32> to vector<16x32xf32>
    %202 = arith.subf %187, %201 : vector<16x32xf32>
    %203 = arith.mulf %202, %202 : vector<16x32xf32>
    %cst_74 = arith.constant dense<0.000000e+00> : vector<16xf32>
    %204 = vector.multi_reduction <add>, %203, %cst_74 [1] : vector<16x32xf32> to vector<16xf32>
    %205 = vector.shape_cast %204 : vector<16xf32> to vector<16x1xf32>
    %cst_75 = arith.constant 3.200000e+01 : f32
    %206 = vector.broadcast %cst_75 : f32 to vector<16x1xf32>
    %207 = arith.divf %205, %206 : vector<16x1xf32>
    %208 = vector.broadcast %200 : vector<16x1xf32> to vector<16x32xf32>
    %209 = arith.subf %187, %208 : vector<16x32xf32>
    %cst_76 = arith.constant 9.99999974E-6 : f32
    %210 = vector.broadcast %cst_76 : f32 to vector<16x1xf32>
    %211 = arith.addf %207, %210 : vector<16x1xf32>
    %212 = math.rsqrt %211 : vector<16x1xf32>
    %213 = vector.broadcast %212 : vector<16x1xf32> to vector<16x32xf32>
    %214 = arith.mulf %209, %213 : vector<16x32xf32>
    %215 = vector.broadcast %188 : vector<1x32xf32> to vector<16x32xf32>
    %216 = arith.mulf %214, %215 : vector<16x32xf32>
    %217 = vector.broadcast %189 : vector<1x32xf32> to vector<16x32xf32>
    %218 = arith.addf %216, %217 : vector<16x32xf32>
    %cst_77 = arith.constant dense<0.000000e+00> : vector<16x32xf32>
    %219 = tpu.matmul %218, %193, %cst_77 {dimension_numbers = #tpu.dot_dimension_numbers<[1], [0], [0], [1], [0, 0, 1, 1], [], []>} : vector<16x32xf32>, vector<32x32xf32>, vector<16x32xf32> -> vector<16x32xf32>
    %220 = vector.extract_strided_slice %219 {offsets = [0, 0], sizes = [16, 8], strides = [1, 1]} : vector<16x32xf32> to vector<16x8xf32>
    %221 = vector.shape_cast %220 : vector<16x8xf32> to vector<2x8x8xf32>
    "tpu.trace_start"() <{level = 10 : i32, message = "bnd,bmd->bnm"}> : () -> ()
    %cst_78 = arith.constant dense<0.000000e+00> : vector<2x8x8xf32>
    %222 = tpu.matmul %221, %221, %cst_78 {dimension_numbers = #tpu.dot_dimension_numbers<[2], [2], [1], [1], [0, 0, 0, 1, 1, 1], [0], [0]>} : vector<2x8x8xf32>, vector<2x8x8xf32>, vector<2x8x8xf32> -> vector<2x8x8xf32>
    "tpu.trace_stop"() : () -> ()
    %cst_79 = arith.constant 0.353553385 : f32
    %223 = vector.broadcast %cst_79 : f32 to vector<2x8x8xf32>
    %224 = arith.mulf %222, %223 : vector<2x8x8xf32>
    %cst_80 = arith.constant dense<0xFF800000> : vector<2x8xf32>
    %225 = vector.multi_reduction <maximumf>, %224, %cst_80 [2] : vector<2x8x8xf32> to vector<2x8xf32>
    %226 = vector.shape_cast %225 : vector<2x8xf32> to vector<2x8x1xf32>
    %227 = vector.broadcast %226 : vector<2x8x1xf32> to vector<2x8x8xf32>
    %228 = arith.subf %224, %227 : vector<2x8x8xf32>
    %229 = math.exp %228 : vector<2x8x8xf32>
    %cst_81 = arith.constant dense<0.000000e+00> : vector<2x8xf32>
    %230 = vector.multi_reduction <add>, %229, %cst_81 [2] : vector<2x8x8xf32> to vector<2x8xf32>
    %231 = vector.shape_cast %230 : vector<2x8xf32> to vector<2x8x1xf32>
    %232 = tpu.reciprocal %231 {approx = true} : vector<2x8x1xf32> -> vector<2x8x1xf32>
    %233 = vector.broadcast %232 : vector<2x8x1xf32> to vector<2x8x8xf32>
    %234 = arith.mulf %229, %233 : vector<2x8x8xf32>
    %235 = arith.mulf %234, %46 : vector<2x8x8xf32>
    "tpu.trace_start"() <{level = 10 : i32, message = "bnm,bmd->bnd"}> : () -> ()
    %cst_82 = arith.constant dense<0.000000e+00> : vector<2x8x8xf32>
    %236 = tpu.matmul %235, %221, %cst_82 {dimension_numbers = #tpu.dot_dimension_numbers<[2], [1], [1], [2], [0, 0, 0, 1, 1, 2], [0], [0]>} : vector<2x8x8xf32>, vector<2x8x8xf32>, vector<2x8x8xf32> -> vector<2x8x8xf32>
    "tpu.trace_stop"() : () -> ()
    %237 = vector.shape_cast %236 : vector<2x8x8xf32> to vector<16x8xf32>
    %238 = vector.extract_strided_slice %219 {offsets = [0, 8], sizes = [16, 8], strides = [1, 1]} : vector<16x32xf32> to vector<16x8xf32>
    %239 = vector.shape_cast %238 : vector<16x8xf32> to vector<2x8x8xf32>
    "tpu.trace_start"() <{level = 10 : i32, message = "bnd,bmd->bnm"}> : () -> ()
    %cst_83 = arith.constant dense<0.000000e+00> : vector<2x8x8xf32>
    %240 = tpu.matmul %239, %239, %cst_83 {dimension_numbers = #tpu.dot_dimension_numbers<[2], [2], [1], [1], [0, 0, 0, 1, 1, 1], [0], [0]>} : vector<2x8x8xf32>, vector<2x8x8xf32>, vector<2x8x8xf32> -> vector<2x8x8xf32>
    "tpu.trace_stop"() : () -> ()
    %cst_84 = arith.constant 0.353553385 : f32
    %241 = vector.broadcast %cst_84 : f32 to vector<2x8x8xf32>
    %242 = arith.mulf %240, %241 : vector<2x8x8xf32>
    %cst_85 = arith.constant dense<0xFF800000> : vector<2x8xf32>
    %243 = vector.multi_reduction <maximumf>, %242, %cst_85 [2] : vector<2x8x8xf32> to vector<2x8xf32>
    %244 = vector.shape_cast %243 : vector<2x8xf32> to vector<2x8x1xf32>
    %245 = vector.broadcast %244 : vector<2x8x1xf32> to vector<2x8x8xf32>
    %246 = arith.subf %242, %245 : vector<2x8x8xf32>
    %247 = math.exp %246 : vector<2x8x8xf32>
    %cst_86 = arith.constant dense<0.000000e+00> : vector<2x8xf32>
    %248 = vector.multi_reduction <add>, %247, %cst_86 [2] : vector<2x8x8xf32> to vector<2x8xf32>
    %249 = vector.shape_cast %248 : vector<2x8xf32> to vector<2x8x1xf32>
    %250 = tpu.reciprocal %249 {approx = true} : vector<2x8x1xf32> -> vector<2x8x1xf32>
    %251 = vector.broadcast %250 : vector<2x8x1xf32> to vector<2x8x8xf32>
    %252 = arith.mulf %247, %251 : vector<2x8x8xf32>
    %253 = arith.mulf %252, %46 : vector<2x8x8xf32>
    "tpu.trace_start"() <{level = 10 : i32, message = "bnm,bmd->bnd"}> : () -> ()
    %cst_87 = arith.constant dense<0.000000e+00> : vector<2x8x8xf32>
    %254 = tpu.matmul %253, %239, %cst_87 {dimension_numbers = #tpu.dot_dimension_numbers<[2], [1], [1], [2], [0, 0, 0, 1, 1, 2], [0], [0]>} : vector<2x8x8xf32>, vector<2x8x8xf32>, vector<2x8x8xf32> -> vector<2x8x8xf32>
    "tpu.trace_stop"() : () -> ()
    %255 = vector.shape_cast %254 : vector<2x8x8xf32> to vector<16x8xf32>
    %256 = vector.extract_strided_slice %219 {offsets = [0, 16], sizes = [16, 8], strides = [1, 1]} : vector<16x32xf32> to vector<16x8xf32>
    %257 = vector.shape_cast %256 : vector<16x8xf32> to vector<2x8x8xf32>
    "tpu.trace_start"() <{level = 10 : i32, message = "bnd,bmd->bnm"}> : () -> ()
    %cst_88 = arith.constant dense<0.000000e+00> : vector<2x8x8xf32>
    %258 = tpu.matmul %257, %257, %cst_88 {dimension_numbers = #tpu.dot_dimension_numbers<[2], [2], [1], [1], [0, 0, 0, 1, 1, 1], [0], [0]>} : vector<2x8x8xf32>, vector<2x8x8xf32>, vector<2x8x8xf32> -> vector<2x8x8xf32>
    "tpu.trace_stop"() : () -> ()
    %cst_89 = arith.constant 0.353553385 : f32
    %259 = vector.broadcast %cst_89 : f32 to vector<2x8x8xf32>
    %260 = arith.mulf %258, %259 : vector<2x8x8xf32>
    %cst_90 = arith.constant dense<0xFF800000> : vector<2x8xf32>
    %261 = vector.multi_reduction <maximumf>, %260, %cst_90 [2] : vector<2x8x8xf32> to vector<2x8xf32>
    %262 = vector.shape_cast %261 : vector<2x8xf32> to vector<2x8x1xf32>
    %263 = vector.broadcast %262 : vector<2x8x1xf32> to vector<2x8x8xf32>
    %264 = arith.subf %260, %263 : vector<2x8x8xf32>
    %265 = math.exp %264 : vector<2x8x8xf32>
    %cst_91 = arith.constant dense<0.000000e+00> : vector<2x8xf32>
    %266 = vector.multi_reduction <add>, %265, %cst_91 [2] : vector<2x8x8xf32> to vector<2x8xf32>
    %267 = vector.shape_cast %266 : vector<2x8xf32> to vector<2x8x1xf32>
    %268 = tpu.reciprocal %267 {approx = true} : vector<2x8x1xf32> -> vector<2x8x1xf32>
    %269 = vector.broadcast %268 : vector<2x8x1xf32> to vector<2x8x8xf32>
    %270 = arith.mulf %265, %269 : vector<2x8x8xf32>
    %271 = arith.mulf %270, %46 : vector<2x8x8xf32>
    "tpu.trace_start"() <{level = 10 : i32, message = "bnm,bmd->bnd"}> : () -> ()
    %cst_92 = arith.constant dense<0.000000e+00> : vector<2x8x8xf32>
    %272 = tpu.matmul %271, %257, %cst_92 {dimension_numbers = #tpu.dot_dimension_numbers<[2], [1], [1], [2], [0, 0, 0, 1, 1, 2], [0], [0]>} : vector<2x8x8xf32>, vector<2x8x8xf32>, vector<2x8x8xf32> -> vector<2x8x8xf32>
    "tpu.trace_stop"() : () -> ()
    %273 = vector.shape_cast %272 : vector<2x8x8xf32> to vector<16x8xf32>
    %274 = vector.extract_strided_slice %219 {offsets = [0, 24], sizes = [16, 8], strides = [1, 1]} : vector<16x32xf32> to vector<16x8xf32>
    %275 = vector.shape_cast %274 : vector<16x8xf32> to vector<2x8x8xf32>
    "tpu.trace_start"() <{level = 10 : i32, message = "bnd,bmd->bnm"}> : () -> ()
    %cst_93 = arith.constant dense<0.000000e+00> : vector<2x8x8xf32>
    %276 = tpu.matmul %275, %275, %cst_93 {dimension_numbers = #tpu.dot_dimension_numbers<[2], [2], [1], [1], [0, 0, 0, 1, 1, 1], [0], [0]>} : vector<2x8x8xf32>, vector<2x8x8xf32>, vector<2x8x8xf32> -> vector<2x8x8xf32>
    "tpu.trace_stop"() : () -> ()
    %cst_94 = arith.constant 0.353553385 : f32
    %277 = vector.broadcast %cst_94 : f32 to vector<2x8x8xf32>
    %278 = arith.mulf %276, %277 : vector<2x8x8xf32>
    %cst_95 = arith.constant dense<0xFF800000> : vector<2x8xf32>
    %279 = vector.multi_reduction <maximumf>, %278, %cst_95 [2] : vector<2x8x8xf32> to vector<2x8xf32>
    %280 = vector.shape_cast %279 : vector<2x8xf32> to vector<2x8x1xf32>
    %281 = vector.broadcast %280 : vector<2x8x1xf32> to vector<2x8x8xf32>
    %282 = arith.subf %278, %281 : vector<2x8x8xf32>
    %283 = math.exp %282 : vector<2x8x8xf32>
    %cst_96 = arith.constant dense<0.000000e+00> : vector<2x8xf32>
    %284 = vector.multi_reduction <add>, %283, %cst_96 [2] : vector<2x8x8xf32> to vector<2x8xf32>
    %285 = vector.shape_cast %284 : vector<2x8xf32> to vector<2x8x1xf32>
    %286 = tpu.reciprocal %285 {approx = true} : vector<2x8x1xf32> -> vector<2x8x1xf32>
    %287 = vector.broadcast %286 : vector<2x8x1xf32> to vector<2x8x8xf32>
    %288 = arith.mulf %283, %287 : vector<2x8x8xf32>
    %289 = arith.mulf %288, %46 : vector<2x8x8xf32>
    "tpu.trace_start"() <{level = 10 : i32, message = "bnm,bmd->bnd"}> : () -> ()
    %cst_97 = arith.constant dense<0.000000e+00> : vector<2x8x8xf32>
    %290 = tpu.matmul %289, %275, %cst_97 {dimension_numbers = #tpu.dot_dimension_numbers<[2], [1], [1], [2], [0, 0, 0, 1, 1, 2], [0], [0]>} : vector<2x8x8xf32>, vector<2x8x8xf32>, vector<2x8x8xf32> -> vector<2x8x8xf32>
    "tpu.trace_stop"() : () -> ()
    %291 = vector.shape_cast %290 : vector<2x8x8xf32> to vector<16x8xf32>
    %292 = tpu.concatenate %237, %255, %273, %291 in 1 : vector<16x8xf32>, vector<16x8xf32>, vector<16x8xf32>, vector<16x8xf32> -> vector<16x32xf32>
    %cst_98 = arith.constant dense<0.000000e+00> : vector<16x32xf32>
    %293 = tpu.matmul %292, %194, %cst_98 {dimension_numbers = #tpu.dot_dimension_numbers<[1], [0], [0], [1], [0, 0, 1, 1], [], []>} : vector<16x32xf32>, vector<32x32xf32>, vector<16x32xf32> -> vector<16x32xf32>
    %294 = vector.broadcast %190 : vector<1x32xf32> to vector<16x32xf32>
    %295 = arith.addf %293, %294 : vector<16x32xf32>
    %296 = arith.addf %295, %187 : vector<16x32xf32>
    %cst_99 = arith.constant dense<0.000000e+00> : vector<16xf32>
    %297 = vector.multi_reduction <add>, %296, %cst_99 [1] : vector<16x32xf32> to vector<16xf32>
    %298 = vector.shape_cast %297 : vector<16xf32> to vector<16x1xf32>
    %cst_100 = arith.constant 3.200000e+01 : f32
    %299 = vector.broadcast %cst_100 : f32 to vector<16x1xf32>
    %300 = arith.divf %298, %299 : vector<16x1xf32>
    %301 = vector.broadcast %300 : vector<16x1xf32> to vector<16x32xf32>
    %302 = arith.subf %296, %301 : vector<16x32xf32>
    %303 = arith.mulf %302, %302 : vector<16x32xf32>
    %cst_101 = arith.constant dense<0.000000e+00> : vector<16xf32>
    %304 = vector.multi_reduction <add>, %303, %cst_101 [1] : vector<16x32xf32> to vector<16xf32>
    %305 = vector.shape_cast %304 : vector<16xf32> to vector<16x1xf32>
    %cst_102 = arith.constant 3.200000e+01 : f32
    %306 = vector.broadcast %cst_102 : f32 to vector<16x1xf32>
    %307 = arith.divf %305, %306 : vector<16x1xf32>
    %308 = vector.broadcast %300 : vector<16x1xf32> to vector<16x32xf32>
    %309 = arith.subf %296, %308 : vector<16x32xf32>
    %cst_103 = arith.constant 9.99999974E-6 : f32
    %310 = vector.broadcast %cst_103 : f32 to vector<16x1xf32>
    %311 = arith.addf %307, %310 : vector<16x1xf32>
    %312 = math.rsqrt %311 : vector<16x1xf32>
    %313 = vector.broadcast %312 : vector<16x1xf32> to vector<16x32xf32>
    %314 = arith.mulf %309, %313 : vector<16x32xf32>
    %315 = vector.broadcast %191 : vector<1x32xf32> to vector<16x32xf32>
    %316 = arith.mulf %314, %315 : vector<16x32xf32>
    %317 = vector.broadcast %192 : vector<1x32xf32> to vector<16x32xf32>
    %318 = arith.addf %316, %317 : vector<16x32xf32>
    %cst_104 = arith.constant dense<0.000000e+00> : vector<16x32xf32>
    %319 = tpu.matmul %318, %195, %cst_104 {dimension_numbers = #tpu.dot_dimension_numbers<[1], [0], [0], [1], [0, 0, 1, 1], [], []>} : vector<16x32xf32>, vector<32x32xf32>, vector<16x32xf32> -> vector<16x32xf32>
    %320 = arith.subf %318, %319 : vector<16x32xf32>
    %cst_105 = arith.constant dense<0.000000e+00> : vector<16x32xf32>
    %321 = tpu.matmul %320, %196, %cst_105 {dimension_numbers = #tpu.dot_dimension_numbers<[1], [0], [0], [1], [0, 0, 1, 1], [], []>} : vector<16x32xf32>, vector<32x32xf32>, vector<16x32xf32> -> vector<16x32xf32>
    %cst_106 = arith.constant 1.000000e-01 : f32
    %322 = vector.broadcast %cst_106 : f32 to vector<16x32xf32>
    %323 = arith.mulf %322, %321 : vector<16x32xf32>
    %cst_107 = arith.constant 0.00999999977 : f32
    %324 = vector.broadcast %cst_107 : f32 to vector<16x32xf32>
    %325 = arith.subf %323, %324 : vector<16x32xf32>
    %326 = arith.addf %318, %325 : vector<16x32xf32>
    %cst_108 = arith.constant 0.000000e+00 : f32
    %327 = vector.broadcast %cst_108 : f32 to vector<16x32xf32>
    %328 = arith.maximumf %326, %327 : vector<16x32xf32>
    %c0_109 = arith.constant 0 : index
    %c0_110 = arith.constant 0 : index
    %329 = vector.load %arg2[%c0_109, %c0_110] : memref<16x32xf32, #tpu.memory_space<vmem>>, vector<16x32xf32>
    tpu.vector_store %arg2[%c0_109, %c0_110], %328 {strides = array<i32>} : memref<16x32xf32, #tpu.memory_space<vmem>>, vector<16x32xf32>,
    return
  }
}

</mosaic_0001>

<llo_original>
// kernel: transformer_forward.1
$region0: #{transformer_forward.1}
  #allocation0 [shape = 'u32[]', space=smem, size = 0x4, offset = 0x4, fixed_abs, tag = 'smem constant byte address 0x4 - core index']
  #allocation1 [shape = 'u32[144,128]{1,0:T(1,128)}', space=vmem, size = 0x12000, scoped, tag = 'internal scratch']
  %s0 = inlined_call_operand.vmem [shape: s32[2,16,1], index: 0, kind: input, shape index: {}]
  %s1 = inlined_call_operand.vmem [shape: f32[384,32], index: 1, kind: input, shape index: {}]
  %s2 = inlined_call_operand.hbm [shape: f32[16,32], index: 2, kind: output, shape index: {}]
  %s3 = sld [smem:[#allocation0]]
  $region18: #{transformer_forward.1} parent=0
    _
  %s5 = ssub.s32 1, %s3
  %s6 = scalar_select 0, %s5, %s3
  $region1: #{transformer_forward.1} parent=0
    #allocation2 [shape = 'u8[8192]{0}', space=vmem, size = 0x2000, scoped, tag = 'output window, operand 0, single buffered']
    #allocation3 [shape = 's32[1]{0}', space=sflag, size = 0x4, scoped, tag = 'scoped memory for transformer_forward.1']
    %7 = vsyncpa [#allocation3], 0
    // Predicated region
    $region2: #{transformer_forward.1} parent=1 // pred_check
      _
    $region3: #{transformer_forward.1} parent=1 // pred_check_branch
      %9 = sbr.rel (0) target = $region5
    $region4: #{transformer_forward.1} parent=1 // pred_region
      _
    $region5: #{transformer_forward.1} parent=1 // pred_fallthru
      _
    // Predicated region
    $region6: #{transformer_forward.1} parent=1 // pred_check
      _
    $region7: #{transformer_forward.1} parent=1 // pred_check_branch
      %11 = sbr.rel (0) target = $region9
    $region8: #{transformer_forward.1} parent=1 // pred_region
      _
    $region9: #{transformer_forward.1} parent=1 // pred_fallthru
      _
    %v12 = vld [vmem:[%s0] sm:$0xff]
    %v13 = vld [vmem:[%s0 + $0x8] sm:$0xff]
    %s14 = scalar_lea.vmem %s0, 16
    %v15 = vld [vmem:[%s14] sm:$0xff]
    %v16 = vld [vmem:[%s14 + $0x8] sm:$0xff]
    %v17 = vlaneseq
    %v18 = vand.u32 %v17, 127
    %19 = vset.pattern.permute.xlu0 0
    %20 = vperm.xlu0 %19, %v12
    %v21 = vpop.permute.xlu0 %20
    %22 = vset.pattern.permute.xlu0 0
    %23 = vperm.xlu0 %22, %v13
    %v24 = vpop.permute.xlu0 %23
    %vm25 = vcmp.eq.s32.totalorder %v21, %v18
    %vm26 = vcmp.eq.s32.totalorder %v24, %v18
    %v27 = vsel %vm25, 1, 0
    %v28 = vsel %vm26, 1, 0
    %v29 = vcvt.s32.f32 %v27
    %v30 = vcvt.s32.f32 %v28
    %31 = vset.pattern.permute.xlu0 0
    %32 = vperm.xlu0 %31, %v15
    %v33 = vpop.permute.xlu0 %32
    %34 = vset.pattern.permute.xlu0 0
    %35 = vperm.xlu0 %34, %v16
    %v36 = vpop.permute.xlu0 %35
    %vm37 = vcmp.eq.s32.totalorder %v33, %v18
    %vm38 = vcmp.eq.s32.totalorder %v36, %v18
    %v39 = vsel %vm37, 1, 0
    %v40 = vsel %vm38, 1, 0
    %v41 = vcvt.s32.f32 %v39
    %v42 = vcvt.s32.f32 %v40
    %v43 = vld [vmem:[%s1] sm:$0xff]
    %v44 = vld [vmem:[%s1 + $0x8] sm:$0xff]
    %v45 = vld [vmem:[%s1 + $0x10] sm:$0xff]
    %v46 = vld [vmem:[%s1 + $0x18] sm:$0xff]
    %v47 = vld [vmem:[%s1 + $0x20] sm:$0xff]
    %v48 = vld [vmem:[%s1 + $0x28] sm:$0xff]
    %v49 = vld [vmem:[%s1 + $0x30] sm:$0xff]
    %v50 = vld [vmem:[%s1 + $0x38] sm:$0xff]
    %v51 = vld [vmem:[%s1 + $0x40] sm:$0xff]
    %vm52 = vcmask 64512
    %v54 = vsel %vm52, %v41, 0
    %v57 = vsel %vm52, %v42, 0
    %59 = vmatprep.subr.mxu0 0.0
    %60 = vmatpush1.msra.mxu0 0.0
    %61 = vmatprep.subr.mxu0 0.0
    %62 = vmatpush1.msra.mxu0 0.0
    %63 = vmatprep.subr.mxu0 0.0
    %64 = vmatpush1.msra.mxu0 0.0
    %65 = vmatprep.subr.mxu0 0.0
    %66 = vmatpush1.msra.mxu0 0.0
    %67 = vmatprep.subr.mxu0 0.0
    %68 = vmatpush1.msra.mxu0 0.0
    %69 = vmatprep.subr.mxu0 0.0
    %70 = vmatpush1.msra.mxu0 0.0
    %71 = vmatprep.subr.mxu0 0.0
    %72 = vmatpush1.msra.mxu0 0.0
    %73 = vmatprep.subr.mxu0 0.0
    %74 = vmatpush1.msra.mxu0 0.0
    %75 = vmatprep.subr.mxu0 0.0
    %76 = vmatpush1.msra.mxu0 0.0
    %77 = vmatprep.subr.mxu0 0.0
    %78 = vmatpush1.msra.mxu0 0.0
    %79 = vmatprep.subr.mxu0 0.0
    %80 = vmatpush1.msra.mxu0 0.0
    %81 = vmatprep.subr.mxu0 0.0
    %82 = vmatpush1.msra.mxu0 0.0
    %83 = vmatprep.subr.mxu0 0.0
    %84 = vmatpush1.msra.mxu0 0.0
    %85 = vmatprep.subr.mxu0 0.0
    %86 = vmatpush1.msra.mxu0 0.0
    %87 = vmatprep.subr.mxu0 0.0
    %88 = vmatpush1.msra.mxu0 0.0
    %89 = vmatprep.subr.mxu0 0.0
    %90 = vmatpush1.msra.mxu0 %v51
    %91 = vmatprep.subr.mxu0 0.0
    %92 = vmatpush2.msra.mxu0 0.0
    %93 = vmatprep.subr.mxu0 0.0
    %94 = vmatpush2.msra.mxu0 0.0
    %95 = vmatprep.subr.mxu0 0.0
    %96 = vmatpush2.msra.mxu0 0.0
    %97 = vmatprep.subr.mxu0 0.0
    %98 = vmatpush2.msra.mxu0 0.0
    %99 = vmatprep.subr.mxu0 0.0
    %100 = vmatpush2.msra.mxu0 0.0
    %101 = vmatprep.subr.mxu0 0.0
    %102 = vmatpush2.msra.mxu0 0.0
    %103 = vmatprep.subr.mxu0 0.0
    %104 = vmatpush2.msra.mxu0 0.0
    %105 = vmatprep.subr.mxu0 0.0
    %106 = vmatpush2.msra.mxu0 0.0
    %107 = vmatprep.subr.mxu0 0.0
    %108 = vmatpush2.msra.mxu0 0.0
    %109 = vmatprep.subr.mxu0 0.0
    %110 = vmatpush2.msra.mxu0 0.0
    %111 = vmatprep.subr.mxu0 0.0
    %112 = vmatpush2.msra.mxu0 0.0
    %113 = vmatprep.subr.mxu0 0.0
    %114 = vmatpush2.msra.mxu0 0.0
    %115 = vmatprep.subr.mxu0 0.0
    %116 = vmatpush2.msra.mxu0 0.0
    %117 = vmatprep.subr.mxu0 0.0
    %118 = vmatpush2.msra.mxu0 0.0
    %119 = vmatprep.subr.mxu0 0.0
    %120 = vmatpush2.msra.mxu0 0.0
    %121 = vmatprep.subr.mxu0 0.0
    %122 = vmatpush2.msra.mxu0 0.0
    %123 = vmatprep.mubr.f32.mxu0 0.0
    %124 = vmatmul.mubr.f32.gmra.mxu0 %v54
    %v125 = vpop.f32.mrf.mxu0
    %v126 = vadd.f32 0.0, %v125
    %v127 = vpop.f32.mrf.mxu0
    %128 = vmatprep.mubr.f32.mxu0 0.0
    %129 = vmatmul.mubr.f32.gmra.mxu0 %v57
    %v130 = vpop.f32.mrf.mxu0
    %v131 = vadd.f32 0.0, %v130
    %v132 = vpop.f32.mrf.mxu0
    %133 = vdwg.mxu0
    %vm134 = vcmask 523264
    %v136 = vsel %vm134, %v29, 0
    %v139 = vsel %vm134, %v30, 0
    %141 = vmatprep.subr.mxu0 0.0
    %142 = vmatpush1.msra.mxu0 0.0
    %143 = vmatprep.subr.mxu0 0.0
    %144 = vmatpush1.msra.mxu0 0.0
    %145 = vmatprep.subr.mxu0 0.0
    %146 = vmatpush1.msra.mxu0 0.0
    %147 = vmatprep.subr.mxu0 0.0
    %148 = vmatpush1.msra.mxu0 0.0
    %149 = vmatprep.subr.mxu0 0.0
    %150 = vmatpush1.msra.mxu0 0.0
    %151 = vmatprep.subr.mxu0 0.0
    %152 = vmatpush1.msra.mxu0 0.0
    %153 = vmatprep.subr.mxu0 0.0
    %154 = vmatpush1.msra.mxu0 0.0
    %155 = vmatprep.subr.mxu0 0.0
    %156 = vmatpush1.msra.mxu0 0.0
    %157 = vmatprep.subr.mxu0 0.0
    %158 = vmatpush1.msra.mxu0 %v50
    %159 = vmatprep.subr.mxu0 0.0
    %160 = vmatpush1.msra.mxu0 %v49
    %161 = vmatprep.subr.mxu0 0.0
    %162 = vmatpush1.msra.mxu0 %v48
    %163 = vmatprep.subr.mxu0 0.0
    %164 = vmatpush1.msra.mxu0 %v47
    %165 = vmatprep.subr.mxu0 0.0
    %166 = vmatpush1.msra.mxu0 %v46
    %167 = vmatprep.subr.mxu0 0.0
    %168 = vmatpush1.msra.mxu0 %v45
    %169 = vmatprep.subr.mxu0 0.0
    %170 = vmatpush1.msra.mxu0 %v44
    %171 = vmatprep.subr.mxu0 0.0
    %172 = vmatpush1.msra.mxu0 %v43
    %173 = vmatprep.subr.mxu0 0.0
    %174 = vmatpush2.msra.mxu0 0.0
    %175 = vmatprep.subr.mxu0 0.0
    %176 = vmatpush2.msra.mxu0 0.0
    %177 = vmatprep.subr.mxu0 0.0
    %178 = vmatpush2.msra.mxu0 0.0
    %179 = vmatprep.subr.mxu0 0.0
    %180 = vmatpush2.msra.mxu0 0.0
    %181 = vmatprep.subr.mxu0 0.0
    %182 = vmatpush2.msra.mxu0 0.0
    %183 = vmatprep.subr.mxu0 0.0
    %184 = vmatpush2.msra.mxu0 0.0
    %185 = vmatprep.subr.mxu0 0.0
    %186 = vmatpush2.msra.mxu0 0.0
    %187 = vmatprep.subr.mxu0 0.0
    %188 = vmatpush2.msra.mxu0 0.0
    %189 = vmatprep.subr.mxu0 0.0
    %190 = vmatpush2.msra.mxu0 0.0
    %191 = vmatprep.subr.mxu0 0.0
    %192 = vmatpush2.msra.mxu0 0.0
    %193 = vmatprep.subr.mxu0 0.0
    %194 = vmatpush2.msra.mxu0 0.0
    %195 = vmatprep.subr.mxu0 0.0
    %196 = vmatpush2.msra.mxu0 0.0
    %197 = vmatprep.subr.mxu0 0.0
    %198 = vmatpush2.msra.mxu0 0.0
    %199 = vmatprep.subr.mxu0 0.0
    %200 = vmatpush2.msra.mxu0 0.0
    %201 = vmatprep.subr.mxu0 0.0
    %202 = vmatpush2.msra.mxu0 0.0
    %203 = vmatprep.subr.mxu0 0.0
    %204 = vmatpush2.msra.mxu0 0.0
    %205 = vmatprep.mubr.f32.mxu0 0.0
    %206 = vmatmul.mubr.f32.gmra.mxu0 %v136
    %v207 = vpop.f32.mrf.mxu0
    %v208 = vadd.f32 %v126, %v207
    %v209 = vpop.f32.mrf.mxu0
    %210 = vmatprep.mubr.f32.mxu0 0.0
    %211 = vmatmul.mubr.f32.gmra.mxu0 %v139
    %v212 = vpop.f32.mrf.mxu0
    %v213 = vadd.f32 %v131, %v212
    %v214 = vpop.f32.mrf.mxu0
    %215 = vdwg.mxu0
    %v216 = vld [vmem:[%s1 + $0x48] sm:$0xff]
    %v217 = vld [vmem:[%s1 + $0x50] sm:$0xff]
    %v218 = vadd.f32 %v208, %v216
    %v219 = vadd.f32 %v213, %v217
    %v220 = vld [vmem:[%s1 + $0x68] sm:$0x1]
    %v221 = vld [vmem:[%s1 + $0x69] sm:$0x1]
    %vm222 = vcmask 261120
    %v223 = vsel %vm222, %v218, 0.0
    %224 = vadd.xlane.f32.xlu0 %v223
    %v225 = vpop.xlane.xlu0 %224
    %v226 = vsel %vm222, %v219, 0.0
    %227 = vadd.xlane.f32.xlu0 %v226
    %v228 = vpop.xlane.xlu0 %227
    %v229 = vrcp.pop 32.0
    %v230 = vmul.f32 %v225, %v229
    %v231 = vmul.f32 %v228, %v229
    %v232 = vsub.f32 %v218, %v230
    %v233 = vsub.f32 %v219, %v231
    %v234 = vmul.f32 %v232, %v232
    %v235 = vmul.f32 %v233, %v233
    %v236 = vsel %vm222, %v234, 0.0
    %237 = vadd.xlane.f32.xlu0 %v236
    %v238 = vpop.xlane.xlu0 %237
    %v239 = vsel %vm222, %v235, 0.0
    %240 = vadd.xlane.f32.xlu0 %v239
    %v241 = vpop.xlane.xlu0 %240
    %v242 = vmul.f32 %v238, %v229
    %v243 = vmul.f32 %v241, %v229
    %v244 = vadd.f32 %v242, 1e-05
    %v245 = vadd.f32 %v243, 1e-05
    %v246 = vrsqrt.pop %v244
    %v247 = vrsqrt.pop %v245
    %v248 = vmul.f32 %v232, %v246
    %v249 = vmul.f32 %v233, %v247
    %v250 = vlaneseq
    %v251 = vshrl.u32 %v250, 7
    %v252 = vsub.s32 0, %v251
    %v253 = vrot.slane %v220, %v252
    %v254 = vmul.f32 %v248, %v253
    %v255 = vmul.f32 %v249, %v253
    %v256 = vlaneseq
    %v257 = vshrl.u32 %v256, 7
    %v258 = vsub.s32 0, %v257
    %v259 = vrot.slane %v221, %v258
    %v260 = vadd.f32 %v254, %v259
    %v261 = vadd.f32 %v255, %v259
    %v262 = vld [vmem:[%s1 + $0x58] sm:$0xff]
    %v263 = vld [vmem:[%s1 + $0x60] sm:$0xff]
    %v264 = vld [vmem:[%s1 + $0x70] sm:$0x1]
    %v265 = vld [vmem:[%s1 + $0x71] sm:$0x1]
    %v266 = vld [vmem:[%s1 + $0x72] sm:$0x1]
    %v267 = vld [vmem:[%s1 + $0x73] sm:$0x1]
    %v268 = vld [vmem:[%s1 + $0x74] sm:$0x1]
    %v269 = vld [vmem:[%s1 + $0x78] sm:$0xff]
    %v270 = vld [vmem:[%s1 + $0x80] sm:$0xff]
    %v271 = vld [vmem:[%s1 + $0x88] sm:$0xff]
    %v272 = vld [vmem:[%s1 + $0x90] sm:$0xff]
    %v273 = vld [vmem:[%s1 + $0x98] sm:$0xff]
    %v274 = vld [vmem:[%s1 + $0xa0] sm:$0xff]
    %v275 = vld [vmem:[%s1 + $0xa8] sm:$0xff]
    %v276 = vld [vmem:[%s1 + $0xb0] sm:$0xff]
    %v277 = vld [vmem:[%s1 + $0xb8] sm:$0xff]
    %v278 = vld [vmem:[%s1 + $0xc0] sm:$0xff]
    %v279 = vld [vmem:[%s1 + $0xc8] sm:$0xff]
    %v280 = vld [vmem:[%s1 + $0xd0] sm:$0xff]
    %v281 = vld [vmem:[%s1 + $0xd8] sm:$0xff]
    %v282 = vld [vmem:[%s1 + $0xe0] sm:$0xff]
    %v283 = vld [vmem:[%s1 + $0xe8] sm:$0xff]
    %v284 = vld [vmem:[%s1 + $0xf0] sm:$0xff]
    %v285 = vsel %vm222, %v260, 0.0
    %286 = vadd.xlane.f32.xlu0 %v285
    %v287 = vpop.xlane.xlu0 %286
    %v288 = vsel %vm222, %v261, 0.0
    %289 = vadd.xlane.f32.xlu0 %v288
    %v290 = vpop.xlane.xlu0 %289
    %v291 = vmul.f32 %v287, %v229
    %v292 = vmul.f32 %v290, %v229
    %v293 = vsub.f32 %v260, %v291
    %v294 = vsub.f32 %v261, %v292
    %v295 = vmul.f32 %v293, %v293
    %v296 = vmul.f32 %v294, %v294
    %v297 = vsel %vm222, %v295, 0.0
    %298 = vadd.xlane.f32.xlu0 %v297
    %v299 = vpop.xlane.xlu0 %298
    %v300 = vsel %vm222, %v296, 0.0
    %301 = vadd.xlane.f32.xlu0 %v300
    %v302 = vpop.xlane.xlu0 %301
    %v303 = vmul.f32 %v299, %v229
    %v304 = vmul.f32 %v302, %v229
    %v305 = vadd.f32 %v303, 1e-05
    %v306 = vadd.f32 %v304, 1e-05
    %v307 = vrsqrt.pop %v305
    %v308 = vrsqrt.pop %v306
    %v309 = vmul.f32 %v293, %v307
    %v310 = vmul.f32 %v294, %v308
    %v311 = vlaneseq
    %v312 = vshrl.u32 %v311, 7
    %v313 = vsub.s32 0, %v312
    %v314 = vrot.slane %v264, %v313
    %v315 = vmul.f32 %v309, %v314
    %v316 = vmul.f32 %v310, %v314
    %v317 = vlaneseq
    %v318 = vshrl.u32 %v317, 7
    %v319 = vsub.s32 0, %v318
    %v320 = vrot.slane %v265, %v319
    %v321 = vadd.f32 %v315, %v320
    %v322 = vadd.f32 %v316, %v320
    %v324 = vsel %vm222, %v321, 0
    %v327 = vsel %vm222, %v322, 0
    %329 = vmatprep.subr.mxu0 0.0
    %330 = vmatpush1.msra.mxu0 0.0
    %331 = vmatprep.subr.mxu0 0.0
    %332 = vmatpush1.msra.mxu0 0.0
    %333 = vmatprep.subr.mxu0 0.0
    %334 = vmatpush1.msra.mxu0 0.0
    %335 = vmatprep.subr.mxu0 0.0
    %336 = vmatpush1.msra.mxu0 0.0
    %337 = vmatprep.subr.mxu0 0.0
    %338 = vmatpush1.msra.mxu0 0.0
    %339 = vmatprep.subr.mxu0 0.0
    %340 = vmatpush1.msra.mxu0 0.0
    %341 = vmatprep.subr.mxu0 0.0
    %342 = vmatpush1.msra.mxu0 0.0
    %343 = vmatprep.subr.mxu0 0.0
    %344 = vmatpush1.msra.mxu0 0.0
    %345 = vmatprep.subr.mxu0 0.0
    %346 = vmatpush1.msra.mxu0 0.0
    %347 = vmatprep.subr.mxu0 0.0
    %348 = vmatpush1.msra.mxu0 0.0
    %349 = vmatprep.subr.mxu0 0.0
    %350 = vmatpush1.msra.mxu0 0.0
    %351 = vmatprep.subr.mxu0 0.0
    %352 = vmatpush1.msra.mxu0 0.0
    %353 = vmatprep.subr.mxu0 0.0
    %354 = vmatpush1.msra.mxu0 %v272
    %355 = vmatprep.subr.mxu0 0.0
    %356 = vmatpush1.msra.mxu0 %v271
    %357 = vmatprep.subr.mxu0 0.0
    %358 = vmatpush1.msra.mxu0 %v270
    %359 = vmatprep.subr.mxu0 0.0
    %360 = vmatpush1.msra.mxu0 %v269
    %361 = vmatprep.subr.mxu0 0.0
    %362 = vmatpush2.msra.mxu0 0.0
    %363 = vmatprep.subr.mxu0 0.0
    %364 = vmatpush2.msra.mxu0 0.0
    %365 = vmatprep.subr.mxu0 0.0
    %366 = vmatpush2.msra.mxu0 0.0
    %367 = vmatprep.subr.mxu0 0.0
    %368 = vmatpush2.msra.mxu0 0.0
    %369 = vmatprep.subr.mxu0 0.0
    %370 = vmatpush2.msra.mxu0 0.0
    %371 = vmatprep.subr.mxu0 0.0
    %372 = vmatpush2.msra.mxu0 0.0
    %373 = vmatprep.subr.mxu0 0.0
    %374 = vmatpush2.msra.mxu0 0.0
    %375 = vmatprep.subr.mxu0 0.0
    %376 = vmatpush2.msra.mxu0 0.0
    %377 = vmatprep.subr.mxu0 0.0
    %378 = vmatpush2.msra.mxu0 0.0
    %379 = vmatprep.subr.mxu0 0.0
    %380 = vmatpush2.msra.mxu0 0.0
    %381 = vmatprep.subr.mxu0 0.0
    %382 = vmatpush2.msra.mxu0 0.0
    %383 = vmatprep.subr.mxu0 0.0
    %384 = vmatpush2.msra.mxu0 0.0
    %385 = vmatprep.subr.mxu0 0.0
    %386 = vmatpush2.msra.mxu0 0.0
    %387 = vmatprep.subr.mxu0 0.0
    %388 = vmatpush2.msra.mxu0 0.0
    %389 = vmatprep.subr.mxu0 0.0
    %390 = vmatpush2.msra.mxu0 0.0
    %391 = vmatprep.subr.mxu0 0.0
    %392 = vmatpush2.msra.mxu0 0.0
    %393 = vmatprep.mubr.f32.mxu0 0.0
    %394 = vmatmul.mubr.f32.gmra.mxu0 %v324
    %v395 = vpop.f32.mrf.mxu0
    %v396 = vadd.f32 0.0, %v395
    %v397 = vpop.f32.mrf.mxu0
    %398 = vmatprep.mubr.f32.mxu0 0.0
    %399 = vmatmul.mubr.f32.gmra.mxu0 %v327
    %v400 = vpop.f32.mrf.mxu0
    %v401 = vadd.f32 0.0, %v400
    %v402 = vpop.f32.mrf.mxu0
    %403 = vdwg.mxu0
    %v405 = vsel %vm52, %v396, 0
    %407 = vmatprep.subr.mxu0 0.0
    %408 = vmatpush1.xpose.msra.mxu0 0.0
    %409 = vmatprep.subr.mxu0 0.0
    %410 = vmatpush1.xpose.msra.mxu0 0.0
    %411 = vmatprep.subr.mxu0 0.0
    %412 = vmatpush1.xpose.msra.mxu0 0.0
    %413 = vmatprep.subr.mxu0 0.0
    %414 = vmatpush1.xpose.msra.mxu0 0.0
    %415 = vmatprep.subr.mxu0 0.0
    %416 = vmatpush1.xpose.msra.mxu0 0.0
    %417 = vmatprep.subr.mxu0 0.0
    %418 = vmatpush1.xpose.msra.mxu0 0.0
    %419 = vmatprep.subr.mxu0 0.0
    %420 = vmatpush1.xpose.msra.mxu0 0.0
    %421 = vmatprep.subr.mxu0 0.0
    %422 = vmatpush1.xpose.msra.mxu0 0.0
    %423 = vmatprep.subr.mxu0 0.0
    %424 = vmatpush1.xpose.msra.mxu0 0.0
    %425 = vmatprep.subr.mxu0 0.0
    %426 = vmatpush1.xpose.msra.mxu0 0.0
    %427 = vmatprep.subr.mxu0 0.0
    %428 = vmatpush1.xpose.msra.mxu0 0.0
    %429 = vmatprep.subr.mxu0 0.0
    %430 = vmatpush1.xpose.msra.mxu0 0.0
    %431 = vmatprep.subr.mxu0 0.0
    %432 = vmatpush1.xpose.msra.mxu0 0.0
    %433 = vmatprep.subr.mxu0 0.0
    %434 = vmatpush1.xpose.msra.mxu0 0.0
    %435 = vmatprep.subr.mxu0 0.0
    %436 = vmatpush1.xpose.msra.mxu0 0.0
    %437 = vmatprep.subr.mxu0 0.0
    %438 = vmatpush1.xpose.msra.mxu0 %v405
    %439 = vmatprep.subr.mxu0 0.0
    %440 = vmatpush2.xpose.msra.mxu0 0.0
    %441 = vmatprep.subr.mxu0 0.0
    %442 = vmatpush2.xpose.msra.mxu0 0.0
    %443 = vmatprep.subr.mxu0 0.0
    %444 = vmatpush2.xpose.msra.mxu0 0.0
    %445 = vmatprep.subr.mxu0 0.0
    %446 = vmatpush2.xpose.msra.mxu0 0.0
    %447 = vmatprep.subr.mxu0 0.0
    %448 = vmatpush2.xpose.msra.mxu0 0.0
    %449 = vmatprep.subr.mxu0 0.0
    %450 = vmatpush2.xpose.msra.mxu0 0.0
    %451 = vmatprep.subr.mxu0 0.0
    %452 = vmatpush2.xpose.msra.mxu0 0.0
    %453 = vmatprep.subr.mxu0 0.0
    %454 = vmatpush2.xpose.msra.mxu0 0.0
    %455 = vmatprep.subr.mxu0 0.0
    %456 = vmatpush2.xpose.msra.mxu0 0.0
    %457 = vmatprep.subr.mxu0 0.0
    %458 = vmatpush2.xpose.msra.mxu0 0.0
    %459 = vmatprep.subr.mxu0 0.0
    %460 = vmatpush2.xpose.msra.mxu0 0.0
    %461 = vmatprep.subr.mxu0 0.0
    %462 = vmatpush2.xpose.msra.mxu0 0.0
    %463 = vmatprep.subr.mxu0 0.0
    %464 = vmatpush2.xpose.msra.mxu0 0.0
    %465 = vmatprep.subr.mxu0 0.0
    %466 = vmatpush2.xpose.msra.mxu0 0.0
    %467 = vmatprep.subr.mxu0 0.0
    %468 = vmatpush2.xpose.msra.mxu0 0.0
    %469 = vmatprep.subr.mxu0 0.0
    %470 = vmatpush2.xpose.msra.mxu0 0.0
    %471 = vmatprep.mubr.f32.mxu0 0.0
    %472 = vmatmul.mubr.f32.gmra.mxu0 %v405
    %v473 = vpop.f32.mrf.mxu0
    %v474 = vadd.f32 0.0, %v473
    %v475 = vpop.f32.mrf.mxu0
    %476 = vdwg.mxu0
    %v478 = vsel %vm52, %v401, 0
    %480 = vmatprep.subr.mxu0 0.0
    %481 = vmatpush1.xpose.msra.mxu0 0.0
    %482 = vmatprep.subr.mxu0 0.0
    %483 = vmatpush1.xpose.msra.mxu0 0.0
    %484 = vmatprep.subr.mxu0 0.0
    %485 = vmatpush1.xpose.msra.mxu0 0.0
    %486 = vmatprep.subr.mxu0 0.0
    %487 = vmatpush1.xpose.msra.mxu0 0.0
    %488 = vmatprep.subr.mxu0 0.0
    %489 = vmatpush1.xpose.msra.mxu0 0.0
    %490 = vmatprep.subr.mxu0 0.0
    %491 = vmatpush1.xpose.msra.mxu0 0.0
    %492 = vmatprep.subr.mxu0 0.0
    %493 = vmatpush1.xpose.msra.mxu0 0.0
    %494 = vmatprep.subr.mxu0 0.0
    %495 = vmatpush1.xpose.msra.mxu0 0.0
    %496 = vmatprep.subr.mxu0 0.0
    %497 = vmatpush1.xpose.msra.mxu0 0.0
    %498 = vmatprep.subr.mxu0 0.0
    %499 = vmatpush1.xpose.msra.mxu0 0.0
    %500 = vmatprep.subr.mxu0 0.0
    %501 = vmatpush1.xpose.msra.mxu0 0.0
    %502 = vmatprep.subr.mxu0 0.0
    %503 = vmatpush1.xpose.msra.mxu0 0.0
    %504 = vmatprep.subr.mxu0 0.0
    %505 = vmatpush1.xpose.msra.mxu0 0.0
    %506 = vmatprep.subr.mxu0 0.0
    %507 = vmatpush1.xpose.msra.mxu0 0.0
    %508 = vmatprep.subr.mxu0 0.0
    %509 = vmatpush1.xpose.msra.mxu0 0.0
    %510 = vmatprep.subr.mxu0 0.0
    %511 = vmatpush1.xpose.msra.mxu0 %v478
    %512 = vmatprep.subr.mxu0 0.0
    %513 = vmatpush2.xpose.msra.mxu0 0.0
    %514 = vmatprep.subr.mxu0 0.0
    %515 = vmatpush2.xpose.msra.mxu0 0.0
    %516 = vmatprep.subr.mxu0 0.0
    %517 = vmatpush2.xpose.msra.mxu0 0.0
    %518 = vmatprep.subr.mxu0 0.0
    %519 = vmatpush2.xpose.msra.mxu0 0.0
    %520 = vmatprep.subr.mxu0 0.0
    %521 = vmatpush2.xpose.msra.mxu0 0.0
    %522 = vmatprep.subr.mxu0 0.0
    %523 = vmatpush2.xpose.msra.mxu0 0.0
    %524 = vmatprep.subr.mxu0 0.0
    %525 = vmatpush2.xpose.msra.mxu0 0.0
    %526 = vmatprep.subr.mxu0 0.0
    %527 = vmatpush2.xpose.msra.mxu0 0.0
    %528 = vmatprep.subr.mxu0 0.0
    %529 = vmatpush2.xpose.msra.mxu0 0.0
    %530 = vmatprep.subr.mxu0 0.0
    %531 = vmatpush2.xpose.msra.mxu0 0.0
    %532 = vmatprep.subr.mxu0 0.0
    %533 = vmatpush2.xpose.msra.mxu0 0.0
    %534 = vmatprep.subr.mxu0 0.0
    %535 = vmatpush2.xpose.msra.mxu0 0.0
    %536 = vmatprep.subr.mxu0 0.0
    %537 = vmatpush2.xpose.msra.mxu0 0.0
    %538 = vmatprep.subr.mxu0 0.0
    %539 = vmatpush2.xpose.msra.mxu0 0.0
    %540 = vmatprep.subr.mxu0 0.0
    %541 = vmatpush2.xpose.msra.mxu0 0.0
    %542 = vmatprep.subr.mxu0 0.0
    %543 = vmatpush2.xpose.msra.mxu0 0.0
    %544 = vmatprep.mubr.f32.mxu0 0.0
    %545 = vmatmul.mubr.f32.gmra.mxu0 %v478
    %v546 = vpop.f32.mrf.mxu0
    %v547 = vadd.f32 0.0, %v546
    %v548 = vpop.f32.mrf.mxu0
    %549 = vdwg.mxu0
    %v550 = vmul.f32 %v474, 0.35355338
    %v551 = vmul.f32 %v547, 0.35355338
    %v552 = vsel %vm52, %v550, -inf
    %553 = vmax.xlane.f32.xlu0 %v552
    %v554 = vpop.xlane.xlu0 %553
    %v555 = vsel %vm52, %v551, -inf
    %556 = vmax.xlane.f32.xlu0 %v555
    %v557 = vpop.xlane.xlu0 %556
    %v558 = vsub.f32 %v550, %v554
    %v559 = vsub.f32 %v551, %v557
    %v560 = vmul.f32 %v558, 1.442695
    %v561 = vpow.pop %v560
    %v562 = vmul.f32 %v559, 1.442695
    %v563 = vpow.pop %v562
    %v564 = vsel %vm52, %v561, 0.0
    %565 = vadd.xlane.f32.xlu0 %v564
    %v566 = vpop.xlane.xlu0 %565
    %v567 = vsel %vm52, %v563, 0.0
    %568 = vadd.xlane.f32.xlu0 %v567
    %v569 = vpop.xlane.xlu0 %568
    %v570 = vrcp.pop %v566
    %v571 = vrcp.pop %v569
    %v572 = vmul.f32 %v561, %v570
    %v573 = vmul.f32 %v563, %v571
    %v574 = vmul.f32 %v572, %v262
    %v575 = vmul.f32 %v573, %v263
    %v577 = vsel %vm52, %v574, 0
    %579 = vmatprep.subr.mxu0 0.0
    %580 = vmatpush1.msra.mxu0 0.0
    %581 = vmatprep.subr.mxu0 0.0
    %582 = vmatpush1.msra.mxu0 0.0
    %583 = vmatprep.subr.mxu0 0.0
    %584 = vmatpush1.msra.mxu0 0.0
    %585 = vmatprep.subr.mxu0 0.0
    %586 = vmatpush1.msra.mxu0 0.0
    %587 = vmatprep.subr.mxu0 0.0
    %588 = vmatpush1.msra.mxu0 0.0
    %589 = vmatprep.subr.mxu0 0.0
    %590 = vmatpush1.msra.mxu0 0.0
    %591 = vmatprep.subr.mxu0 0.0
    %592 = vmatpush1.msra.mxu0 0.0
    %593 = vmatprep.subr.mxu0 0.0
    %594 = vmatpush1.msra.mxu0 0.0
    %595 = vmatprep.subr.mxu0 0.0
    %596 = vmatpush1.msra.mxu0 0.0
    %597 = vmatprep.subr.mxu0 0.0
    %598 = vmatpush1.msra.mxu0 0.0
    %599 = vmatprep.subr.mxu0 0.0
    %600 = vmatpush1.msra.mxu0 0.0
    %601 = vmatprep.subr.mxu0 0.0
    %602 = vmatpush1.msra.mxu0 0.0
    %603 = vmatprep.subr.mxu0 0.0
    %604 = vmatpush1.msra.mxu0 0.0
    %605 = vmatprep.subr.mxu0 0.0
    %606 = vmatpush1.msra.mxu0 0.0
    %607 = vmatprep.subr.mxu0 0.0
    %608 = vmatpush1.msra.mxu0 0.0
    %609 = vmatprep.subr.mxu0 0.0
    %610 = vmatpush1.msra.mxu0 %v396
    %611 = vmatprep.subr.mxu0 0.0
    %612 = vmatpush2.msra.mxu0 0.0
    %613 = vmatprep.subr.mxu0 0.0
    %614 = vmatpush2.msra.mxu0 0.0
    %615 = vmatprep.subr.mxu0 0.0
    %616 = vmatpush2.msra.mxu0 0.0
    %617 = vmatprep.subr.mxu0 0.0
    %618 = vmatpush2.msra.mxu0 0.0
    %619 = vmatprep.subr.mxu0 0.0
    %620 = vmatpush2.msra.mxu0 0.0
    %621 = vmatprep.subr.mxu0 0.0
    %622 = vmatpush2.msra.mxu0 0.0
    %623 = vmatprep.subr.mxu0 0.0
    %624 = vmatpush2.msra.mxu0 0.0
    %625 = vmatprep.subr.mxu0 0.0
    %626 = vmatpush2.msra.mxu0 0.0
    %627 = vmatprep.subr.mxu0 0.0
    %628 = vmatpush2.msra.mxu0 0.0
    %629 = vmatprep.subr.mxu0 0.0
    %630 = vmatpush2.msra.mxu0 0.0
    %631 = vmatprep.subr.mxu0 0.0
    %632 = vmatpush2.msra.mxu0 0.0
    %633 = vmatprep.subr.mxu0 0.0
    %634 = vmatpush2.msra.mxu0 0.0
    %635 = vmatprep.subr.mxu0 0.0
    %636 = vmatpush2.msra.mxu0 0.0
    %637 = vmatprep.subr.mxu0 0.0
    %638 = vmatpush2.msra.mxu0 0.0
    %639 = vmatprep.subr.mxu0 0.0
    %640 = vmatpush2.msra.mxu0 0.0
    %641 = vmatprep.subr.mxu0 0.0
    %642 = vmatpush2.msra.mxu0 0.0
    %643 = vmatprep.mubr.f32.mxu0 0.0
    %644 = vmatmul.mubr.f32.gmra.mxu0 %v577
    %v645 = vpop.f32.mrf.mxu0
    %v646 = vadd.f32 0.0, %v645
    %v647 = vpop.f32.mrf.mxu0
    %648 = vdwg.mxu0
    %v650 = vsel %vm52, %v575, 0
    %652 = vmatprep.subr.mxu0 0.0
    %653 = vmatpush1.msra.mxu0 0.0
    %654 = vmatprep.subr.mxu0 0.0
    %655 = vmatpush1.msra.mxu0 0.0
    %656 = vmatprep.subr.mxu0 0.0
    %657 = vmatpush1.msra.mxu0 0.0
    %658 = vmatprep.subr.mxu0 0.0
    %659 = vmatpush1.msra.mxu0 0.0
    %660 = vmatprep.subr.mxu0 0.0
    %661 = vmatpush1.msra.mxu0 0.0
    %662 = vmatprep.subr.mxu0 0.0
    %663 = vmatpush1.msra.mxu0 0.0
    %664 = vmatprep.subr.mxu0 0.0
    %665 = vmatpush1.msra.mxu0 0.0
    %666 = vmatprep.subr.mxu0 0.0
    %667 = vmatpush1.msra.mxu0 0.0
    %668 = vmatprep.subr.mxu0 0.0
    %669 = vmatpush1.msra.mxu0 0.0
    %670 = vmatprep.subr.mxu0 0.0
    %671 = vmatpush1.msra.mxu0 0.0
    %672 = vmatprep.subr.mxu0 0.0
    %673 = vmatpush1.msra.mxu0 0.0
    %674 = vmatprep.subr.mxu0 0.0
    %675 = vmatpush1.msra.mxu0 0.0
    %676 = vmatprep.subr.mxu0 0.0
    %677 = vmatpush1.msra.mxu0 0.0
    %678 = vmatprep.subr.mxu0 0.0
    %679 = vmatpush1.msra.mxu0 0.0
    %680 = vmatprep.subr.mxu0 0.0
    %681 = vmatpush1.msra.mxu0 0.0
    %682 = vmatprep.subr.mxu0 0.0
    %683 = vmatpush1.msra.mxu0 %v401
    %684 = vmatprep.subr.mxu0 0.0
    %685 = vmatpush2.msra.mxu0 0.0
    %686 = vmatprep.subr.mxu0 0.0
    %687 = vmatpush2.msra.mxu0 0.0
    %688 = vmatprep.subr.mxu0 0.0
    %689 = vmatpush2.msra.mxu0 0.0
    %690 = vmatprep.subr.mxu0 0.0
    %691 = vmatpush2.msra.mxu0 0.0
    %692 = vmatprep.subr.mxu0 0.0
    %693 = vmatpush2.msra.mxu0 0.0
    %694 = vmatprep.subr.mxu0 0.0
    %695 = vmatpush2.msra.mxu0 0.0
    %696 = vmatprep.subr.mxu0 0.0
    %697 = vmatpush2.msra.mxu0 0.0
    %698 = vmatprep.subr.mxu0 0.0
    %699 = vmatpush2.msra.mxu0 0.0
    %700 = vmatprep.subr.mxu0 0.0
    %701 = vmatpush2.msra.mxu0 0.0
    %702 = vmatprep.subr.mxu0 0.0
    %703 = vmatpush2.msra.mxu0 0.0
    %704 = vmatprep.subr.mxu0 0.0
    %705 = vmatpush2.msra.mxu0 0.0
    %706 = vmatprep.subr.mxu0 0.0
    %707 = vmatpush2.msra.mxu0 0.0
    %708 = vmatprep.subr.mxu0 0.0
    %709 = vmatpush2.msra.mxu0 0.0
    %710 = vmatprep.subr.mxu0 0.0
    %711 = vmatpush2.msra.mxu0 0.0
    %712 = vmatprep.subr.mxu0 0.0
    %713 = vmatpush2.msra.mxu0 0.0
    %714 = vmatprep.subr.mxu0 0.0
    %715 = vmatpush2.msra.mxu0 0.0
    %716 = vmatprep.mubr.f32.mxu0 0.0
    %717 = vmatmul.mubr.f32.gmra.mxu0 %v650
    %v718 = vpop.f32.mrf.mxu0
    %v719 = vadd.f32 0.0, %v718
    %v720 = vpop.f32.mrf.mxu0
    %721 = vdwg.mxu0
    %722 = vrot.lane.b32.xlu0 %v396, 120
    %v723 = vpop.permute.xlu0 %722
    %v724 = vsel %vm52, %v723, 0
    %726 = vmatprep.subr.mxu0 0.0
    %727 = vmatpush1.xpose.msra.mxu0 0.0
    %728 = vmatprep.subr.mxu0 0.0
    %729 = vmatpush1.xpose.msra.mxu0 0.0
    %730 = vmatprep.subr.mxu0 0.0
    %731 = vmatpush1.xpose.msra.mxu0 0.0
    %732 = vmatprep.subr.mxu0 0.0
    %733 = vmatpush1.xpose.msra.mxu0 0.0
    %734 = vmatprep.subr.mxu0 0.0
    %735 = vmatpush1.xpose.msra.mxu0 0.0
    %736 = vmatprep.subr.mxu0 0.0
    %737 = vmatpush1.xpose.msra.mxu0 0.0
    %738 = vmatprep.subr.mxu0 0.0
    %739 = vmatpush1.xpose.msra.mxu0 0.0
    %740 = vmatprep.subr.mxu0 0.0
    %741 = vmatpush1.xpose.msra.mxu0 0.0
    %742 = vmatprep.subr.mxu0 0.0
    %743 = vmatpush1.xpose.msra.mxu0 0.0
    %744 = vmatprep.subr.mxu0 0.0
    %745 = vmatpush1.xpose.msra.mxu0 0.0
    %746 = vmatprep.subr.mxu0 0.0
    %747 = vmatpush1.xpose.msra.mxu0 0.0
    %748 = vmatprep.subr.mxu0 0.0
    %749 = vmatpush1.xpose.msra.mxu0 0.0
    %750 = vmatprep.subr.mxu0 0.0
    %751 = vmatpush1.xpose.msra.mxu0 0.0
    %752 = vmatprep.subr.mxu0 0.0
    %753 = vmatpush1.xpose.msra.mxu0 0.0
    %754 = vmatprep.subr.mxu0 0.0
    %755 = vmatpush1.xpose.msra.mxu0 0.0
    %756 = vmatprep.subr.mxu0 0.0
    %757 = vmatpush1.xpose.msra.mxu0 %v724
    %758 = vmatprep.subr.mxu0 0.0
    %759 = vmatpush2.xpose.msra.mxu0 0.0
    %760 = vmatprep.subr.mxu0 0.0
    %761 = vmatpush2.xpose.msra.mxu0 0.0
    %762 = vmatprep.subr.mxu0 0.0
    %763 = vmatpush2.xpose.msra.mxu0 0.0
    %764 = vmatprep.subr.mxu0 0.0
    %765 = vmatpush2.xpose.msra.mxu0 0.0
    %766 = vmatprep.subr.mxu0 0.0
    %767 = vmatpush2.xpose.msra.mxu0 0.0
    %768 = vmatprep.subr.mxu0 0.0
    %769 = vmatpush2.xpose.msra.mxu0 0.0
    %770 = vmatprep.subr.mxu0 0.0
    %771 = vmatpush2.xpose.msra.mxu0 0.0
    %772 = vmatprep.subr.mxu0 0.0
    %773 = vmatpush2.xpose.msra.mxu0 0.0
    %774 = vmatprep.subr.mxu0 0.0
    %775 = vmatpush2.xpose.msra.mxu0 0.0
    %776 = vmatprep.subr.mxu0 0.0
    %777 = vmatpush2.xpose.msra.mxu0 0.0
    %778 = vmatprep.subr.mxu0 0.0
    %779 = vmatpush2.xpose.msra.mxu0 0.0
    %780 = vmatprep.subr.mxu0 0.0
    %781 = vmatpush2.xpose.msra.mxu0 0.0
    %782 = vmatprep.subr.mxu0 0.0
    %783 = vmatpush2.xpose.msra.mxu0 0.0
    %784 = vmatprep.subr.mxu0 0.0
    %785 = vmatpush2.xpose.msra.mxu0 0.0
    %786 = vmatprep.subr.mxu0 0.0
    %787 = vmatpush2.xpose.msra.mxu0 0.0
    %788 = vmatprep.subr.mxu0 0.0
    %789 = vmatpush2.xpose.msra.mxu0 0.0
    %790 = vmatprep.mubr.f32.mxu0 0.0
    %791 = vmatmul.mubr.f32.gmra.mxu0 %v724
    %v792 = vpop.f32.mrf.mxu0
    %v793 = vadd.f32 0.0, %v792
    %v794 = vpop.f32.mrf.mxu0
    %795 = vdwg.mxu0
    %796 = vrot.lane.b32.xlu0 %v401, 120
    %v797 = vpop.permute.xlu0 %796
    %v798 = vsel %vm52, %v797, 0
    %800 = vmatprep.subr.mxu0 0.0
    %801 = vmatpush1.xpose.msra.mxu0 0.0
    %802 = vmatprep.subr.mxu0 0.0
    %803 = vmatpush1.xpose.msra.mxu0 0.0
    %804 = vmatprep.subr.mxu0 0.0
    %805 = vmatpush1.xpose.msra.mxu0 0.0
    %806 = vmatprep.subr.mxu0 0.0
    %807 = vmatpush1.xpose.msra.mxu0 0.0
    %808 = vmatprep.subr.mxu0 0.0
    %809 = vmatpush1.xpose.msra.mxu0 0.0
    %810 = vmatprep.subr.mxu0 0.0
    %811 = vmatpush1.xpose.msra.mxu0 0.0
    %812 = vmatprep.subr.mxu0 0.0
    %813 = vmatpush1.xpose.msra.mxu0 0.0
    %814 = vmatprep.subr.mxu0 0.0
    %815 = vmatpush1.xpose.msra.mxu0 0.0
    %816 = vmatprep.subr.mxu0 0.0
    %817 = vmatpush1.xpose.msra.mxu0 0.0
    %818 = vmatprep.subr.mxu0 0.0
    %819 = vmatpush1.xpose.msra.mxu0 0.0
    %820 = vmatprep.subr.mxu0 0.0
    %821 = vmatpush1.xpose.msra.mxu0 0.0
    %822 = vmatprep.subr.mxu0 0.0
    %823 = vmatpush1.xpose.msra.mxu0 0.0
    %824 = vmatprep.subr.mxu0 0.0
    %825 = vmatpush1.xpose.msra.mxu0 0.0
    %826 = vmatprep.subr.mxu0 0.0
    %827 = vmatpush1.xpose.msra.mxu0 0.0
    %828 = vmatprep.subr.mxu0 0.0
    %829 = vmatpush1.xpose.msra.mxu0 0.0
    %830 = vmatprep.subr.mxu0 0.0
    %831 = vmatpush1.xpose.msra.mxu0 %v798
    %832 = vmatprep.subr.mxu0 0.0
    %833 = vmatpush2.xpose.msra.mxu0 0.0
    %834 = vmatprep.subr.mxu0 0.0
    %835 = vmatpush2.xpose.msra.mxu0 0.0
    %836 = vmatprep.subr.mxu0 0.0
    %837 = vmatpush2.xpose.msra.mxu0 0.0
    %838 = vmatprep.subr.mxu0 0.0
    %839 = vmatpush2.xpose.msra.mxu0 0.0
    %840 = vmatprep.subr.mxu0 0.0
    %841 = vmatpush2.xpose.msra.mxu0 0.0
    %842 = vmatprep.subr.mxu0 0.0
    %843 = vmatpush2.xpose.msra.mxu0 0.0
    %844 = vmatprep.subr.mxu0 0.0
    %845 = vmatpush2.xpose.msra.mxu0 0.0
    %846 = vmatprep.subr.mxu0 0.0
    %847 = vmatpush2.xpose.msra.mxu0 0.0
    %848 = vmatprep.subr.mxu0 0.0
    %849 = vmatpush2.xpose.msra.mxu0 0.0
    %850 = vmatprep.subr.mxu0 0.0
    %851 = vmatpush2.xpose.msra.mxu0 0.0
    %852 = vmatprep.subr.mxu0 0.0
    %853 = vmatpush2.xpose.msra.mxu0 0.0
    %854 = vmatprep.subr.mxu0 0.0
    %855 = vmatpush2.xpose.msra.mxu0 0.0
    %856 = vmatprep.subr.mxu0 0.0
    %857 = vmatpush2.xpose.msra.mxu0 0.0
    %858 = vmatprep.subr.mxu0 0.0
    %859 = vmatpush2.xpose.msra.mxu0 0.0
    %860 = vmatprep.subr.mxu0 0.0
    %861 = vmatpush2.xpose.msra.mxu0 0.0
    %862 = vmatprep.subr.mxu0 0.0
    %863 = vmatpush2.xpose.msra.mxu0 0.0
    %864 = vmatprep.mubr.f32.mxu0 0.0
    %865 = vmatmul.mubr.f32.gmra.mxu0 %v798
    %v866 = vpop.f32.mrf.mxu0
    %v867 = vadd.f32 0.0, %v866
    %v868 = vpop.f32.mrf.mxu0
    %869 = vdwg.mxu0
    %v870 = vmul.f32 %v793, 0.35355338
    %v871 = vmul.f32 %v867, 0.35355338
    %v872 = vsel %vm52, %v870, -inf
    %873 = vmax.xlane.f32.xlu0 %v872
    %v874 = vpop.xlane.xlu0 %873
    %v875 = vsel %vm52, %v871, -inf
    %876 = vmax.xlane.f32.xlu0 %v875
    %v877 = vpop.xlane.xlu0 %876
    %v878 = vsub.f32 %v870, %v874
    %v879 = vsub.f32 %v871, %v877
    %v880 = vmul.f32 %v878, 1.442695
    %v881 = vpow.pop %v880
    %v882 = vmul.f32 %v879, 1.442695
    %v883 = vpow.pop %v882
    %v884 = vsel %vm52, %v881, 0.0
    %885 = vadd.xlane.f32.xlu0 %v884
    %v886 = vpop.xlane.xlu0 %885
    %v887 = vsel %vm52, %v883, 0.0
    %888 = vadd.xlane.f32.xlu0 %v887
    %v889 = vpop.xlane.xlu0 %888
    %v890 = vrcp.pop %v886
    %v891 = vrcp.pop %v889
    %v892 = vmul.f32 %v881, %v890
    %v893 = vmul.f32 %v883, %v891
    %v894 = vmul.f32 %v892, %v262
    %v895 = vmul.f32 %v893, %v263
    %v898 = vsel %vm52, %v894, 0
    %900 = vmatprep.subr.mxu0 0.0
    %901 = vmatpush1.msra.mxu0 0.0
    %902 = vmatprep.subr.mxu0 0.0
    %903 = vmatpush1.msra.mxu0 0.0
    %904 = vmatprep.subr.mxu0 0.0
    %905 = vmatpush1.msra.mxu0 0.0
    %906 = vmatprep.subr.mxu0 0.0
    %907 = vmatpush1.msra.mxu0 0.0
    %908 = vmatprep.subr.mxu0 0.0
    %909 = vmatpush1.msra.mxu0 0.0
    %910 = vmatprep.subr.mxu0 0.0
    %911 = vmatpush1.msra.mxu0 0.0
    %912 = vmatprep.subr.mxu0 0.0
    %913 = vmatpush1.msra.mxu0 0.0
    %914 = vmatprep.subr.mxu0 0.0
    %915 = vmatpush1.msra.mxu0 0.0
    %916 = vmatprep.subr.mxu0 0.0
    %917 = vmatpush1.msra.mxu0 0.0
    %918 = vmatprep.subr.mxu0 0.0
    %919 = vmatpush1.msra.mxu0 0.0
    %920 = vmatprep.subr.mxu0 0.0
    %921 = vmatpush1.msra.mxu0 0.0
    %922 = vmatprep.subr.mxu0 0.0
    %923 = vmatpush1.msra.mxu0 0.0
    %924 = vmatprep.subr.mxu0 0.0
    %925 = vmatpush1.msra.mxu0 0.0
    %926 = vmatprep.subr.mxu0 0.0
    %927 = vmatpush1.msra.mxu0 0.0
    %928 = vmatprep.subr.mxu0 0.0
    %929 = vmatpush1.msra.mxu0 0.0
    %930 = vmatprep.subr.mxu0 0.0
    %931 = vmatpush1.msra.mxu0 %v723
    %932 = vmatprep.subr.mxu0 0.0
    %933 = vmatpush2.msra.mxu0 0.0
    %934 = vmatprep.subr.mxu0 0.0
    %935 = vmatpush2.msra.mxu0 0.0
    %936 = vmatprep.subr.mxu0 0.0
    %937 = vmatpush2.msra.mxu0 0.0
    %938 = vmatprep.subr.mxu0 0.0
    %939 = vmatpush2.msra.mxu0 0.0
    %940 = vmatprep.subr.mxu0 0.0
    %941 = vmatpush2.msra.mxu0 0.0
    %942 = vmatprep.subr.mxu0 0.0
    %943 = vmatpush2.msra.mxu0 0.0
    %944 = vmatprep.subr.mxu0 0.0
    %945 = vmatpush2.msra.mxu0 0.0
    %946 = vmatprep.subr.mxu0 0.0
    %947 = vmatpush2.msra.mxu0 0.0
    %948 = vmatprep.subr.mxu0 0.0
    %949 = vmatpush2.msra.mxu0 0.0
    %950 = vmatprep.subr.mxu0 0.0
    %951 = vmatpush2.msra.mxu0 0.0
    %952 = vmatprep.subr.mxu0 0.0
    %953 = vmatpush2.msra.mxu0 0.0
    %954 = vmatprep.subr.mxu0 0.0
    %955 = vmatpush2.msra.mxu0 0.0
    %956 = vmatprep.subr.mxu0 0.0
    %957 = vmatpush2.msra.mxu0 0.0
    %958 = vmatprep.subr.mxu0 0.0
    %959 = vmatpush2.msra.mxu0 0.0
    %960 = vmatprep.subr.mxu0 0.0
    %961 = vmatpush2.msra.mxu0 0.0
    %962 = vmatprep.subr.mxu0 0.0
    %963 = vmatpush2.msra.mxu0 0.0
    %964 = vmatprep.mubr.f32.mxu0 0.0
    %965 = vmatmul.mubr.f32.gmra.mxu0 %v898
    %v966 = vpop.f32.mrf.mxu0
    %v967 = vadd.f32 0.0, %v966
    %v968 = vpop.f32.mrf.mxu0
    %969 = vdwg.mxu0
    %v972 = vsel %vm52, %v895, 0
    %974 = vmatprep.subr.mxu0 0.0
    %975 = vmatpush1.msra.mxu0 0.0
    %976 = vmatprep.subr.mxu0 0.0
    %977 = vmatpush1.msra.mxu0 0.0
    %978 = vmatprep.subr.mxu0 0.0
    %979 = vmatpush1.msra.mxu0 0.0
    %980 = vmatprep.subr.mxu0 0.0
    %981 = vmatpush1.msra.mxu0 0.0
    %982 = vmatprep.subr.mxu0 0.0
    %983 = vmatpush1.msra.mxu0 0.0
    %984 = vmatprep.subr.mxu0 0.0
    %985 = vmatpush1.msra.mxu0 0.0
    %986 = vmatprep.subr.mxu0 0.0
    %987 = vmatpush1.msra.mxu0 0.0
    %988 = vmatprep.subr.mxu0 0.0
    %989 = vmatpush1.msra.mxu0 0.0
    %990 = vmatprep.subr.mxu0 0.0
    %991 = vmatpush1.msra.mxu0 0.0
    %992 = vmatprep.subr.mxu0 0.0
    %993 = vmatpush1.msra.mxu0 0.0
    %994 = vmatprep.subr.mxu0 0.0
    %995 = vmatpush1.msra.mxu0 0.0
    %996 = vmatprep.subr.mxu0 0.0
    %997 = vmatpush1.msra.mxu0 0.0
    %998 = vmatprep.subr.mxu0 0.0
    %999 = vmatpush1.msra.mxu0 0.0
    %1000 = vmatprep.subr.mxu0 0.0
    %1001 = vmatpush1.msra.mxu0 0.0
    %1002 = vmatprep.subr.mxu0 0.0
    %1003 = vmatpush1.msra.mxu0 0.0
    %1004 = vmatprep.subr.mxu0 0.0
    %1005 = vmatpush1.msra.mxu0 %v797
    %1006 = vmatprep.subr.mxu0 0.0
    %1007 = vmatpush2.msra.mxu0 0.0
    %1008 = vmatprep.subr.mxu0 0.0
    %1009 = vmatpush2.msra.mxu0 0.0
    %1010 = vmatprep.subr.mxu0 0.0
    %1011 = vmatpush2.msra.mxu0 0.0
    %1012 = vmatprep.subr.mxu0 0.0
    %1013 = vmatpush2.msra.mxu0 0.0
    %1014 = vmatprep.subr.mxu0 0.0
    %1015 = vmatpush2.msra.mxu0 0.0
    %1016 = vmatprep.subr.mxu0 0.0
    %1017 = vmatpush2.msra.mxu0 0.0
    %1018 = vmatprep.subr.mxu0 0.0
    %1019 = vmatpush2.msra.mxu0 0.0
    %1020 = vmatprep.subr.mxu0 0.0
    %1021 = vmatpush2.msra.mxu0 0.0
    %1022 = vmatprep.subr.mxu0 0.0
    %1023 = vmatpush2.msra.mxu0 0.0
    %1024 = vmatprep.subr.mxu0 0.0
    %1025 = vmatpush2.msra.mxu0 0.0
    %1026 = vmatprep.subr.mxu0 0.0
    %1027 = vmatpush2.msra.mxu0 0.0
    %1028 = vmatprep.subr.mxu0 0.0
    %1029 = vmatpush2.msra.mxu0 0.0
    %1030 = vmatprep.subr.mxu0 0.0
    %1031 = vmatpush2.msra.mxu0 0.0
    %1032 = vmatprep.subr.mxu0 0.0
    %1033 = vmatpush2.msra.mxu0 0.0
    %1034 = vmatprep.subr.mxu0 0.0
    %1035 = vmatpush2.msra.mxu0 0.0
    %1036 = vmatprep.subr.mxu0 0.0
    %1037 = vmatpush2.msra.mxu0 0.0
    %1038 = vmatprep.mubr.f32.mxu0 0.0
    %1039 = vmatmul.mubr.f32.gmra.mxu0 %v972
    %v1040 = vpop.f32.mrf.mxu0
    %v1041 = vadd.f32 0.0, %v1040
    %v1042 = vpop.f32.mrf.mxu0
    %1043 = vdwg.mxu0
    %1044 = vrot.lane.b32.xlu0 %v396, 112
    %v1045 = vpop.permute.xlu0 %1044
    %v1046 = vsel %vm52, %v1045, 0
    %1048 = vmatprep.subr.mxu0 0.0
    %1049 = vmatpush1.xpose.msra.mxu0 0.0
    %1050 = vmatprep.subr.mxu0 0.0
    %1051 = vmatpush1.xpose.msra.mxu0 0.0
    %1052 = vmatprep.subr.mxu0 0.0
    %1053 = vmatpush1.xpose.msra.mxu0 0.0
    %1054 = vmatprep.subr.mxu0 0.0
    %1055 = vmatpush1.xpose.msra.mxu0 0.0
    %1056 = vmatprep.subr.mxu0 0.0
    %1057 = vmatpush1.xpose.msra.mxu0 0.0
    %1058 = vmatprep.subr.mxu0 0.0
    %1059 = vmatpush1.xpose.msra.mxu0 0.0
    %1060 = vmatprep.subr.mxu0 0.0
    %1061 = vmatpush1.xpose.msra.mxu0 0.0
    %1062 = vmatprep.subr.mxu0 0.0
    %1063 = vmatpush1.xpose.msra.mxu0 0.0
    %1064 = vmatprep.subr.mxu0 0.0
    %1065 = vmatpush1.xpose.msra.mxu0 0.0
    %1066 = vmatprep.subr.mxu0 0.0
    %1067 = vmatpush1.xpose.msra.mxu0 0.0
    %1068 = vmatprep.subr.mxu0 0.0
    %1069 = vmatpush1.xpose.msra.mxu0 0.0
    %1070 = vmatprep.subr.mxu0 0.0
    %1071 = vmatpush1.xpose.msra.mxu0 0.0
    %1072 = vmatprep.subr.mxu0 0.0
    %1073 = vmatpush1.xpose.msra.mxu0 0.0
    %1074 = vmatprep.subr.mxu0 0.0
    %1075 = vmatpush1.xpose.msra.mxu0 0.0
    %1076 = vmatprep.subr.mxu0 0.0
    %1077 = vmatpush1.xpose.msra.mxu0 0.0
    %1078 = vmatprep.subr.mxu0 0.0
    %1079 = vmatpush1.xpose.msra.mxu0 %v1046
    %1080 = vmatprep.subr.mxu0 0.0
    %1081 = vmatpush2.xpose.msra.mxu0 0.0
    %1082 = vmatprep.subr.mxu0 0.0
    %1083 = vmatpush2.xpose.msra.mxu0 0.0
    %1084 = vmatprep.subr.mxu0 0.0
    %1085 = vmatpush2.xpose.msra.mxu0 0.0
    %1086 = vmatprep.subr.mxu0 0.0
    %1087 = vmatpush2.xpose.msra.mxu0 0.0
    %1088 = vmatprep.subr.mxu0 0.0
    %1089 = vmatpush2.xpose.msra.mxu0 0.0
    %1090 = vmatprep.subr.mxu0 0.0
    %1091 = vmatpush2.xpose.msra.mxu0 0.0
    %1092 = vmatprep.subr.mxu0 0.0
    %1093 = vmatpush2.xpose.msra.mxu0 0.0
    %1094 = vmatprep.subr.mxu0 0.0
    %1095 = vmatpush2.xpose.msra.mxu0 0.0
    %1096 = vmatprep.subr.mxu0 0.0
    %1097 = vmatpush2.xpose.msra.mxu0 0.0
    %1098 = vmatprep.subr.mxu0 0.0
    %1099 = vmatpush2.xpose.msra.mxu0 0.0
    %1100 = vmatprep.subr.mxu0 0.0
    %1101 = vmatpush2.xpose.msra.mxu0 0.0
    %1102 = vmatprep.subr.mxu0 0.0
    %1103 = vmatpush2.xpose.msra.mxu0 0.0
    %1104 = vmatprep.subr.mxu0 0.0
    %1105 = vmatpush2.xpose.msra.mxu0 0.0
    %1106 = vmatprep.subr.mxu0 0.0
    %1107 = vmatpush2.xpose.msra.mxu0 0.0
    %1108 = vmatprep.subr.mxu0 0.0
    %1109 = vmatpush2.xpose.msra.mxu0 0.0
    %1110 = vmatprep.subr.mxu0 0.0
    %1111 = vmatpush2.xpose.msra.mxu0 0.0
    %1112 = vmatprep.mubr.f32.mxu0 0.0
    %1113 = vmatmul.mubr.f32.gmra.mxu0 %v1046
    %v1114 = vpop.f32.mrf.mxu0
    %v1115 = vadd.f32 0.0, %v1114
    %v1116 = vpop.f32.mrf.mxu0
    %1117 = vdwg.mxu0
    %1118 = vrot.lane.b32.xlu0 %v401, 112
    %v1119 = vpop.permute.xlu0 %1118
    %v1120 = vsel %vm52, %v1119, 0
    %1122 = vmatprep.subr.mxu0 0.0
    %1123 = vmatpush1.xpose.msra.mxu0 0.0
    %1124 = vmatprep.subr.mxu0 0.0
    %1125 = vmatpush1.xpose.msra.mxu0 0.0
    %1126 = vmatprep.subr.mxu0 0.0
    %1127 = vmatpush1.xpose.msra.mxu0 0.0
    %1128 = vmatprep.subr.mxu0 0.0
    %1129 = vmatpush1.xpose.msra.mxu0 0.0
    %1130 = vmatprep.subr.mxu0 0.0
    %1131 = vmatpush1.xpose.msra.mxu0 0.0
    %1132 = vmatprep.subr.mxu0 0.0
    %1133 = vmatpush1.xpose.msra.mxu0 0.0
    %1134 = vmatprep.subr.mxu0 0.0
    %1135 = vmatpush1.xpose.msra.mxu0 0.0
    %1136 = vmatprep.subr.mxu0 0.0
    %1137 = vmatpush1.xpose.msra.mxu0 0.0
    %1138 = vmatprep.subr.mxu0 0.0
    %1139 = vmatpush1.xpose.msra.mxu0 0.0
    %1140 = vmatprep.subr.mxu0 0.0
    %1141 = vmatpush1.xpose.msra.mxu0 0.0
    %1142 = vmatprep.subr.mxu0 0.0
    %1143 = vmatpush1.xpose.msra.mxu0 0.0
    %1144 = vmatprep.subr.mxu0 0.0
    %1145 = vmatpush1.xpose.msra.mxu0 0.0
    %1146 = vmatprep.subr.mxu0 0.0
    %1147 = vmatpush1.xpose.msra.mxu0 0.0
    %1148 = vmatprep.subr.mxu0 0.0
    %1149 = vmatpush1.xpose.msra.mxu0 0.0
    %1150 = vmatprep.subr.mxu0 0.0
    %1151 = vmatpush1.xpose.msra.mxu0 0.0
    %1152 = vmatprep.subr.mxu0 0.0
    %1153 = vmatpush1.xpose.msra.mxu0 %v1120
    %1154 = vmatprep.subr.mxu0 0.0
    %1155 = vmatpush2.xpose.msra.mxu0 0.0
    %1156 = vmatprep.subr.mxu0 0.0
    %1157 = vmatpush2.xpose.msra.mxu0 0.0
    %1158 = vmatprep.subr.mxu0 0.0
    %1159 = vmatpush2.xpose.msra.mxu0 0.0
    %1160 = vmatprep.subr.mxu0 0.0
    %1161 = vmatpush2.xpose.msra.mxu0 0.0
    %1162 = vmatprep.subr.mxu0 0.0
    %1163 = vmatpush2.xpose.msra.mxu0 0.0
    %1164 = vmatprep.subr.mxu0 0.0
    %1165 = vmatpush2.xpose.msra.mxu0 0.0
    %1166 = vmatprep.subr.mxu0 0.0
    %1167 = vmatpush2.xpose.msra.mxu0 0.0
    %1168 = vmatprep.subr.mxu0 0.0
    %1169 = vmatpush2.xpose.msra.mxu0 0.0
    %1170 = vmatprep.subr.mxu0 0.0
    %1171 = vmatpush2.xpose.msra.mxu0 0.0
    %1172 = vmatprep.subr.mxu0 0.0
    %1173 = vmatpush2.xpose.msra.mxu0 0.0
    %1174 = vmatprep.subr.mxu0 0.0
    %1175 = vmatpush2.xpose.msra.mxu0 0.0
    %1176 = vmatprep.subr.mxu0 0.0
    %1177 = vmatpush2.xpose.msra.mxu0 0.0
    %1178 = vmatprep.subr.mxu0 0.0
    %1179 = vmatpush2.xpose.msra.mxu0 0.0
    %1180 = vmatprep.subr.mxu0 0.0
    %1181 = vmatpush2.xpose.msra.mxu0 0.0
    %1182 = vmatprep.subr.mxu0 0.0
    %1183 = vmatpush2.xpose.msra.mxu0 0.0
    %1184 = vmatprep.subr.mxu0 0.0
    %1185 = vmatpush2.xpose.msra.mxu0 0.0
    %1186 = vmatprep.mubr.f32.mxu0 0.0
    %1187 = vmatmul.mubr.f32.gmra.mxu0 %v1120
    %v1188 = vpop.f32.mrf.mxu0
    %v1189 = vadd.f32 0.0, %v1188
    %v1190 = vpop.f32.mrf.mxu0
    %1191 = vdwg.mxu0
    %v1192 = vmul.f32 %v1115, 0.35355338
    %v1193 = vmul.f32 %v1189, 0.35355338
    %v1194 = vsel %vm52, %v1192, -inf
    %1195 = vmax.xlane.f32.xlu0 %v1194
    %v1196 = vpop.xlane.xlu0 %1195
    %v1197 = vsel %vm52, %v1193, -inf
    %1198 = vmax.xlane.f32.xlu0 %v1197
    %v1199 = vpop.xlane.xlu0 %1198
    %v1200 = vsub.f32 %v1192, %v1196
    %v1201 = vsub.f32 %v1193, %v1199
    %v1202 = vmul.f32 %v1200, 1.442695
    %v1203 = vpow.pop %v1202
    %v1204 = vmul.f32 %v1201, 1.442695
    %v1205 = vpow.pop %v1204
    %v1206 = vsel %vm52, %v1203, 0.0
    %1207 = vadd.xlane.f32.xlu0 %v1206
    %v1208 = vpop.xlane.xlu0 %1207
    %v1209 = vsel %vm52, %v1205, 0.0
    %1210 = vadd.xlane.f32.xlu0 %v1209
    %v1211 = vpop.xlane.xlu0 %1210
    %v1212 = vrcp.pop %v1208
    %v1213 = vrcp.pop %v1211
    %v1214 = vmul.f32 %v1203, %v1212
    %v1215 = vmul.f32 %v1205, %v1213
    %v1216 = vmul.f32 %v1214, %v262
    %v1217 = vmul.f32 %v1215, %v263
    %v1220 = vsel %vm52, %v1216, 0
    %1222 = vmatprep.subr.mxu0 0.0
    %1223 = vmatpush1.msra.mxu0 0.0
    %1224 = vmatprep.subr.mxu0 0.0
    %1225 = vmatpush1.msra.mxu0 0.0
    %1226 = vmatprep.subr.mxu0 0.0
    %1227 = vmatpush1.msra.mxu0 0.0
    %1228 = vmatprep.subr.mxu0 0.0
    %1229 = vmatpush1.msra.mxu0 0.0
    %1230 = vmatprep.subr.mxu0 0.0
    %1231 = vmatpush1.msra.mxu0 0.0
    %1232 = vmatprep.subr.mxu0 0.0
    %1233 = vmatpush1.msra.mxu0 0.0
    %1234 = vmatprep.subr.mxu0 0.0
    %1235 = vmatpush1.msra.mxu0 0.0
    %1236 = vmatprep.subr.mxu0 0.0
    %1237 = vmatpush1.msra.mxu0 0.0
    %1238 = vmatprep.subr.mxu0 0.0
    %1239 = vmatpush1.msra.mxu0 0.0
    %1240 = vmatprep.subr.mxu0 0.0
    %1241 = vmatpush1.msra.mxu0 0.0
    %1242 = vmatprep.subr.mxu0 0.0
    %1243 = vmatpush1.msra.mxu0 0.0
    %1244 = vmatprep.subr.mxu0 0.0
    %1245 = vmatpush1.msra.mxu0 0.0
    %1246 = vmatprep.subr.mxu0 0.0
    %1247 = vmatpush1.msra.mxu0 0.0
    %1248 = vmatprep.subr.mxu0 0.0
    %1249 = vmatpush1.msra.mxu0 0.0
    %1250 = vmatprep.subr.mxu0 0.0
    %1251 = vmatpush1.msra.mxu0 0.0
    %1252 = vmatprep.subr.mxu0 0.0
    %1253 = vmatpush1.msra.mxu0 %v1045
    %1254 = vmatprep.subr.mxu0 0.0
    %1255 = vmatpush2.msra.mxu0 0.0
    %1256 = vmatprep.subr.mxu0 0.0
    %1257 = vmatpush2.msra.mxu0 0.0
    %1258 = vmatprep.subr.mxu0 0.0
    %1259 = vmatpush2.msra.mxu0 0.0
    %1260 = vmatprep.subr.mxu0 0.0
    %1261 = vmatpush2.msra.mxu0 0.0
    %1262 = vmatprep.subr.mxu0 0.0
    %1263 = vmatpush2.msra.mxu0 0.0
    %1264 = vmatprep.subr.mxu0 0.0
    %1265 = vmatpush2.msra.mxu0 0.0
    %1266 = vmatprep.subr.mxu0 0.0
    %1267 = vmatpush2.msra.mxu0 0.0
    %1268 = vmatprep.subr.mxu0 0.0
    %1269 = vmatpush2.msra.mxu0 0.0
    %1270 = vmatprep.subr.mxu0 0.0
    %1271 = vmatpush2.msra.mxu0 0.0
    %1272 = vmatprep.subr.mxu0 0.0
    %1273 = vmatpush2.msra.mxu0 0.0
    %1274 = vmatprep.subr.mxu0 0.0
    %1275 = vmatpush2.msra.mxu0 0.0
    %1276 = vmatprep.subr.mxu0 0.0
    %1277 = vmatpush2.msra.mxu0 0.0
    %1278 = vmatprep.subr.mxu0 0.0
    %1279 = vmatpush2.msra.mxu0 0.0
    %1280 = vmatprep.subr.mxu0 0.0
    %1281 = vmatpush2.msra.mxu0 0.0
    %1282 = vmatprep.subr.mxu0 0.0
    %1283 = vmatpush2.msra.mxu0 0.0
    %1284 = vmatprep.subr.mxu0 0.0
    %1285 = vmatpush2.msra.mxu0 0.0
    %1286 = vmatprep.mubr.f32.mxu0 0.0
    %1287 = vmatmul.mubr.f32.gmra.mxu0 %v1220
    %v1288 = vpop.f32.mrf.mxu0
    %v1289 = vadd.f32 0.0, %v1288
    %v1290 = vpop.f32.mrf.mxu0
    %1291 = vdwg.mxu0
    %v1294 = vsel %vm52, %v1217, 0
    %1296 = vmatprep.subr.mxu0 0.0
    %1297 = vmatpush1.msra.mxu0 0.0
    %1298 = vmatprep.subr.mxu0 0.0
    %1299 = vmatpush1.msra.mxu0 0.0
    %1300 = vmatprep.subr.mxu0 0.0
    %1301 = vmatpush1.msra.mxu0 0.0
    %1302 = vmatprep.subr.mxu0 0.0
    %1303 = vmatpush1.msra.mxu0 0.0
    %1304 = vmatprep.subr.mxu0 0.0
    %1305 = vmatpush1.msra.mxu0 0.0
    %1306 = vmatprep.subr.mxu0 0.0
    %1307 = vmatpush1.msra.mxu0 0.0
    %1308 = vmatprep.subr.mxu0 0.0
    %1309 = vmatpush1.msra.mxu0 0.0
    %1310 = vmatprep.subr.mxu0 0.0
    %1311 = vmatpush1.msra.mxu0 0.0
    %1312 = vmatprep.subr.mxu0 0.0
    %1313 = vmatpush1.msra.mxu0 0.0
    %1314 = vmatprep.subr.mxu0 0.0
    %1315 = vmatpush1.msra.mxu0 0.0
    %1316 = vmatprep.subr.mxu0 0.0
    %1317 = vmatpush1.msra.mxu0 0.0
    %1318 = vmatprep.subr.mxu0 0.0
    %1319 = vmatpush1.msra.mxu0 0.0
    %1320 = vmatprep.subr.mxu0 0.0
    %1321 = vmatpush1.msra.mxu0 0.0
    %1322 = vmatprep.subr.mxu0 0.0
    %1323 = vmatpush1.msra.mxu0 0.0
    %1324 = vmatprep.subr.mxu0 0.0
    %1325 = vmatpush1.msra.mxu0 0.0
    %1326 = vmatprep.subr.mxu0 0.0
    %1327 = vmatpush1.msra.mxu0 %v1119
    %1328 = vmatprep.subr.mxu0 0.0
    %1329 = vmatpush2.msra.mxu0 0.0
    %1330 = vmatprep.subr.mxu0 0.0
    %1331 = vmatpush2.msra.mxu0 0.0
    %1332 = vmatprep.subr.mxu0 0.0
    %1333 = vmatpush2.msra.mxu0 0.0
    %1334 = vmatprep.subr.mxu0 0.0
    %1335 = vmatpush2.msra.mxu0 0.0
    %1336 = vmatprep.subr.mxu0 0.0
    %1337 = vmatpush2.msra.mxu0 0.0
    %1338 = vmatprep.subr.mxu0 0.0
    %1339 = vmatpush2.msra.mxu0 0.0
    %1340 = vmatprep.subr.mxu0 0.0
    %1341 = vmatpush2.msra.mxu0 0.0
    %1342 = vmatprep.subr.mxu0 0.0
    %1343 = vmatpush2.msra.mxu0 0.0
    %1344 = vmatprep.subr.mxu0 0.0
    %1345 = vmatpush2.msra.mxu0 0.0
    %1346 = vmatprep.subr.mxu0 0.0
    %1347 = vmatpush2.msra.mxu0 0.0
    %1348 = vmatprep.subr.mxu0 0.0
    %1349 = vmatpush2.msra.mxu0 0.0
    %1350 = vmatprep.subr.mxu0 0.0
    %1351 = vmatpush2.msra.mxu0 0.0
    %1352 = vmatprep.subr.mxu0 0.0
    %1353 = vmatpush2.msra.mxu0 0.0
    %1354 = vmatprep.subr.mxu0 0.0
    %1355 = vmatpush2.msra.mxu0 0.0
    %1356 = vmatprep.subr.mxu0 0.0
    %1357 = vmatpush2.msra.mxu0 0.0
    %1358 = vmatprep.subr.mxu0 0.0
    %1359 = vmatpush2.msra.mxu0 0.0
    %1360 = vmatprep.mubr.f32.mxu0 0.0
    %1361 = vmatmul.mubr.f32.gmra.mxu0 %v1294
    %v1362 = vpop.f32.mrf.mxu0
    %v1363 = vadd.f32 0.0, %v1362
    %v1364 = vpop.f32.mrf.mxu0
    %1365 = vdwg.mxu0
    %1366 = vrot.lane.b32.xlu0 %v396, 104
    %v1367 = vpop.permute.xlu0 %1366
    %v1368 = vsel %vm52, %v1367, 0
    %1370 = vmatprep.subr.mxu0 0.0
    %1371 = vmatpush1.xpose.msra.mxu0 0.0
    %1372 = vmatprep.subr.mxu0 0.0
    %1373 = vmatpush1.xpose.msra.mxu0 0.0
    %1374 = vmatprep.subr.mxu0 0.0
    %1375 = vmatpush1.xpose.msra.mxu0 0.0
    %1376 = vmatprep.subr.mxu0 0.0
    %1377 = vmatpush1.xpose.msra.mxu0 0.0
    %1378 = vmatprep.subr.mxu0 0.0
    %1379 = vmatpush1.xpose.msra.mxu0 0.0
    %1380 = vmatprep.subr.mxu0 0.0
    %1381 = vmatpush1.xpose.msra.mxu0 0.0
    %1382 = vmatprep.subr.mxu0 0.0
    %1383 = vmatpush1.xpose.msra.mxu0 0.0
    %1384 = vmatprep.subr.mxu0 0.0
    %1385 = vmatpush1.xpose.msra.mxu0 0.0
    %1386 = vmatprep.subr.mxu0 0.0
    %1387 = vmatpush1.xpose.msra.mxu0 0.0
    %1388 = vmatprep.subr.mxu0 0.0
    %1389 = vmatpush1.xpose.msra.mxu0 0.0
    %1390 = vmatprep.subr.mxu0 0.0
    %1391 = vmatpush1.xpose.msra.mxu0 0.0
    %1392 = vmatprep.subr.mxu0 0.0
    %1393 = vmatpush1.xpose.msra.mxu0 0.0
    %1394 = vmatprep.subr.mxu0 0.0
    %1395 = vmatpush1.xpose.msra.mxu0 0.0
    %1396 = vmatprep.subr.mxu0 0.0
    %1397 = vmatpush1.xpose.msra.mxu0 0.0
    %1398 = vmatprep.subr.mxu0 0.0
    %1399 = vmatpush1.xpose.msra.mxu0 0.0
    %1400 = vmatprep.subr.mxu0 0.0
    %1401 = vmatpush1.xpose.msra.mxu0 %v1368
    %1402 = vmatprep.subr.mxu0 0.0
    %1403 = vmatpush2.xpose.msra.mxu0 0.0
    %1404 = vmatprep.subr.mxu0 0.0
    %1405 = vmatpush2.xpose.msra.mxu0 0.0
    %1406 = vmatprep.subr.mxu0 0.0
    %1407 = vmatpush2.xpose.msra.mxu0 0.0
    %1408 = vmatprep.subr.mxu0 0.0
    %1409 = vmatpush2.xpose.msra.mxu0 0.0
    %1410 = vmatprep.subr.mxu0 0.0
    %1411 = vmatpush2.xpose.msra.mxu0 0.0
    %1412 = vmatprep.subr.mxu0 0.0
    %1413 = vmatpush2.xpose.msra.mxu0 0.0
    %1414 = vmatprep.subr.mxu0 0.0
    %1415 = vmatpush2.xpose.msra.mxu0 0.0
    %1416 = vmatprep.subr.mxu0 0.0
    %1417 = vmatpush2.xpose.msra.mxu0 0.0
    %1418 = vmatprep.subr.mxu0 0.0
    %1419 = vmatpush2.xpose.msra.mxu0 0.0
    %1420 = vmatprep.subr.mxu0 0.0
    %1421 = vmatpush2.xpose.msra.mxu0 0.0
    %1422 = vmatprep.subr.mxu0 0.0
    %1423 = vmatpush2.xpose.msra.mxu0 0.0
    %1424 = vmatprep.subr.mxu0 0.0
    %1425 = vmatpush2.xpose.msra.mxu0 0.0
    %1426 = vmatprep.subr.mxu0 0.0
    %1427 = vmatpush2.xpose.msra.mxu0 0.0
    %1428 = vmatprep.subr.mxu0 0.0
    %1429 = vmatpush2.xpose.msra.mxu0 0.0
    %1430 = vmatprep.subr.mxu0 0.0
    %1431 = vmatpush2.xpose.msra.mxu0 0.0
    %1432 = vmatprep.subr.mxu0 0.0
    %1433 = vmatpush2.xpose.msra.mxu0 0.0
    %1434 = vmatprep.mubr.f32.mxu0 0.0
    %1435 = vmatmul.mubr.f32.gmra.mxu0 %v1368
    %v1436 = vpop.f32.mrf.mxu0
    %v1437 = vadd.f32 0.0, %v1436
    %v1438 = vpop.f32.mrf.mxu0
    %1439 = vdwg.mxu0
    %1440 = vrot.lane.b32.xlu0 %v401, 104
    %v1441 = vpop.permute.xlu0 %1440
    %v1442 = vsel %vm52, %v1441, 0
    %1444 = vmatprep.subr.mxu0 0.0
    %1445 = vmatpush1.xpose.msra.mxu0 0.0
    %1446 = vmatprep.subr.mxu0 0.0
    %1447 = vmatpush1.xpose.msra.mxu0 0.0
    %1448 = vmatprep.subr.mxu0 0.0
    %1449 = vmatpush1.xpose.msra.mxu0 0.0
    %1450 = vmatprep.subr.mxu0 0.0
    %1451 = vmatpush1.xpose.msra.mxu0 0.0
    %1452 = vmatprep.subr.mxu0 0.0
    %1453 = vmatpush1.xpose.msra.mxu0 0.0
    %1454 = vmatprep.subr.mxu0 0.0
    %1455 = vmatpush1.xpose.msra.mxu0 0.0
    %1456 = vmatprep.subr.mxu0 0.0
    %1457 = vmatpush1.xpose.msra.mxu0 0.0
    %1458 = vmatprep.subr.mxu0 0.0
    %1459 = vmatpush1.xpose.msra.mxu0 0.0
    %1460 = vmatprep.subr.mxu0 0.0
    %1461 = vmatpush1.xpose.msra.mxu0 0.0
    %1462 = vmatprep.subr.mxu0 0.0
    %1463 = vmatpush1.xpose.msra.mxu0 0.0
    %1464 = vmatprep.subr.mxu0 0.0
    %1465 = vmatpush1.xpose.msra.mxu0 0.0
    %1466 = vmatprep.subr.mxu0 0.0
    %1467 = vmatpush1.xpose.msra.mxu0 0.0
    %1468 = vmatprep.subr.mxu0 0.0
    %1469 = vmatpush1.xpose.msra.mxu0 0.0
    %1470 = vmatprep.subr.mxu0 0.0
    %1471 = vmatpush1.xpose.msra.mxu0 0.0
    %1472 = vmatprep.subr.mxu0 0.0
    %1473 = vmatpush1.xpose.msra.mxu0 0.0
    %1474 = vmatprep.subr.mxu0 0.0
    %1475 = vmatpush1.xpose.msra.mxu0 %v1442
    %1476 = vmatprep.subr.mxu0 0.0
    %1477 = vmatpush2.xpose.msra.mxu0 0.0
    %1478 = vmatprep.subr.mxu0 0.0
    %1479 = vmatpush2.xpose.msra.mxu0 0.0
    %1480 = vmatprep.subr.mxu0 0.0
    %1481 = vmatpush2.xpose.msra.mxu0 0.0
    %1482 = vmatprep.subr.mxu0 0.0
    %1483 = vmatpush2.xpose.msra.mxu0 0.0
    %1484 = vmatprep.subr.mxu0 0.0
    %1485 = vmatpush2.xpose.msra.mxu0 0.0
    %1486 = vmatprep.subr.mxu0 0.0
    %1487 = vmatpush2.xpose.msra.mxu0 0.0
    %1488 = vmatprep.subr.mxu0 0.0
    %1489 = vmatpush2.xpose.msra.mxu0 0.0
    %1490 = vmatprep.subr.mxu0 0.0
    %1491 = vmatpush2.xpose.msra.mxu0 0.0
    %1492 = vmatprep.subr.mxu0 0.0
    %1493 = vmatpush2.xpose.msra.mxu0 0.0
    %1494 = vmatprep.subr.mxu0 0.0
    %1495 = vmatpush2.xpose.msra.mxu0 0.0
    %1496 = vmatprep.subr.mxu0 0.0
    %1497 = vmatpush2.xpose.msra.mxu0 0.0
    %1498 = vmatprep.subr.mxu0 0.0
    %1499 = vmatpush2.xpose.msra.mxu0 0.0
    %1500 = vmatprep.subr.mxu0 0.0
    %1501 = vmatpush2.xpose.msra.mxu0 0.0
    %1502 = vmatprep.subr.mxu0 0.0
    %1503 = vmatpush2.xpose.msra.mxu0 0.0
    %1504 = vmatprep.subr.mxu0 0.0
    %1505 = vmatpush2.xpose.msra.mxu0 0.0
    %1506 = vmatprep.subr.mxu0 0.0
    %1507 = vmatpush2.xpose.msra.mxu0 0.0
    %1508 = vmatprep.mubr.f32.mxu0 0.0
    %1509 = vmatmul.mubr.f32.gmra.mxu0 %v1442
    %v1510 = vpop.f32.mrf.mxu0
    %v1511 = vadd.f32 0.0, %v1510
    %v1512 = vpop.f32.mrf.mxu0
    %1513 = vdwg.mxu0
    %v1514 = vmul.f32 %v1437, 0.35355338
    %v1515 = vmul.f32 %v1511, 0.35355338
    %v1516 = vsel %vm52, %v1514, -inf
    %1517 = vmax.xlane.f32.xlu0 %v1516
    %v1518 = vpop.xlane.xlu0 %1517
    %v1519 = vsel %vm52, %v1515, -inf
    %1520 = vmax.xlane.f32.xlu0 %v1519
    %v1521 = vpop.xlane.xlu0 %1520
    %v1522 = vsub.f32 %v1514, %v1518
    %v1523 = vsub.f32 %v1515, %v1521
    %v1524 = vmul.f32 %v1522, 1.442695
    %v1525 = vpow.pop %v1524
    %v1526 = vmul.f32 %v1523, 1.442695
    %v1527 = vpow.pop %v1526
    %v1528 = vsel %vm52, %v1525, 0.0
    %1529 = vadd.xlane.f32.xlu0 %v1528
    %v1530 = vpop.xlane.xlu0 %1529
    %v1531 = vsel %vm52, %v1527, 0.0
    %1532 = vadd.xlane.f32.xlu0 %v1531
    %v1533 = vpop.xlane.xlu0 %1532
    %v1534 = vrcp.pop %v1530
    %v1535 = vrcp.pop %v1533
    %v1536 = vmul.f32 %v1525, %v1534
    %v1537 = vmul.f32 %v1527, %v1535
    %v1538 = vmul.f32 %v1536, %v262
    %v1539 = vmul.f32 %v1537, %v263
    %v1542 = vsel %vm52, %v1538, 0
    %1544 = vmatprep.subr.mxu0 0.0
    %1545 = vmatpush1.msra.mxu0 0.0
    %1546 = vmatprep.subr.mxu0 0.0
    %1547 = vmatpush1.msra.mxu0 0.0
    %1548 = vmatprep.subr.mxu0 0.0
    %1549 = vmatpush1.msra.mxu0 0.0
    %1550 = vmatprep.subr.mxu0 0.0
    %1551 = vmatpush1.msra.mxu0 0.0
    %1552 = vmatprep.subr.mxu0 0.0
    %1553 = vmatpush1.msra.mxu0 0.0
    %1554 = vmatprep.subr.mxu0 0.0
    %1555 = vmatpush1.msra.mxu0 0.0
    %1556 = vmatprep.subr.mxu0 0.0
    %1557 = vmatpush1.msra.mxu0 0.0
    %1558 = vmatprep.subr.mxu0 0.0
    %1559 = vmatpush1.msra.mxu0 0.0
    %1560 = vmatprep.subr.mxu0 0.0
    %1561 = vmatpush1.msra.mxu0 0.0
    %1562 = vmatprep.subr.mxu0 0.0
    %1563 = vmatpush1.msra.mxu0 0.0
    %1564 = vmatprep.subr.mxu0 0.0
    %1565 = vmatpush1.msra.mxu0 0.0
    %1566 = vmatprep.subr.mxu0 0.0
    %1567 = vmatpush1.msra.mxu0 0.0
    %1568 = vmatprep.subr.mxu0 0.0
    %1569 = vmatpush1.msra.mxu0 0.0
    %1570 = vmatprep.subr.mxu0 0.0
    %1571 = vmatpush1.msra.mxu0 0.0
    %1572 = vmatprep.subr.mxu0 0.0
    %1573 = vmatpush1.msra.mxu0 0.0
    %1574 = vmatprep.subr.mxu0 0.0
    %1575 = vmatpush1.msra.mxu0 %v1367
    %1576 = vmatprep.subr.mxu0 0.0
    %1577 = vmatpush2.msra.mxu0 0.0
    %1578 = vmatprep.subr.mxu0 0.0
    %1579 = vmatpush2.msra.mxu0 0.0
    %1580 = vmatprep.subr.mxu0 0.0
    %1581 = vmatpush2.msra.mxu0 0.0
    %1582 = vmatprep.subr.mxu0 0.0
    %1583 = vmatpush2.msra.mxu0 0.0
    %1584 = vmatprep.subr.mxu0 0.0
    %1585 = vmatpush2.msra.mxu0 0.0
    %1586 = vmatprep.subr.mxu0 0.0
    %1587 = vmatpush2.msra.mxu0 0.0
    %1588 = vmatprep.subr.mxu0 0.0
    %1589 = vmatpush2.msra.mxu0 0.0
    %1590 = vmatprep.subr.mxu0 0.0
    %1591 = vmatpush2.msra.mxu0 0.0
    %1592 = vmatprep.subr.mxu0 0.0
    %1593 = vmatpush2.msra.mxu0 0.0
    %1594 = vmatprep.subr.mxu0 0.0
    %1595 = vmatpush2.msra.mxu0 0.0
    %1596 = vmatprep.subr.mxu0 0.0
    %1597 = vmatpush2.msra.mxu0 0.0
    %1598 = vmatprep.subr.mxu0 0.0
    %1599 = vmatpush2.msra.mxu0 0.0
    %1600 = vmatprep.subr.mxu0 0.0
    %1601 = vmatpush2.msra.mxu0 0.0
    %1602 = vmatprep.subr.mxu0 0.0
    %1603 = vmatpush2.msra.mxu0 0.0
    %1604 = vmatprep.subr.mxu0 0.0
    %1605 = vmatpush2.msra.mxu0 0.0
    %1606 = vmatprep.subr.mxu0 0.0
    %1607 = vmatpush2.msra.mxu0 0.0
    %1608 = vmatprep.mubr.f32.mxu0 0.0
    %1609 = vmatmul.mubr.f32.gmra.mxu0 %v1542
    %v1610 = vpop.f32.mrf.mxu0
    %v1611 = vadd.f32 0.0, %v1610
    %v1612 = vpop.f32.mrf.mxu0
    %1613 = vdwg.mxu0
    %v1616 = vsel %vm52, %v1539, 0
    %1618 = vmatprep.subr.mxu0 0.0
    %1619 = vmatpush1.msra.mxu0 0.0
    %1620 = vmatprep.subr.mxu0 0.0
    %1621 = vmatpush1.msra.mxu0 0.0
    %1622 = vmatprep.subr.mxu0 0.0
    %1623 = vmatpush1.msra.mxu0 0.0
    %1624 = vmatprep.subr.mxu0 0.0
    %1625 = vmatpush1.msra.mxu0 0.0
    %1626 = vmatprep.subr.mxu0 0.0
    %1627 = vmatpush1.msra.mxu0 0.0
    %1628 = vmatprep.subr.mxu0 0.0
    %1629 = vmatpush1.msra.mxu0 0.0
    %1630 = vmatprep.subr.mxu0 0.0
    %1631 = vmatpush1.msra.mxu0 0.0
    %1632 = vmatprep.subr.mxu0 0.0
    %1633 = vmatpush1.msra.mxu0 0.0
    %1634 = vmatprep.subr.mxu0 0.0
    %1635 = vmatpush1.msra.mxu0 0.0
    %1636 = vmatprep.subr.mxu0 0.0
    %1637 = vmatpush1.msra.mxu0 0.0
    %1638 = vmatprep.subr.mxu0 0.0
    %1639 = vmatpush1.msra.mxu0 0.0
    %1640 = vmatprep.subr.mxu0 0.0
    %1641 = vmatpush1.msra.mxu0 0.0
    %1642 = vmatprep.subr.mxu0 0.0
    %1643 = vmatpush1.msra.mxu0 0.0
    %1644 = vmatprep.subr.mxu0 0.0
    %1645 = vmatpush1.msra.mxu0 0.0
    %1646 = vmatprep.subr.mxu0 0.0
    %1647 = vmatpush1.msra.mxu0 0.0
    %1648 = vmatprep.subr.mxu0 0.0
    %1649 = vmatpush1.msra.mxu0 %v1441
    %1650 = vmatprep.subr.mxu0 0.0
    %1651 = vmatpush2.msra.mxu0 0.0
    %1652 = vmatprep.subr.mxu0 0.0
    %1653 = vmatpush2.msra.mxu0 0.0
    %1654 = vmatprep.subr.mxu0 0.0
    %1655 = vmatpush2.msra.mxu0 0.0
    %1656 = vmatprep.subr.mxu0 0.0
    %1657 = vmatpush2.msra.mxu0 0.0
    %1658 = vmatprep.subr.mxu0 0.0
    %1659 = vmatpush2.msra.mxu0 0.0
    %1660 = vmatprep.subr.mxu0 0.0
    %1661 = vmatpush2.msra.mxu0 0.0
    %1662 = vmatprep.subr.mxu0 0.0
    %1663 = vmatpush2.msra.mxu0 0.0
    %1664 = vmatprep.subr.mxu0 0.0
    %1665 = vmatpush2.msra.mxu0 0.0
    %1666 = vmatprep.subr.mxu0 0.0
    %1667 = vmatpush2.msra.mxu0 0.0
    %1668 = vmatprep.subr.mxu0 0.0
    %1669 = vmatpush2.msra.mxu0 0.0
    %1670 = vmatprep.subr.mxu0 0.0
    %1671 = vmatpush2.msra.mxu0 0.0
    %1672 = vmatprep.subr.mxu0 0.0
    %1673 = vmatpush2.msra.mxu0 0.0
    %1674 = vmatprep.subr.mxu0 0.0
    %1675 = vmatpush2.msra.mxu0 0.0
    %1676 = vmatprep.subr.mxu0 0.0
    %1677 = vmatpush2.msra.mxu0 0.0
    %1678 = vmatprep.subr.mxu0 0.0
    %1679 = vmatpush2.msra.mxu0 0.0
    %1680 = vmatprep.subr.mxu0 0.0
    %1681 = vmatpush2.msra.mxu0 0.0
    %1682 = vmatprep.mubr.f32.mxu0 0.0
    %1683 = vmatmul.mubr.f32.gmra.mxu0 %v1616
    %v1684 = vpop.f32.mrf.mxu0
    %v1685 = vadd.f32 0.0, %v1684
    %v1686 = vpop.f32.mrf.mxu0
    %1687 = vdwg.mxu0
    %1690 = vrot.lane.b32.xlu0 %v967, 8
    %v1691 = vpop.permute.xlu0 %1690
    %1692 = vrot.lane.b32.xlu0 %v1041, 8
    %v1693 = vpop.permute.xlu0 %1692
    %1698 = vrot.lane.b32.xlu0 %v1289, 16
    %v1699 = vpop.permute.xlu0 %1698
    %1700 = vrot.lane.b32.xlu0 %v1363, 16
    %v1701 = vpop.permute.xlu0 %1700
    %1706 = vrot.lane.b32.xlu0 %v1611, 24
    %v1707 = vpop.permute.xlu0 %1706
    %1708 = vrot.lane.b32.xlu0 %v1685, 24
    %v1709 = vpop.permute.xlu0 %1708
    %v1712 = vsel %vm52, %v646, %v1691
    %v1713 = vsel %vm52, %v719, %v1693
    %vm1714 = vcmask 130048
    %v1715 = vsel %vm1714, %v1712, %v1699
    %v1716 = vsel %vm1714, %v1713, %v1701
    %vm1717 = vcmask 195584
    %v1718 = vsel %vm1717, %v1715, %v1707
    %v1719 = vsel %vm1717, %v1716, %v1709
    %v1720 = vlaneseq
    %v1721 = vshrl.u32 %v1720, 7
    %v1722 = vsub.s32 0, %v1721
    %v1723 = vrot.slane %v266, %v1722
    %v1725 = vsel %vm222, %v1718, 0
    %v1728 = vsel %vm222, %v1719, 0
    %1730 = vmatprep.subr.mxu0 0.0
    %1731 = vmatpush1.msra.mxu0 0.0
    %1732 = vmatprep.subr.mxu0 0.0
    %1733 = vmatpush1.msra.mxu0 0.0
    %1734 = vmatprep.subr.mxu0 0.0
    %1735 = vmatpush1.msra.mxu0 0.0
    %1736 = vmatprep.subr.mxu0 0.0
    %1737 = vmatpush1.msra.mxu0 0.0
    %1738 = vmatprep.subr.mxu0 0.0
    %1739 = vmatpush1.msra.mxu0 0.0
    %1740 = vmatprep.subr.mxu0 0.0
    %1741 = vmatpush1.msra.mxu0 0.0
    %1742 = vmatprep.subr.mxu0 0.0
    %1743 = vmatpush1.msra.mxu0 0.0
    %1744 = vmatprep.subr.mxu0 0.0
    %1745 = vmatpush1.msra.mxu0 0.0
    %1746 = vmatprep.subr.mxu0 0.0
    %1747 = vmatpush1.msra.mxu0 0.0
    %1748 = vmatprep.subr.mxu0 0.0
    %1749 = vmatpush1.msra.mxu0 0.0
    %1750 = vmatprep.subr.mxu0 0.0
    %1751 = vmatpush1.msra.mxu0 0.0
    %1752 = vmatprep.subr.mxu0 0.0
    %1753 = vmatpush1.msra.mxu0 0.0
    %1754 = vmatprep.subr.mxu0 0.0
    %1755 = vmatpush1.msra.mxu0 %v276
    %1756 = vmatprep.subr.mxu0 0.0
    %1757 = vmatpush1.msra.mxu0 %v275
    %1758 = vmatprep.subr.mxu0 0.0
    %1759 = vmatpush1.msra.mxu0 %v274
    %1760 = vmatprep.subr.mxu0 0.0
    %1761 = vmatpush1.msra.mxu0 %v273
    %1762 = vmatprep.subr.mxu0 0.0
    %1763 = vmatpush2.msra.mxu0 0.0
    %1764 = vmatprep.subr.mxu0 0.0
    %1765 = vmatpush2.msra.mxu0 0.0
    %1766 = vmatprep.subr.mxu0 0.0
    %1767 = vmatpush2.msra.mxu0 0.0
    %1768 = vmatprep.subr.mxu0 0.0
    %1769 = vmatpush2.msra.mxu0 0.0
    %1770 = vmatprep.subr.mxu0 0.0
    %1771 = vmatpush2.msra.mxu0 0.0
    %1772 = vmatprep.subr.mxu0 0.0
    %1773 = vmatpush2.msra.mxu0 0.0
    %1774 = vmatprep.subr.mxu0 0.0
    %1775 = vmatpush2.msra.mxu0 0.0
    %1776 = vmatprep.subr.mxu0 0.0
    %1777 = vmatpush2.msra.mxu0 0.0
    %1778 = vmatprep.subr.mxu0 0.0
    %1779 = vmatpush2.msra.mxu0 0.0
    %1780 = vmatprep.subr.mxu0 0.0
    %1781 = vmatpush2.msra.mxu0 0.0
    %1782 = vmatprep.subr.mxu0 0.0
    %1783 = vmatpush2.msra.mxu0 0.0
    %1784 = vmatprep.subr.mxu0 0.0
    %1785 = vmatpush2.msra.mxu0 0.0
    %1786 = vmatprep.subr.mxu0 0.0
    %1787 = vmatpush2.msra.mxu0 0.0
    %1788 = vmatprep.subr.mxu0 0.0
    %1789 = vmatpush2.msra.mxu0 0.0
    %1790 = vmatprep.subr.mxu0 0.0
    %1791 = vmatpush2.msra.mxu0 0.0
    %1792 = vmatprep.subr.mxu0 0.0
    %1793 = vmatpush2.msra.mxu0 0.0
    %1794 = vmatprep.mubr.f32.mxu0 0.0
    %1795 = vmatmul.mubr.f32.gmra.mxu0 %v1725
    %v1796 = vpop.f32.mrf.mxu0
    %v1797 = vadd.f32 %v1723, %v1796
    %v1798 = vpop.f32.mrf.mxu0
    %1799 = vmatprep.mubr.f32.mxu0 0.0
    %1800 = vmatmul.mubr.f32.gmra.mxu0 %v1728
    %v1801 = vpop.f32.mrf.mxu0
    %v1802 = vadd.f32 %v1723, %v1801
    %v1803 = vpop.f32.mrf.mxu0
    %1804 = vdwg.mxu0
    %v1805 = vadd.f32 %v1797, %v260
    %v1806 = vadd.f32 %v1802, %v261
    %v1807 = vsel %vm222, %v1805, 0.0
    %1808 = vadd.xlane.f32.xlu0 %v1807
    %v1809 = vpop.xlane.xlu0 %1808
    %v1810 = vsel %vm222, %v1806, 0.0
    %1811 = vadd.xlane.f32.xlu0 %v1810
    %v1812 = vpop.xlane.xlu0 %1811
    %v1813 = vmul.f32 %v1809, %v229
    %v1814 = vmul.f32 %v1812, %v229
    %v1815 = vsub.f32 %v1805, %v1813
    %v1816 = vsub.f32 %v1806, %v1814
    %v1817 = vmul.f32 %v1815, %v1815
    %v1818 = vmul.f32 %v1816, %v1816
    %v1819 = vsel %vm222, %v1817, 0.0
    %1820 = vadd.xlane.f32.xlu0 %v1819
    %v1821 = vpop.xlane.xlu0 %1820
    %v1822 = vsel %vm222, %v1818, 0.0
    %1823 = vadd.xlane.f32.xlu0 %v1822
    %v1824 = vpop.xlane.xlu0 %1823
    %v1825 = vmul.f32 %v1821, %v229
    %v1826 = vmul.f32 %v1824, %v229
    %v1827 = vadd.f32 %v1825, 1e-05
    %v1828 = vadd.f32 %v1826, 1e-05
    %v1829 = vrsqrt.pop %v1827
    %v1830 = vrsqrt.pop %v1828
    %v1831 = vmul.f32 %v1815, %v1829
    %v1832 = vmul.f32 %v1816, %v1830
    %v1833 = vlaneseq
    %v1834 = vshrl.u32 %v1833, 7
    %v1835 = vsub.s32 0, %v1834
    %v1836 = vrot.slane %v267, %v1835
    %v1837 = vmul.f32 %v1831, %v1836
    %v1838 = vmul.f32 %v1832, %v1836
    %v1839 = vlaneseq
    %v1840 = vshrl.u32 %v1839, 7
    %v1841 = vsub.s32 0, %v1840
    %v1842 = vrot.slane %v268, %v1841
    %v1843 = vadd.f32 %v1837, %v1842
    %v1844 = vadd.f32 %v1838, %v1842
    %v1846 = vsel %vm222, %v1843, 0
    %v1849 = vsel %vm222, %v1844, 0
    %1851 = vmatprep.subr.mxu0 0.0
    %1852 = vmatpush1.msra.mxu0 0.0
    %1853 = vmatprep.subr.mxu0 0.0
    %1854 = vmatpush1.msra.mxu0 0.0
    %1855 = vmatprep.subr.mxu0 0.0
    %1856 = vmatpush1.msra.mxu0 0.0
    %1857 = vmatprep.subr.mxu0 0.0
    %1858 = vmatpush1.msra.mxu0 0.0
    %1859 = vmatprep.subr.mxu0 0.0
    %1860 = vmatpush1.msra.mxu0 0.0
    %1861 = vmatprep.subr.mxu0 0.0
    %1862 = vmatpush1.msra.mxu0 0.0
    %1863 = vmatprep.subr.mxu0 0.0
    %1864 = vmatpush1.msra.mxu0 0.0
    %1865 = vmatprep.subr.mxu0 0.0
    %1866 = vmatpush1.msra.mxu0 0.0
    %1867 = vmatprep.subr.mxu0 0.0
    %1868 = vmatpush1.msra.mxu0 0.0
    %1869 = vmatprep.subr.mxu0 0.0
    %1870 = vmatpush1.msra.mxu0 0.0
    %1871 = vmatprep.subr.mxu0 0.0
    %1872 = vmatpush1.msra.mxu0 0.0
    %1873 = vmatprep.subr.mxu0 0.0
    %1874 = vmatpush1.msra.mxu0 0.0
    %1875 = vmatprep.subr.mxu0 0.0
    %1876 = vmatpush1.msra.mxu0 %v280
    %1877 = vmatprep.subr.mxu0 0.0
    %1878 = vmatpush1.msra.mxu0 %v279
    %1879 = vmatprep.subr.mxu0 0.0
    %1880 = vmatpush1.msra.mxu0 %v278
    %1881 = vmatprep.subr.mxu0 0.0
    %1882 = vmatpush1.msra.mxu0 %v277
    %1883 = vmatprep.subr.mxu0 0.0
    %1884 = vmatpush2.msra.mxu0 0.0
    %1885 = vmatprep.subr.mxu0 0.0
    %1886 = vmatpush2.msra.mxu0 0.0
    %1887 = vmatprep.subr.mxu0 0.0
    %1888 = vmatpush2.msra.mxu0 0.0
    %1889 = vmatprep.subr.mxu0 0.0
    %1890 = vmatpush2.msra.mxu0 0.0
    %1891 = vmatprep.subr.mxu0 0.0
    %1892 = vmatpush2.msra.mxu0 0.0
    %1893 = vmatprep.subr.mxu0 0.0
    %1894 = vmatpush2.msra.mxu0 0.0
    %1895 = vmatprep.subr.mxu0 0.0
    %1896 = vmatpush2.msra.mxu0 0.0
    %1897 = vmatprep.subr.mxu0 0.0
    %1898 = vmatpush2.msra.mxu0 0.0
    %1899 = vmatprep.subr.mxu0 0.0
    %1900 = vmatpush2.msra.mxu0 0.0
    %1901 = vmatprep.subr.mxu0 0.0
    %1902 = vmatpush2.msra.mxu0 0.0
    %1903 = vmatprep.subr.mxu0 0.0
    %1904 = vmatpush2.msra.mxu0 0.0
    %1905 = vmatprep.subr.mxu0 0.0
    %1906 = vmatpush2.msra.mxu0 0.0
    %1907 = vmatprep.subr.mxu0 0.0
    %1908 = vmatpush2.msra.mxu0 0.0
    %1909 = vmatprep.subr.mxu0 0.0
    %1910 = vmatpush2.msra.mxu0 0.0
    %1911 = vmatprep.subr.mxu0 0.0
    %1912 = vmatpush2.msra.mxu0 0.0
    %1913 = vmatprep.subr.mxu0 0.0
    %1914 = vmatpush2.msra.mxu0 0.0
    %1915 = vmatprep.mubr.f32.mxu0 0.0
    %1916 = vmatmul.mubr.f32.gmra.mxu0 %v1846
    %v1917 = vpop.f32.mrf.mxu0
    %v1918 = vadd.f32 0.0, %v1917
    %v1919 = vpop.f32.mrf.mxu0
    %1920 = vmatprep.mubr.f32.mxu0 0.0
    %1921 = vmatmul.mubr.f32.gmra.mxu0 %v1849
    %v1922 = vpop.f32.mrf.mxu0
    %v1923 = vadd.f32 0.0, %v1922
    %v1924 = vpop.f32.mrf.mxu0
    %1925 = vdwg.mxu0
    %v1926 = vsub.f32 %v1843, %v1918
    %v1927 = vsub.f32 %v1844, %v1923
    %v1929 = vsel %vm222, %v1926, 0
    %v1932 = vsel %vm222, %v1927, 0
    %1934 = vmatprep.subr.mxu0 0.0
    %1935 = vmatpush1.msra.mxu0 0.0
    %1936 = vmatprep.subr.mxu0 0.0
    %1937 = vmatpush1.msra.mxu0 0.0
    %1938 = vmatprep.subr.mxu0 0.0
    %1939 = vmatpush1.msra.mxu0 0.0
    %1940 = vmatprep.subr.mxu0 0.0
    %1941 = vmatpush1.msra.mxu0 0.0
    %1942 = vmatprep.subr.mxu0 0.0
    %1943 = vmatpush1.msra.mxu0 0.0
    %1944 = vmatprep.subr.mxu0 0.0
    %1945 = vmatpush1.msra.mxu0 0.0
    %1946 = vmatprep.subr.mxu0 0.0
    %1947 = vmatpush1.msra.mxu0 0.0
    %1948 = vmatprep.subr.mxu0 0.0
    %1949 = vmatpush1.msra.mxu0 0.0
    %1950 = vmatprep.subr.mxu0 0.0
    %1951 = vmatpush1.msra.mxu0 0.0
    %1952 = vmatprep.subr.mxu0 0.0
    %1953 = vmatpush1.msra.mxu0 0.0
    %1954 = vmatprep.subr.mxu0 0.0
    %1955 = vmatpush1.msra.mxu0 0.0
    %1956 = vmatprep.subr.mxu0 0.0
    %1957 = vmatpush1.msra.mxu0 0.0
    %1958 = vmatprep.subr.mxu0 0.0
    %1959 = vmatpush1.msra.mxu0 %v284
    %1960 = vmatprep.subr.mxu0 0.0
    %1961 = vmatpush1.msra.mxu0 %v283
    %1962 = vmatprep.subr.mxu0 0.0
    %1963 = vmatpush1.msra.mxu0 %v282
    %1964 = vmatprep.subr.mxu0 0.0
    %1965 = vmatpush1.msra.mxu0 %v281
    %1966 = vmatprep.subr.mxu0 0.0
    %1967 = vmatpush2.msra.mxu0 0.0
    %1968 = vmatprep.subr.mxu0 0.0
    %1969 = vmatpush2.msra.mxu0 0.0
    %1970 = vmatprep.subr.mxu0 0.0
    %1971 = vmatpush2.msra.mxu0 0.0
    %1972 = vmatprep.subr.mxu0 0.0
    %1973 = vmatpush2.msra.mxu0 0.0
    %1974 = vmatprep.subr.mxu0 0.0
    %1975 = vmatpush2.msra.mxu0 0.0
    %1976 = vmatprep.subr.mxu0 0.0
    %1977 = vmatpush2.msra.mxu0 0.0
    %1978 = vmatprep.subr.mxu0 0.0
    %1979 = vmatpush2.msra.mxu0 0.0
    %1980 = vmatprep.subr.mxu0 0.0
    %1981 = vmatpush2.msra.mxu0 0.0
    %1982 = vmatprep.subr.mxu0 0.0
    %1983 = vmatpush2.msra.mxu0 0.0
    %1984 = vmatprep.subr.mxu0 0.0
    %1985 = vmatpush2.msra.mxu0 0.0
    %1986 = vmatprep.subr.mxu0 0.0
    %1987 = vmatpush2.msra.mxu0 0.0
    %1988 = vmatprep.subr.mxu0 0.0
    %1989 = vmatpush2.msra.mxu0 0.0
    %1990 = vmatprep.subr.mxu0 0.0
    %1991 = vmatpush2.msra.mxu0 0.0
    %1992 = vmatprep.subr.mxu0 0.0
    %1993 = vmatpush2.msra.mxu0 0.0
    %1994 = vmatprep.subr.mxu0 0.0
    %1995 = vmatpush2.msra.mxu0 0.0
    %1996 = vmatprep.subr.mxu0 0.0
    %1997 = vmatpush2.msra.mxu0 0.0
    %1998 = vmatprep.mubr.f32.mxu0 0.0
    %1999 = vmatmul.mubr.f32.gmra.mxu0 %v1929
    %v2000 = vpop.f32.mrf.mxu0
    %v2001 = vadd.f32 0.0, %v2000
    %v2002 = vpop.f32.mrf.mxu0
    %2003 = vmatprep.mubr.f32.mxu0 0.0
    %2004 = vmatmul.mubr.f32.gmra.mxu0 %v1932
    %v2005 = vpop.f32.mrf.mxu0
    %v2006 = vadd.f32 0.0, %v2005
    %v2007 = vpop.f32.mrf.mxu0
    %2008 = vdwg.mxu0
    %v2009 = vmul.f32 %v2001, 0.1
    %v2010 = vmul.f32 %v2006, 0.1
    %v2011 = vsub.f32 %v2009, 0.01
    %v2012 = vsub.f32 %v2010, 0.01
    %v2013 = vadd.f32 %v1843, %v2011
    %v2014 = vadd.f32 %v1844, %v2012
    %v2015 = vmax.f32 %v2013, 0.0
    %v2016 = vmax.f32 %v2014, 0.0
    %v2017 = vld [vmem:[%s1 + $0xf8] sm:$0x1]
    %v2018 = vld [vmem:[%s1 + $0xf9] sm:$0x1]
    %v2019 = vld [vmem:[%s1 + $0xfa] sm:$0x1]
    %v2020 = vld [vmem:[%s1 + $0xfb] sm:$0x1]
    %v2021 = vld [vmem:[%s1 + $0xfc] sm:$0x1]
    %v2022 = vld [vmem:[%s1 + $0x100] sm:$0xff]
    %v2023 = vld [vmem:[%s1 + $0x108] sm:$0xff]
    %v2024 = vld [vmem:[%s1 + $0x110] sm:$0xff]
    %v2025 = vld [vmem:[%s1 + $0x118] sm:$0xff]
    %v2026 = vld [vmem:[%s1 + $0x120] sm:$0xff]
    %v2027 = vld [vmem:[%s1 + $0x128] sm:$0xff]
    %v2028 = vld [vmem:[%s1 + $0x130] sm:$0xff]
    %v2029 = vld [vmem:[%s1 + $0x138] sm:$0xff]
    %v2030 = vld [vmem:[%s1 + $0x140] sm:$0xff]
    %v2031 = vld [vmem:[%s1 + $0x148] sm:$0xff]
    %v2032 = vld [vmem:[%s1 + $0x150] sm:$0xff]
    %v2033 = vld [vmem:[%s1 + $0x158] sm:$0xff]
    %v2034 = vld [vmem:[%s1 + $0x160] sm:$0xff]
    %v2035 = vld [vmem:[%s1 + $0x168] sm:$0xff]
    %v2036 = vld [vmem:[%s1 + $0x170] sm:$0xff]
    %v2037 = vld [vmem:[%s1 + $0x178] sm:$0xff]
    %v2038 = vsel %vm222, %v2015, 0.0
    %2039 = vadd.xlane.f32.xlu0 %v2038
    %v2040 = vpop.xlane.xlu0 %2039
    %v2041 = vsel %vm222, %v2016, 0.0
    %2042 = vadd.xlane.f32.xlu0 %v2041
    %v2043 = vpop.xlane.xlu0 %2042
    %v2044 = vmul.f32 %v2040, %v229
    %v2045 = vmul.f32 %v2043, %v229
    %v2046 = vsub.f32 %v2015, %v2044
    %v2047 = vsub.f32 %v2016, %v2045
    %v2048 = vmul.f32 %v2046, %v2046
    %v2049 = vmul.f32 %v2047, %v2047
    %v2050 = vsel %vm222, %v2048, 0.0
    %2051 = vadd.xlane.f32.xlu0 %v2050
    %v2052 = vpop.xlane.xlu0 %2051
    %v2053 = vsel %vm222, %v2049, 0.0
    %2054 = vadd.xlane.f32.xlu0 %v2053
    %v2055 = vpop.xlane.xlu0 %2054
    %v2056 = vmul.f32 %v2052, %v229
    %v2057 = vmul.f32 %v2055, %v229
    %v2058 = vadd.f32 %v2056, 1e-05
    %v2059 = vadd.f32 %v2057, 1e-05
    %v2060 = vrsqrt.pop %v2058
    %v2061 = vrsqrt.pop %v2059
    %v2062 = vmul.f32 %v2046, %v2060
    %v2063 = vmul.f32 %v2047, %v2061
    %v2064 = vlaneseq
    %v2065 = vshrl.u32 %v2064, 7
    %v2066 = vsub.s32 0, %v2065
    %v2067 = vrot.slane %v2017, %v2066
    %v2068 = vmul.f32 %v2062, %v2067
    %v2069 = vmul.f32 %v2063, %v2067
    %v2070 = vlaneseq
    %v2071 = vshrl.u32 %v2070, 7
    %v2072 = vsub.s32 0, %v2071
    %v2073 = vrot.slane %v2018, %v2072
    %v2074 = vadd.f32 %v2068, %v2073
    %v2075 = vadd.f32 %v2069, %v2073
    %v2077 = vsel %vm222, %v2074, 0
    %v2080 = vsel %vm222, %v2075, 0
    %2082 = vmatprep.subr.mxu0 0.0
    %2083 = vmatpush1.msra.mxu0 0.0
    %2084 = vmatprep.subr.mxu0 0.0
    %2085 = vmatpush1.msra.mxu0 0.0
    %2086 = vmatprep.subr.mxu0 0.0
    %2087 = vmatpush1.msra.mxu0 0.0
    %2088 = vmatprep.subr.mxu0 0.0
    %2089 = vmatpush1.msra.mxu0 0.0
    %2090 = vmatprep.subr.mxu0 0.0
    %2091 = vmatpush1.msra.mxu0 0.0
    %2092 = vmatprep.subr.mxu0 0.0
    %2093 = vmatpush1.msra.mxu0 0.0
    %2094 = vmatprep.subr.mxu0 0.0
    %2095 = vmatpush1.msra.mxu0 0.0
    %2096 = vmatprep.subr.mxu0 0.0
    %2097 = vmatpush1.msra.mxu0 0.0
    %2098 = vmatprep.subr.mxu0 0.0
    %2099 = vmatpush1.msra.mxu0 0.0
    %2100 = vmatprep.subr.mxu0 0.0
    %2101 = vmatpush1.msra.mxu0 0.0
    %2102 = vmatprep.subr.mxu0 0.0
    %2103 = vmatpush1.msra.mxu0 0.0
    %2104 = vmatprep.subr.mxu0 0.0
    %2105 = vmatpush1.msra.mxu0 0.0
    %2106 = vmatprep.subr.mxu0 0.0
    %2107 = vmatpush1.msra.mxu0 %v2025
    %2108 = vmatprep.subr.mxu0 0.0
    %2109 = vmatpush1.msra.mxu0 %v2024
    %2110 = vmatprep.subr.mxu0 0.0
    %2111 = vmatpush1.msra.mxu0 %v2023
    %2112 = vmatprep.subr.mxu0 0.0
    %2113 = vmatpush1.msra.mxu0 %v2022
    %2114 = vmatprep.subr.mxu0 0.0
    %2115 = vmatpush2.msra.mxu0 0.0
    %2116 = vmatprep.subr.mxu0 0.0
    %2117 = vmatpush2.msra.mxu0 0.0
    %2118 = vmatprep.subr.mxu0 0.0
    %2119 = vmatpush2.msra.mxu0 0.0
    %2120 = vmatprep.subr.mxu0 0.0
    %2121 = vmatpush2.msra.mxu0 0.0
    %2122 = vmatprep.subr.mxu0 0.0
    %2123 = vmatpush2.msra.mxu0 0.0
    %2124 = vmatprep.subr.mxu0 0.0
    %2125 = vmatpush2.msra.mxu0 0.0
    %2126 = vmatprep.subr.mxu0 0.0
    %2127 = vmatpush2.msra.mxu0 0.0
    %2128 = vmatprep.subr.mxu0 0.0
    %2129 = vmatpush2.msra.mxu0 0.0
    %2130 = vmatprep.subr.mxu0 0.0
    %2131 = vmatpush2.msra.mxu0 0.0
    %2132 = vmatprep.subr.mxu0 0.0
    %2133 = vmatpush2.msra.mxu0 0.0
    %2134 = vmatprep.subr.mxu0 0.0
    %2135 = vmatpush2.msra.mxu0 0.0
    %2136 = vmatprep.subr.mxu0 0.0
    %2137 = vmatpush2.msra.mxu0 0.0
    %2138 = vmatprep.subr.mxu0 0.0
    %2139 = vmatpush2.msra.mxu0 0.0
    %2140 = vmatprep.subr.mxu0 0.0
    %2141 = vmatpush2.msra.mxu0 0.0
    %2142 = vmatprep.subr.mxu0 0.0
    %2143 = vmatpush2.msra.mxu0 0.0
    %2144 = vmatprep.subr.mxu0 0.0
    %2145 = vmatpush2.msra.mxu0 0.0
    %2146 = vmatprep.mubr.f32.mxu0 0.0
    %2147 = vmatmul.mubr.f32.gmra.mxu0 %v2077
    %v2148 = vpop.f32.mrf.mxu0
    %v2149 = vadd.f32 0.0, %v2148
    %v2150 = vpop.f32.mrf.mxu0
    %2151 = vmatprep.mubr.f32.mxu0 0.0
    %2152 = vmatmul.mubr.f32.gmra.mxu0 %v2080
    %v2153 = vpop.f32.mrf.mxu0
    %v2154 = vadd.f32 0.0, %v2153
    %v2155 = vpop.f32.mrf.mxu0
    %2156 = vdwg.mxu0
    %v2158 = vsel %vm52, %v2149, 0
    %2160 = vmatprep.subr.mxu0 0.0
    %2161 = vmatpush1.xpose.msra.mxu0 0.0
    %2162 = vmatprep.subr.mxu0 0.0
    %2163 = vmatpush1.xpose.msra.mxu0 0.0
    %2164 = vmatprep.subr.mxu0 0.0
    %2165 = vmatpush1.xpose.msra.mxu0 0.0
    %2166 = vmatprep.subr.mxu0 0.0
    %2167 = vmatpush1.xpose.msra.mxu0 0.0
    %2168 = vmatprep.subr.mxu0 0.0
    %2169 = vmatpush1.xpose.msra.mxu0 0.0
    %2170 = vmatprep.subr.mxu0 0.0
    %2171 = vmatpush1.xpose.msra.mxu0 0.0
    %2172 = vmatprep.subr.mxu0 0.0
    %2173 = vmatpush1.xpose.msra.mxu0 0.0
    %2174 = vmatprep.subr.mxu0 0.0
    %2175 = vmatpush1.xpose.msra.mxu0 0.0
    %2176 = vmatprep.subr.mxu0 0.0
    %2177 = vmatpush1.xpose.msra.mxu0 0.0
    %2178 = vmatprep.subr.mxu0 0.0
    %2179 = vmatpush1.xpose.msra.mxu0 0.0
    %2180 = vmatprep.subr.mxu0 0.0
    %2181 = vmatpush1.xpose.msra.mxu0 0.0
    %2182 = vmatprep.subr.mxu0 0.0
    %2183 = vmatpush1.xpose.msra.mxu0 0.0
    %2184 = vmatprep.subr.mxu0 0.0
    %2185 = vmatpush1.xpose.msra.mxu0 0.0
    %2186 = vmatprep.subr.mxu0 0.0
    %2187 = vmatpush1.xpose.msra.mxu0 0.0
    %2188 = vmatprep.subr.mxu0 0.0
    %2189 = vmatpush1.xpose.msra.mxu0 0.0
    %2190 = vmatprep.subr.mxu0 0.0
    %2191 = vmatpush1.xpose.msra.mxu0 %v2158
    %2192 = vmatprep.subr.mxu0 0.0
    %2193 = vmatpush2.xpose.msra.mxu0 0.0
    %2194 = vmatprep.subr.mxu0 0.0
    %2195 = vmatpush2.xpose.msra.mxu0 0.0
    %2196 = vmatprep.subr.mxu0 0.0
    %2197 = vmatpush2.xpose.msra.mxu0 0.0
    %2198 = vmatprep.subr.mxu0 0.0
    %2199 = vmatpush2.xpose.msra.mxu0 0.0
    %2200 = vmatprep.subr.mxu0 0.0
    %2201 = vmatpush2.xpose.msra.mxu0 0.0
    %2202 = vmatprep.subr.mxu0 0.0
    %2203 = vmatpush2.xpose.msra.mxu0 0.0
    %2204 = vmatprep.subr.mxu0 0.0
    %2205 = vmatpush2.xpose.msra.mxu0 0.0
    %2206 = vmatprep.subr.mxu0 0.0
    %2207 = vmatpush2.xpose.msra.mxu0 0.0
    %2208 = vmatprep.subr.mxu0 0.0
    %2209 = vmatpush2.xpose.msra.mxu0 0.0
    %2210 = vmatprep.subr.mxu0 0.0
    %2211 = vmatpush2.xpose.msra.mxu0 0.0
    %2212 = vmatprep.subr.mxu0 0.0
    %2213 = vmatpush2.xpose.msra.mxu0 0.0
    %2214 = vmatprep.subr.mxu0 0.0
    %2215 = vmatpush2.xpose.msra.mxu0 0.0
    %2216 = vmatprep.subr.mxu0 0.0
    %2217 = vmatpush2.xpose.msra.mxu0 0.0
    %2218 = vmatprep.subr.mxu0 0.0
    %2219 = vmatpush2.xpose.msra.mxu0 0.0
    %2220 = vmatprep.subr.mxu0 0.0
    %2221 = vmatpush2.xpose.msra.mxu0 0.0
    %2222 = vmatprep.subr.mxu0 0.0
    %2223 = vmatpush2.xpose.msra.mxu0 0.0
    %2224 = vmatprep.mubr.f32.mxu0 0.0
    %2225 = vmatmul.mubr.f32.gmra.mxu0 %v2158
    %v2226 = vpop.f32.mrf.mxu0
    %v2227 = vadd.f32 0.0, %v2226
    %v2228 = vpop.f32.mrf.mxu0
    %2229 = vdwg.mxu0
    %v2231 = vsel %vm52, %v2154, 0
    %2233 = vmatprep.subr.mxu0 0.0
    %2234 = vmatpush1.xpose.msra.mxu0 0.0
    %2235 = vmatprep.subr.mxu0 0.0
    %2236 = vmatpush1.xpose.msra.mxu0 0.0
    %2237 = vmatprep.subr.mxu0 0.0
    %2238 = vmatpush1.xpose.msra.mxu0 0.0
    %2239 = vmatprep.subr.mxu0 0.0
    %2240 = vmatpush1.xpose.msra.mxu0 0.0
    %2241 = vmatprep.subr.mxu0 0.0
    %2242 = vmatpush1.xpose.msra.mxu0 0.0
    %2243 = vmatprep.subr.mxu0 0.0
    %2244 = vmatpush1.xpose.msra.mxu0 0.0
    %2245 = vmatprep.subr.mxu0 0.0
    %2246 = vmatpush1.xpose.msra.mxu0 0.0
    %2247 = vmatprep.subr.mxu0 0.0
    %2248 = vmatpush1.xpose.msra.mxu0 0.0
    %2249 = vmatprep.subr.mxu0 0.0
    %2250 = vmatpush1.xpose.msra.mxu0 0.0
    %2251 = vmatprep.subr.mxu0 0.0
    %2252 = vmatpush1.xpose.msra.mxu0 0.0
    %2253 = vmatprep.subr.mxu0 0.0
    %2254 = vmatpush1.xpose.msra.mxu0 0.0
    %2255 = vmatprep.subr.mxu0 0.0
    %2256 = vmatpush1.xpose.msra.mxu0 0.0
    %2257 = vmatprep.subr.mxu0 0.0
    %2258 = vmatpush1.xpose.msra.mxu0 0.0
    %2259 = vmatprep.subr.mxu0 0.0
    %2260 = vmatpush1.xpose.msra.mxu0 0.0
    %2261 = vmatprep.subr.mxu0 0.0
    %2262 = vmatpush1.xpose.msra.mxu0 0.0
    %2263 = vmatprep.subr.mxu0 0.0
    %2264 = vmatpush1.xpose.msra.mxu0 %v2231
    %2265 = vmatprep.subr.mxu0 0.0
    %2266 = vmatpush2.xpose.msra.mxu0 0.0
    %2267 = vmatprep.subr.mxu0 0.0
    %2268 = vmatpush2.xpose.msra.mxu0 0.0
    %2269 = vmatprep.subr.mxu0 0.0
    %2270 = vmatpush2.xpose.msra.mxu0 0.0
    %2271 = vmatprep.subr.mxu0 0.0
    %2272 = vmatpush2.xpose.msra.mxu0 0.0
    %2273 = vmatprep.subr.mxu0 0.0
    %2274 = vmatpush2.xpose.msra.mxu0 0.0
    %2275 = vmatprep.subr.mxu0 0.0
    %2276 = vmatpush2.xpose.msra.mxu0 0.0
    %2277 = vmatprep.subr.mxu0 0.0
    %2278 = vmatpush2.xpose.msra.mxu0 0.0
    %2279 = vmatprep.subr.mxu0 0.0
    %2280 = vmatpush2.xpose.msra.mxu0 0.0
    %2281 = vmatprep.subr.mxu0 0.0
    %2282 = vmatpush2.xpose.msra.mxu0 0.0
    %2283 = vmatprep.subr.mxu0 0.0
    %2284 = vmatpush2.xpose.msra.mxu0 0.0
    %2285 = vmatprep.subr.mxu0 0.0
    %2286 = vmatpush2.xpose.msra.mxu0 0.0
    %2287 = vmatprep.subr.mxu0 0.0
    %2288 = vmatpush2.xpose.msra.mxu0 0.0
    %2289 = vmatprep.subr.mxu0 0.0
    %2290 = vmatpush2.xpose.msra.mxu0 0.0
    %2291 = vmatprep.subr.mxu0 0.0
    %2292 = vmatpush2.xpose.msra.mxu0 0.0
    %2293 = vmatprep.subr.mxu0 0.0
    %2294 = vmatpush2.xpose.msra.mxu0 0.0
    %2295 = vmatprep.subr.mxu0 0.0
    %2296 = vmatpush2.xpose.msra.mxu0 0.0
    %2297 = vmatprep.mubr.f32.mxu0 0.0
    %2298 = vmatmul.mubr.f32.gmra.mxu0 %v2231
    %v2299 = vpop.f32.mrf.mxu0
    %v2300 = vadd.f32 0.0, %v2299
    %v2301 = vpop.f32.mrf.mxu0
    %2302 = vdwg.mxu0
    %v2303 = vmul.f32 %v2227, 0.35355338
    %v2304 = vmul.f32 %v2300, 0.35355338
    %v2305 = vsel %vm52, %v2303, -inf
    %2306 = vmax.xlane.f32.xlu0 %v2305
    %v2307 = vpop.xlane.xlu0 %2306
    %v2308 = vsel %vm52, %v2304, -inf
    %2309 = vmax.xlane.f32.xlu0 %v2308
    %v2310 = vpop.xlane.xlu0 %2309
    %v2311 = vsub.f32 %v2303, %v2307
    %v2312 = vsub.f32 %v2304, %v2310
    %v2313 = vmul.f32 %v2311, 1.442695
    %v2314 = vpow.pop %v2313
    %v2315 = vmul.f32 %v2312, 1.442695
    %v2316 = vpow.pop %v2315
    %v2317 = vsel %vm52, %v2314, 0.0
    %2318 = vadd.xlane.f32.xlu0 %v2317
    %v2319 = vpop.xlane.xlu0 %2318
    %v2320 = vsel %vm52, %v2316, 0.0
    %2321 = vadd.xlane.f32.xlu0 %v2320
    %v2322 = vpop.xlane.xlu0 %2321
    %v2323 = vrcp.pop %v2319
    %v2324 = vrcp.pop %v2322
    %v2325 = vmul.f32 %v2314, %v2323
    %v2326 = vmul.f32 %v2316, %v2324
    %v2327 = vmul.f32 %v2325, %v262
    %v2328 = vmul.f32 %v2326, %v263
    %v2330 = vsel %vm52, %v2327, 0
    %2332 = vmatprep.subr.mxu0 0.0
    %2333 = vmatpush1.msra.mxu0 0.0
    %2334 = vmatprep.subr.mxu0 0.0
    %2335 = vmatpush1.msra.mxu0 0.0
    %2336 = vmatprep.subr.mxu0 0.0
    %2337 = vmatpush1.msra.mxu0 0.0
    %2338 = vmatprep.subr.mxu0 0.0
    %2339 = vmatpush1.msra.mxu0 0.0
    %2340 = vmatprep.subr.mxu0 0.0
    %2341 = vmatpush1.msra.mxu0 0.0
    %2342 = vmatprep.subr.mxu0 0.0
    %2343 = vmatpush1.msra.mxu0 0.0
    %2344 = vmatprep.subr.mxu0 0.0
    %2345 = vmatpush1.msra.mxu0 0.0
    %2346 = vmatprep.subr.mxu0 0.0
    %2347 = vmatpush1.msra.mxu0 0.0
    %2348 = vmatprep.subr.mxu0 0.0
    %2349 = vmatpush1.msra.mxu0 0.0
    %2350 = vmatprep.subr.mxu0 0.0
    %2351 = vmatpush1.msra.mxu0 0.0
    %2352 = vmatprep.subr.mxu0 0.0
    %2353 = vmatpush1.msra.mxu0 0.0
    %2354 = vmatprep.subr.mxu0 0.0
    %2355 = vmatpush1.msra.mxu0 0.0
    %2356 = vmatprep.subr.mxu0 0.0
    %2357 = vmatpush1.msra.mxu0 0.0
    %2358 = vmatprep.subr.mxu0 0.0
    %2359 = vmatpush1.msra.mxu0 0.0
    %2360 = vmatprep.subr.mxu0 0.0
    %2361 = vmatpush1.msra.mxu0 0.0
    %2362 = vmatprep.subr.mxu0 0.0
    %2363 = vmatpush1.msra.mxu0 %v2149
    %2364 = vmatprep.subr.mxu0 0.0
    %2365 = vmatpush2.msra.mxu0 0.0
    %2366 = vmatprep.subr.mxu0 0.0
    %2367 = vmatpush2.msra.mxu0 0.0
    %2368 = vmatprep.subr.mxu0 0.0
    %2369 = vmatpush2.msra.mxu0 0.0
    %2370 = vmatprep.subr.mxu0 0.0
    %2371 = vmatpush2.msra.mxu0 0.0
    %2372 = vmatprep.subr.mxu0 0.0
    %2373 = vmatpush2.msra.mxu0 0.0
    %2374 = vmatprep.subr.mxu0 0.0
    %2375 = vmatpush2.msra.mxu0 0.0
    %2376 = vmatprep.subr.mxu0 0.0
    %2377 = vmatpush2.msra.mxu0 0.0
    %2378 = vmatprep.subr.mxu0 0.0
    %2379 = vmatpush2.msra.mxu0 0.0
    %2380 = vmatprep.subr.mxu0 0.0
    %2381 = vmatpush2.msra.mxu0 0.0
    %2382 = vmatprep.subr.mxu0 0.0
    %2383 = vmatpush2.msra.mxu0 0.0
    %2384 = vmatprep.subr.mxu0 0.0
    %2385 = vmatpush2.msra.mxu0 0.0
    %2386 = vmatprep.subr.mxu0 0.0
    %2387 = vmatpush2.msra.mxu0 0.0
    %2388 = vmatprep.subr.mxu0 0.0
    %2389 = vmatpush2.msra.mxu0 0.0
    %2390 = vmatprep.subr.mxu0 0.0
    %2391 = vmatpush2.msra.mxu0 0.0
    %2392 = vmatprep.subr.mxu0 0.0
    %2393 = vmatpush2.msra.mxu0 0.0
    %2394 = vmatprep.subr.mxu0 0.0
    %2395 = vmatpush2.msra.mxu0 0.0
    %2396 = vmatprep.mubr.f32.mxu0 0.0
    %2397 = vmatmul.mubr.f32.gmra.mxu0 %v2330
    %v2398 = vpop.f32.mrf.mxu0
    %v2399 = vadd.f32 0.0, %v2398
    %v2400 = vpop.f32.mrf.mxu0
    %2401 = vdwg.mxu0
    %v2403 = vsel %vm52, %v2328, 0
    %2405 = vmatprep.subr.mxu0 0.0
    %2406 = vmatpush1.msra.mxu0 0.0
    %2407 = vmatprep.subr.mxu0 0.0
    %2408 = vmatpush1.msra.mxu0 0.0
    %2409 = vmatprep.subr.mxu0 0.0
    %2410 = vmatpush1.msra.mxu0 0.0
    %2411 = vmatprep.subr.mxu0 0.0
    %2412 = vmatpush1.msra.mxu0 0.0
    %2413 = vmatprep.subr.mxu0 0.0
    %2414 = vmatpush1.msra.mxu0 0.0
    %2415 = vmatprep.subr.mxu0 0.0
    %2416 = vmatpush1.msra.mxu0 0.0
    %2417 = vmatprep.subr.mxu0 0.0
    %2418 = vmatpush1.msra.mxu0 0.0
    %2419 = vmatprep.subr.mxu0 0.0
    %2420 = vmatpush1.msra.mxu0 0.0
    %2421 = vmatprep.subr.mxu0 0.0
    %2422 = vmatpush1.msra.mxu0 0.0
    %2423 = vmatprep.subr.mxu0 0.0
    %2424 = vmatpush1.msra.mxu0 0.0
    %2425 = vmatprep.subr.mxu0 0.0
    %2426 = vmatpush1.msra.mxu0 0.0
    %2427 = vmatprep.subr.mxu0 0.0
    %2428 = vmatpush1.msra.mxu0 0.0
    %2429 = vmatprep.subr.mxu0 0.0
    %2430 = vmatpush1.msra.mxu0 0.0
    %2431 = vmatprep.subr.mxu0 0.0
    %2432 = vmatpush1.msra.mxu0 0.0
    %2433 = vmatprep.subr.mxu0 0.0
    %2434 = vmatpush1.msra.mxu0 0.0
    %2435 = vmatprep.subr.mxu0 0.0
    %2436 = vmatpush1.msra.mxu0 %v2154
    %2437 = vmatprep.subr.mxu0 0.0
    %2438 = vmatpush2.msra.mxu0 0.0
    %2439 = vmatprep.subr.mxu0 0.0
    %2440 = vmatpush2.msra.mxu0 0.0
    %2441 = vmatprep.subr.mxu0 0.0
    %2442 = vmatpush2.msra.mxu0 0.0
    %2443 = vmatprep.subr.mxu0 0.0
    %2444 = vmatpush2.msra.mxu0 0.0
    %2445 = vmatprep.subr.mxu0 0.0
    %2446 = vmatpush2.msra.mxu0 0.0
    %2447 = vmatprep.subr.mxu0 0.0
    %2448 = vmatpush2.msra.mxu0 0.0
    %2449 = vmatprep.subr.mxu0 0.0
    %2450 = vmatpush2.msra.mxu0 0.0
    %2451 = vmatprep.subr.mxu0 0.0
    %2452 = vmatpush2.msra.mxu0 0.0
    %2453 = vmatprep.subr.mxu0 0.0
    %2454 = vmatpush2.msra.mxu0 0.0
    %2455 = vmatprep.subr.mxu0 0.0
    %2456 = vmatpush2.msra.mxu0 0.0
    %2457 = vmatprep.subr.mxu0 0.0
    %2458 = vmatpush2.msra.mxu0 0.0
    %2459 = vmatprep.subr.mxu0 0.0
    %2460 = vmatpush2.msra.mxu0 0.0
    %2461 = vmatprep.subr.mxu0 0.0
    %2462 = vmatpush2.msra.mxu0 0.0
    %2463 = vmatprep.subr.mxu0 0.0
    %2464 = vmatpush2.msra.mxu0 0.0
    %2465 = vmatprep.subr.mxu0 0.0
    %2466 = vmatpush2.msra.mxu0 0.0
    %2467 = vmatprep.subr.mxu0 0.0
    %2468 = vmatpush2.msra.mxu0 0.0
    %2469 = vmatprep.mubr.f32.mxu0 0.0
    %2470 = vmatmul.mubr.f32.gmra.mxu0 %v2403
    %v2471 = vpop.f32.mrf.mxu0
    %v2472 = vadd.f32 0.0, %v2471
    %v2473 = vpop.f32.mrf.mxu0
    %2474 = vdwg.mxu0
    %2475 = vrot.lane.b32.xlu0 %v2149, 120
    %v2476 = vpop.permute.xlu0 %2475
    %v2477 = vsel %vm52, %v2476, 0
    %2479 = vmatprep.subr.mxu0 0.0
    %2480 = vmatpush1.xpose.msra.mxu0 0.0
    %2481 = vmatprep.subr.mxu0 0.0
    %2482 = vmatpush1.xpose.msra.mxu0 0.0
    %2483 = vmatprep.subr.mxu0 0.0
    %2484 = vmatpush1.xpose.msra.mxu0 0.0
    %2485 = vmatprep.subr.mxu0 0.0
    %2486 = vmatpush1.xpose.msra.mxu0 0.0
    %2487 = vmatprep.subr.mxu0 0.0
    %2488 = vmatpush1.xpose.msra.mxu0 0.0
    %2489 = vmatprep.subr.mxu0 0.0
    %2490 = vmatpush1.xpose.msra.mxu0 0.0
    %2491 = vmatprep.subr.mxu0 0.0
    %2492 = vmatpush1.xpose.msra.mxu0 0.0
    %2493 = vmatprep.subr.mxu0 0.0
    %2494 = vmatpush1.xpose.msra.mxu0 0.0
    %2495 = vmatprep.subr.mxu0 0.0
    %2496 = vmatpush1.xpose.msra.mxu0 0.0
    %2497 = vmatprep.subr.mxu0 0.0
    %2498 = vmatpush1.xpose.msra.mxu0 0.0
    %2499 = vmatprep.subr.mxu0 0.0
    %2500 = vmatpush1.xpose.msra.mxu0 0.0
    %2501 = vmatprep.subr.mxu0 0.0
    %2502 = vmatpush1.xpose.msra.mxu0 0.0
    %2503 = vmatprep.subr.mxu0 0.0
    %2504 = vmatpush1.xpose.msra.mxu0 0.0
    %2505 = vmatprep.subr.mxu0 0.0
    %2506 = vmatpush1.xpose.msra.mxu0 0.0
    %2507 = vmatprep.subr.mxu0 0.0
    %2508 = vmatpush1.xpose.msra.mxu0 0.0
    %2509 = vmatprep.subr.mxu0 0.0
    %2510 = vmatpush1.xpose.msra.mxu0 %v2477
    %2511 = vmatprep.subr.mxu0 0.0
    %2512 = vmatpush2.xpose.msra.mxu0 0.0
    %2513 = vmatprep.subr.mxu0 0.0
    %2514 = vmatpush2.xpose.msra.mxu0 0.0
    %2515 = vmatprep.subr.mxu0 0.0
    %2516 = vmatpush2.xpose.msra.mxu0 0.0
    %2517 = vmatprep.subr.mxu0 0.0
    %2518 = vmatpush2.xpose.msra.mxu0 0.0
    %2519 = vmatprep.subr.mxu0 0.0
    %2520 = vmatpush2.xpose.msra.mxu0 0.0
    %2521 = vmatprep.subr.mxu0 0.0
    %2522 = vmatpush2.xpose.msra.mxu0 0.0
    %2523 = vmatprep.subr.mxu0 0.0
    %2524 = vmatpush2.xpose.msra.mxu0 0.0
    %2525 = vmatprep.subr.mxu0 0.0
    %2526 = vmatpush2.xpose.msra.mxu0 0.0
    %2527 = vmatprep.subr.mxu0 0.0
    %2528 = vmatpush2.xpose.msra.mxu0 0.0
    %2529 = vmatprep.subr.mxu0 0.0
    %2530 = vmatpush2.xpose.msra.mxu0 0.0
    %2531 = vmatprep.subr.mxu0 0.0
    %2532 = vmatpush2.xpose.msra.mxu0 0.0
    %2533 = vmatprep.subr.mxu0 0.0
    %2534 = vmatpush2.xpose.msra.mxu0 0.0
    %2535 = vmatprep.subr.mxu0 0.0
    %2536 = vmatpush2.xpose.msra.mxu0 0.0
    %2537 = vmatprep.subr.mxu0 0.0
    %2538 = vmatpush2.xpose.msra.mxu0 0.0
    %2539 = vmatprep.subr.mxu0 0.0
    %2540 = vmatpush2.xpose.msra.mxu0 0.0
    %2541 = vmatprep.subr.mxu0 0.0
    %2542 = vmatpush2.xpose.msra.mxu0 0.0
    %2543 = vmatprep.mubr.f32.mxu0 0.0
    %2544 = vmatmul.mubr.f32.gmra.mxu0 %v2477
    %v2545 = vpop.f32.mrf.mxu0
    %v2546 = vadd.f32 0.0, %v2545
    %v2547 = vpop.f32.mrf.mxu0
    %2548 = vdwg.mxu0
    %2549 = vrot.lane.b32.xlu0 %v2154, 120
    %v2550 = vpop.permute.xlu0 %2549
    %v2551 = vsel %vm52, %v2550, 0
    %2553 = vmatprep.subr.mxu0 0.0
    %2554 = vmatpush1.xpose.msra.mxu0 0.0
    %2555 = vmatprep.subr.mxu0 0.0
    %2556 = vmatpush1.xpose.msra.mxu0 0.0
    %2557 = vmatprep.subr.mxu0 0.0
    %2558 = vmatpush1.xpose.msra.mxu0 0.0
    %2559 = vmatprep.subr.mxu0 0.0
    %2560 = vmatpush1.xpose.msra.mxu0 0.0
    %2561 = vmatprep.subr.mxu0 0.0
    %2562 = vmatpush1.xpose.msra.mxu0 0.0
    %2563 = vmatprep.subr.mxu0 0.0
    %2564 = vmatpush1.xpose.msra.mxu0 0.0
    %2565 = vmatprep.subr.mxu0 0.0
    %2566 = vmatpush1.xpose.msra.mxu0 0.0
    %2567 = vmatprep.subr.mxu0 0.0
    %2568 = vmatpush1.xpose.msra.mxu0 0.0
    %2569 = vmatprep.subr.mxu0 0.0
    %2570 = vmatpush1.xpose.msra.mxu0 0.0
    %2571 = vmatprep.subr.mxu0 0.0
    %2572 = vmatpush1.xpose.msra.mxu0 0.0
    %2573 = vmatprep.subr.mxu0 0.0
    %2574 = vmatpush1.xpose.msra.mxu0 0.0
    %2575 = vmatprep.subr.mxu0 0.0
    %2576 = vmatpush1.xpose.msra.mxu0 0.0
    %2577 = vmatprep.subr.mxu0 0.0
    %2578 = vmatpush1.xpose.msra.mxu0 0.0
    %2579 = vmatprep.subr.mxu0 0.0
    %2580 = vmatpush1.xpose.msra.mxu0 0.0
    %2581 = vmatprep.subr.mxu0 0.0
    %2582 = vmatpush1.xpose.msra.mxu0 0.0
    %2583 = vmatprep.subr.mxu0 0.0
    %2584 = vmatpush1.xpose.msra.mxu0 %v2551
    %2585 = vmatprep.subr.mxu0 0.0
    %2586 = vmatpush2.xpose.msra.mxu0 0.0
    %2587 = vmatprep.subr.mxu0 0.0
    %2588 = vmatpush2.xpose.msra.mxu0 0.0
    %2589 = vmatprep.subr.mxu0 0.0
    %2590 = vmatpush2.xpose.msra.mxu0 0.0
    %2591 = vmatprep.subr.mxu0 0.0
    %2592 = vmatpush2.xpose.msra.mxu0 0.0
    %2593 = vmatprep.subr.mxu0 0.0
    %2594 = vmatpush2.xpose.msra.mxu0 0.0
    %2595 = vmatprep.subr.mxu0 0.0
    %2596 = vmatpush2.xpose.msra.mxu0 0.0
    %2597 = vmatprep.subr.mxu0 0.0
    %2598 = vmatpush2.xpose.msra.mxu0 0.0
    %2599 = vmatprep.subr.mxu0 0.0
    %2600 = vmatpush2.xpose.msra.mxu0 0.0
    %2601 = vmatprep.subr.mxu0 0.0
    %2602 = vmatpush2.xpose.msra.mxu0 0.0
    %2603 = vmatprep.subr.mxu0 0.0
    %2604 = vmatpush2.xpose.msra.mxu0 0.0
    %2605 = vmatprep.subr.mxu0 0.0
    %2606 = vmatpush2.xpose.msra.mxu0 0.0
    %2607 = vmatprep.subr.mxu0 0.0
    %2608 = vmatpush2.xpose.msra.mxu0 0.0
    %2609 = vmatprep.subr.mxu0 0.0
    %2610 = vmatpush2.xpose.msra.mxu0 0.0
    %2611 = vmatprep.subr.mxu0 0.0
    %2612 = vmatpush2.xpose.msra.mxu0 0.0
    %2613 = vmatprep.subr.mxu0 0.0
    %2614 = vmatpush2.xpose.msra.mxu0 0.0
    %2615 = vmatprep.subr.mxu0 0.0
    %2616 = vmatpush2.xpose.msra.mxu0 0.0
    %2617 = vmatprep.mubr.f32.mxu0 0.0
    %2618 = vmatmul.mubr.f32.gmra.mxu0 %v2551
    %v2619 = vpop.f32.mrf.mxu0
    %v2620 = vadd.f32 0.0, %v2619
    %v2621 = vpop.f32.mrf.mxu0
    %2622 = vdwg.mxu0
    %v2623 = vmul.f32 %v2546, 0.35355338
    %v2624 = vmul.f32 %v2620, 0.35355338
    %v2625 = vsel %vm52, %v2623, -inf
    %2626 = vmax.xlane.f32.xlu0 %v2625
    %v2627 = vpop.xlane.xlu0 %2626
    %v2628 = vsel %vm52, %v2624, -inf
    %2629 = vmax.xlane.f32.xlu0 %v2628
    %v2630 = vpop.xlane.xlu0 %2629
    %v2631 = vsub.f32 %v2623, %v2627
    %v2632 = vsub.f32 %v2624, %v2630
    %v2633 = vmul.f32 %v2631, 1.442695
    %v2634 = vpow.pop %v2633
    %v2635 = vmul.f32 %v2632, 1.442695
    %v2636 = vpow.pop %v2635
    %v2637 = vsel %vm52, %v2634, 0.0
    %2638 = vadd.xlane.f32.xlu0 %v2637
    %v2639 = vpop.xlane.xlu0 %2638
    %v2640 = vsel %vm52, %v2636, 0.0
    %2641 = vadd.xlane.f32.xlu0 %v2640
    %v2642 = vpop.xlane.xlu0 %2641
    %v2643 = vrcp.pop %v2639
    %v2644 = vrcp.pop %v2642
    %v2645 = vmul.f32 %v2634, %v2643
    %v2646 = vmul.f32 %v2636, %v2644
    %v2647 = vmul.f32 %v2645, %v262
    %v2648 = vmul.f32 %v2646, %v263
    %v2651 = vsel %vm52, %v2647, 0
    %2653 = vmatprep.subr.mxu0 0.0
    %2654 = vmatpush1.msra.mxu0 0.0
    %2655 = vmatprep.subr.mxu0 0.0
    %2656 = vmatpush1.msra.mxu0 0.0
    %2657 = vmatprep.subr.mxu0 0.0
    %2658 = vmatpush1.msra.mxu0 0.0
    %2659 = vmatprep.subr.mxu0 0.0
    %2660 = vmatpush1.msra.mxu0 0.0
    %2661 = vmatprep.subr.mxu0 0.0
    %2662 = vmatpush1.msra.mxu0 0.0
    %2663 = vmatprep.subr.mxu0 0.0
    %2664 = vmatpush1.msra.mxu0 0.0
    %2665 = vmatprep.subr.mxu0 0.0
    %2666 = vmatpush1.msra.mxu0 0.0
    %2667 = vmatprep.subr.mxu0 0.0
    %2668 = vmatpush1.msra.mxu0 0.0
    %2669 = vmatprep.subr.mxu0 0.0
    %2670 = vmatpush1.msra.mxu0 0.0
    %2671 = vmatprep.subr.mxu0 0.0
    %2672 = vmatpush1.msra.mxu0 0.0
    %2673 = vmatprep.subr.mxu0 0.0
    %2674 = vmatpush1.msra.mxu0 0.0
    %2675 = vmatprep.subr.mxu0 0.0
    %2676 = vmatpush1.msra.mxu0 0.0
    %2677 = vmatprep.subr.mxu0 0.0
    %2678 = vmatpush1.msra.mxu0 0.0
    %2679 = vmatprep.subr.mxu0 0.0
    %2680 = vmatpush1.msra.mxu0 0.0
    %2681 = vmatprep.subr.mxu0 0.0
    %2682 = vmatpush1.msra.mxu0 0.0
    %2683 = vmatprep.subr.mxu0 0.0
    %2684 = vmatpush1.msra.mxu0 %v2476
    %2685 = vmatprep.subr.mxu0 0.0
    %2686 = vmatpush2.msra.mxu0 0.0
    %2687 = vmatprep.subr.mxu0 0.0
    %2688 = vmatpush2.msra.mxu0 0.0
    %2689 = vmatprep.subr.mxu0 0.0
    %2690 = vmatpush2.msra.mxu0 0.0
    %2691 = vmatprep.subr.mxu0 0.0
    %2692 = vmatpush2.msra.mxu0 0.0
    %2693 = vmatprep.subr.mxu0 0.0
    %2694 = vmatpush2.msra.mxu0 0.0
    %2695 = vmatprep.subr.mxu0 0.0
    %2696 = vmatpush2.msra.mxu0 0.0
    %2697 = vmatprep.subr.mxu0 0.0
    %2698 = vmatpush2.msra.mxu0 0.0
    %2699 = vmatprep.subr.mxu0 0.0
    %2700 = vmatpush2.msra.mxu0 0.0
    %2701 = vmatprep.subr.mxu0 0.0
    %2702 = vmatpush2.msra.mxu0 0.0
    %2703 = vmatprep.subr.mxu0 0.0
    %2704 = vmatpush2.msra.mxu0 0.0
    %2705 = vmatprep.subr.mxu0 0.0
    %2706 = vmatpush2.msra.mxu0 0.0
    %2707 = vmatprep.subr.mxu0 0.0
    %2708 = vmatpush2.msra.mxu0 0.0
    %2709 = vmatprep.subr.mxu0 0.0
    %2710 = vmatpush2.msra.mxu0 0.0
    %2711 = vmatprep.subr.mxu0 0.0
    %2712 = vmatpush2.msra.mxu0 0.0
    %2713 = vmatprep.subr.mxu0 0.0
    %2714 = vmatpush2.msra.mxu0 0.0
    %2715 = vmatprep.subr.mxu0 0.0
    %2716 = vmatpush2.msra.mxu0 0.0
    %2717 = vmatprep.mubr.f32.mxu0 0.0
    %2718 = vmatmul.mubr.f32.gmra.mxu0 %v2651
    %v2719 = vpop.f32.mrf.mxu0
    %v2720 = vadd.f32 0.0, %v2719
    %v2721 = vpop.f32.mrf.mxu0
    %2722 = vdwg.mxu0
    %v2725 = vsel %vm52, %v2648, 0
    %2727 = vmatprep.subr.mxu0 0.0
    %2728 = vmatpush1.msra.mxu0 0.0
    %2729 = vmatprep.subr.mxu0 0.0
    %2730 = vmatpush1.msra.mxu0 0.0
    %2731 = vmatprep.subr.mxu0 0.0
    %2732 = vmatpush1.msra.mxu0 0.0
    %2733 = vmatprep.subr.mxu0 0.0
    %2734 = vmatpush1.msra.mxu0 0.0
    %2735 = vmatprep.subr.mxu0 0.0
    %2736 = vmatpush1.msra.mxu0 0.0
    %2737 = vmatprep.subr.mxu0 0.0
    %2738 = vmatpush1.msra.mxu0 0.0
    %2739 = vmatprep.subr.mxu0 0.0
    %2740 = vmatpush1.msra.mxu0 0.0
    %2741 = vmatprep.subr.mxu0 0.0
    %2742 = vmatpush1.msra.mxu0 0.0
    %2743 = vmatprep.subr.mxu0 0.0
    %2744 = vmatpush1.msra.mxu0 0.0
    %2745 = vmatprep.subr.mxu0 0.0
    %2746 = vmatpush1.msra.mxu0 0.0
    %2747 = vmatprep.subr.mxu0 0.0
    %2748 = vmatpush1.msra.mxu0 0.0
    %2749 = vmatprep.subr.mxu0 0.0
    %2750 = vmatpush1.msra.mxu0 0.0
    %2751 = vmatprep.subr.mxu0 0.0
    %2752 = vmatpush1.msra.mxu0 0.0
    %2753 = vmatprep.subr.mxu0 0.0
    %2754 = vmatpush1.msra.mxu0 0.0
    %2755 = vmatprep.subr.mxu0 0.0
    %2756 = vmatpush1.msra.mxu0 0.0
    %2757 = vmatprep.subr.mxu0 0.0
    %2758 = vmatpush1.msra.mxu0 %v2550
    %2759 = vmatprep.subr.mxu0 0.0
    %2760 = vmatpush2.msra.mxu0 0.0
    %2761 = vmatprep.subr.mxu0 0.0
    %2762 = vmatpush2.msra.mxu0 0.0
    %2763 = vmatprep.subr.mxu0 0.0
    %2764 = vmatpush2.msra.mxu0 0.0
    %2765 = vmatprep.subr.mxu0 0.0
    %2766 = vmatpush2.msra.mxu0 0.0
    %2767 = vmatprep.subr.mxu0 0.0
    %2768 = vmatpush2.msra.mxu0 0.0
    %2769 = vmatprep.subr.mxu0 0.0
    %2770 = vmatpush2.msra.mxu0 0.0
    %2771 = vmatprep.subr.mxu0 0.0
    %2772 = vmatpush2.msra.mxu0 0.0
    %2773 = vmatprep.subr.mxu0 0.0
    %2774 = vmatpush2.msra.mxu0 0.0
    %2775 = vmatprep.subr.mxu0 0.0
    %2776 = vmatpush2.msra.mxu0 0.0
    %2777 = vmatprep.subr.mxu0 0.0
    %2778 = vmatpush2.msra.mxu0 0.0
    %2779 = vmatprep.subr.mxu0 0.0
    %2780 = vmatpush2.msra.mxu0 0.0
    %2781 = vmatprep.subr.mxu0 0.0
    %2782 = vmatpush2.msra.mxu0 0.0
    %2783 = vmatprep.subr.mxu0 0.0
    %2784 = vmatpush2.msra.mxu0 0.0
    %2785 = vmatprep.subr.mxu0 0.0
    %2786 = vmatpush2.msra.mxu0 0.0
    %2787 = vmatprep.subr.mxu0 0.0
    %2788 = vmatpush2.msra.mxu0 0.0
    %2789 = vmatprep.subr.mxu0 0.0
    %2790 = vmatpush2.msra.mxu0 0.0
    %2791 = vmatprep.mubr.f32.mxu0 0.0
    %2792 = vmatmul.mubr.f32.gmra.mxu0 %v2725
    %v2793 = vpop.f32.mrf.mxu0
    %v2794 = vadd.f32 0.0, %v2793
    %v2795 = vpop.f32.mrf.mxu0
    %2796 = vdwg.mxu0
    %2797 = vrot.lane.b32.xlu0 %v2149, 112
    %v2798 = vpop.permute.xlu0 %2797
    %v2799 = vsel %vm52, %v2798, 0
    %2801 = vmatprep.subr.mxu0 0.0
    %2802 = vmatpush1.xpose.msra.mxu0 0.0
    %2803 = vmatprep.subr.mxu0 0.0
    %2804 = vmatpush1.xpose.msra.mxu0 0.0
    %2805 = vmatprep.subr.mxu0 0.0
    %2806 = vmatpush1.xpose.msra.mxu0 0.0
    %2807 = vmatprep.subr.mxu0 0.0
    %2808 = vmatpush1.xpose.msra.mxu0 0.0
    %2809 = vmatprep.subr.mxu0 0.0
    %2810 = vmatpush1.xpose.msra.mxu0 0.0
    %2811 = vmatprep.subr.mxu0 0.0
    %2812 = vmatpush1.xpose.msra.mxu0 0.0
    %2813 = vmatprep.subr.mxu0 0.0
    %2814 = vmatpush1.xpose.msra.mxu0 0.0
    %2815 = vmatprep.subr.mxu0 0.0
    %2816 = vmatpush1.xpose.msra.mxu0 0.0
    %2817 = vmatprep.subr.mxu0 0.0
    %2818 = vmatpush1.xpose.msra.mxu0 0.0
    %2819 = vmatprep.subr.mxu0 0.0
    %2820 = vmatpush1.xpose.msra.mxu0 0.0
    %2821 = vmatprep.subr.mxu0 0.0
    %2822 = vmatpush1.xpose.msra.mxu0 0.0
    %2823 = vmatprep.subr.mxu0 0.0
    %2824 = vmatpush1.xpose.msra.mxu0 0.0
    %2825 = vmatprep.subr.mxu0 0.0
    %2826 = vmatpush1.xpose.msra.mxu0 0.0
    %2827 = vmatprep.subr.mxu0 0.0
    %2828 = vmatpush1.xpose.msra.mxu0 0.0
    %2829 = vmatprep.subr.mxu0 0.0
    %2830 = vmatpush1.xpose.msra.mxu0 0.0
    %2831 = vmatprep.subr.mxu0 0.0
    %2832 = vmatpush1.xpose.msra.mxu0 %v2799
    %2833 = vmatprep.subr.mxu0 0.0
    %2834 = vmatpush2.xpose.msra.mxu0 0.0
    %2835 = vmatprep.subr.mxu0 0.0
    %2836 = vmatpush2.xpose.msra.mxu0 0.0
    %2837 = vmatprep.subr.mxu0 0.0
    %2838 = vmatpush2.xpose.msra.mxu0 0.0
    %2839 = vmatprep.subr.mxu0 0.0
    %2840 = vmatpush2.xpose.msra.mxu0 0.0
    %2841 = vmatprep.subr.mxu0 0.0
    %2842 = vmatpush2.xpose.msra.mxu0 0.0
    %2843 = vmatprep.subr.mxu0 0.0
    %2844 = vmatpush2.xpose.msra.mxu0 0.0
    %2845 = vmatprep.subr.mxu0 0.0
    %2846 = vmatpush2.xpose.msra.mxu0 0.0
    %2847 = vmatprep.subr.mxu0 0.0
    %2848 = vmatpush2.xpose.msra.mxu0 0.0
    %2849 = vmatprep.subr.mxu0 0.0
    %2850 = vmatpush2.xpose.msra.mxu0 0.0
    %2851 = vmatprep.subr.mxu0 0.0
    %2852 = vmatpush2.xpose.msra.mxu0 0.0
    %2853 = vmatprep.subr.mxu0 0.0
    %2854 = vmatpush2.xpose.msra.mxu0 0.0
    %2855 = vmatprep.subr.mxu0 0.0
    %2856 = vmatpush2.xpose.msra.mxu0 0.0
    %2857 = vmatprep.subr.mxu0 0.0
    %2858 = vmatpush2.xpose.msra.mxu0 0.0
    %2859 = vmatprep.subr.mxu0 0.0
    %2860 = vmatpush2.xpose.msra.mxu0 0.0
    %2861 = vmatprep.subr.mxu0 0.0
    %2862 = vmatpush2.xpose.msra.mxu0 0.0
    %2863 = vmatprep.subr.mxu0 0.0
    %2864 = vmatpush2.xpose.msra.mxu0 0.0
    %2865 = vmatprep.mubr.f32.mxu0 0.0
    %2866 = vmatmul.mubr.f32.gmra.mxu0 %v2799
    %v2867 = vpop.f32.mrf.mxu0
    %v2868 = vadd.f32 0.0, %v2867
    %v2869 = vpop.f32.mrf.mxu0
    %2870 = vdwg.mxu0
    %2871 = vrot.lane.b32.xlu0 %v2154, 112
    %v2872 = vpop.permute.xlu0 %2871
    %v2873 = vsel %vm52, %v2872, 0
    %2875 = vmatprep.subr.mxu0 0.0
    %2876 = vmatpush1.xpose.msra.mxu0 0.0
    %2877 = vmatprep.subr.mxu0 0.0
    %2878 = vmatpush1.xpose.msra.mxu0 0.0
    %2879 = vmatprep.subr.mxu0 0.0
    %2880 = vmatpush1.xpose.msra.mxu0 0.0
    %2881 = vmatprep.subr.mxu0 0.0
    %2882 = vmatpush1.xpose.msra.mxu0 0.0
    %2883 = vmatprep.subr.mxu0 0.0
    %2884 = vmatpush1.xpose.msra.mxu0 0.0
    %2885 = vmatprep.subr.mxu0 0.0
    %2886 = vmatpush1.xpose.msra.mxu0 0.0
    %2887 = vmatprep.subr.mxu0 0.0
    %2888 = vmatpush1.xpose.msra.mxu0 0.0
    %2889 = vmatprep.subr.mxu0 0.0
    %2890 = vmatpush1.xpose.msra.mxu0 0.0
    %2891 = vmatprep.subr.mxu0 0.0
    %2892 = vmatpush1.xpose.msra.mxu0 0.0
    %2893 = vmatprep.subr.mxu0 0.0
    %2894 = vmatpush1.xpose.msra.mxu0 0.0
    %2895 = vmatprep.subr.mxu0 0.0
    %2896 = vmatpush1.xpose.msra.mxu0 0.0
    %2897 = vmatprep.subr.mxu0 0.0
    %2898 = vmatpush1.xpose.msra.mxu0 0.0
    %2899 = vmatprep.subr.mxu0 0.0
    %2900 = vmatpush1.xpose.msra.mxu0 0.0
    %2901 = vmatprep.subr.mxu0 0.0
    %2902 = vmatpush1.xpose.msra.mxu0 0.0
    %2903 = vmatprep.subr.mxu0 0.0
    %2904 = vmatpush1.xpose.msra.mxu0 0.0
    %2905 = vmatprep.subr.mxu0 0.0
    %2906 = vmatpush1.xpose.msra.mxu0 %v2873
    %2907 = vmatprep.subr.mxu0 0.0
    %2908 = vmatpush2.xpose.msra.mxu0 0.0
    %2909 = vmatprep.subr.mxu0 0.0
    %2910 = vmatpush2.xpose.msra.mxu0 0.0
    %2911 = vmatprep.subr.mxu0 0.0
    %2912 = vmatpush2.xpose.msra.mxu0 0.0
    %2913 = vmatprep.subr.mxu0 0.0
    %2914 = vmatpush2.xpose.msra.mxu0 0.0
    %2915 = vmatprep.subr.mxu0 0.0
    %2916 = vmatpush2.xpose.msra.mxu0 0.0
    %2917 = vmatprep.subr.mxu0 0.0
    %2918 = vmatpush2.xpose.msra.mxu0 0.0
    %2919 = vmatprep.subr.mxu0 0.0
    %2920 = vmatpush2.xpose.msra.mxu0 0.0
    %2921 = vmatprep.subr.mxu0 0.0
    %2922 = vmatpush2.xpose.msra.mxu0 0.0
    %2923 = vmatprep.subr.mxu0 0.0
    %2924 = vmatpush2.xpose.msra.mxu0 0.0
    %2925 = vmatprep.subr.mxu0 0.0
    %2926 = vmatpush2.xpose.msra.mxu0 0.0
    %2927 = vmatprep.subr.mxu0 0.0
    %2928 = vmatpush2.xpose.msra.mxu0 0.0
    %2929 = vmatprep.subr.mxu0 0.0
    %2930 = vmatpush2.xpose.msra.mxu0 0.0
    %2931 = vmatprep.subr.mxu0 0.0
    %2932 = vmatpush2.xpose.msra.mxu0 0.0
    %2933 = vmatprep.subr.mxu0 0.0
    %2934 = vmatpush2.xpose.msra.mxu0 0.0
    %2935 = vmatprep.subr.mxu0 0.0
    %2936 = vmatpush2.xpose.msra.mxu0 0.0
    %2937 = vmatprep.subr.mxu0 0.0
    %2938 = vmatpush2.xpose.msra.mxu0 0.0
    %2939 = vmatprep.mubr.f32.mxu0 0.0
    %2940 = vmatmul.mubr.f32.gmra.mxu0 %v2873
    %v2941 = vpop.f32.mrf.mxu0
    %v2942 = vadd.f32 0.0, %v2941
    %v2943 = vpop.f32.mrf.mxu0
    %2944 = vdwg.mxu0
    %v2945 = vmul.f32 %v2868, 0.35355338
    %v2946 = vmul.f32 %v2942, 0.35355338
    %v2947 = vsel %vm52, %v2945, -inf
    %2948 = vmax.xlane.f32.xlu0 %v2947
    %v2949 = vpop.xlane.xlu0 %2948
    %v2950 = vsel %vm52, %v2946, -inf
    %2951 = vmax.xlane.f32.xlu0 %v2950
    %v2952 = vpop.xlane.xlu0 %2951
    %v2953 = vsub.f32 %v2945, %v2949
    %v2954 = vsub.f32 %v2946, %v2952
    %v2955 = vmul.f32 %v2953, 1.442695
    %v2956 = vpow.pop %v2955
    %v2957 = vmul.f32 %v2954, 1.442695
    %v2958 = vpow.pop %v2957
    %v2959 = vsel %vm52, %v2956, 0.0
    %2960 = vadd.xlane.f32.xlu0 %v2959
    %v2961 = vpop.xlane.xlu0 %2960
    %v2962 = vsel %vm52, %v2958, 0.0
    %2963 = vadd.xlane.f32.xlu0 %v2962
    %v2964 = vpop.xlane.xlu0 %2963
    %v2965 = vrcp.pop %v2961
    %v2966 = vrcp.pop %v2964
    %v2967 = vmul.f32 %v2956, %v2965
    %v2968 = vmul.f32 %v2958, %v2966
    %v2969 = vmul.f32 %v2967, %v262
    %v2970 = vmul.f32 %v2968, %v263
    %v2973 = vsel %vm52, %v2969, 0
    %2975 = vmatprep.subr.mxu0 0.0
    %2976 = vmatpush1.msra.mxu0 0.0
    %2977 = vmatprep.subr.mxu0 0.0
    %2978 = vmatpush1.msra.mxu0 0.0
    %2979 = vmatprep.subr.mxu0 0.0
    %2980 = vmatpush1.msra.mxu0 0.0
    %2981 = vmatprep.subr.mxu0 0.0
    %2982 = vmatpush1.msra.mxu0 0.0
    %2983 = vmatprep.subr.mxu0 0.0
    %2984 = vmatpush1.msra.mxu0 0.0
    %2985 = vmatprep.subr.mxu0 0.0
    %2986 = vmatpush1.msra.mxu0 0.0
    %2987 = vmatprep.subr.mxu0 0.0
    %2988 = vmatpush1.msra.mxu0 0.0
    %2989 = vmatprep.subr.mxu0 0.0
    %2990 = vmatpush1.msra.mxu0 0.0
    %2991 = vmatprep.subr.mxu0 0.0
    %2992 = vmatpush1.msra.mxu0 0.0
    %2993 = vmatprep.subr.mxu0 0.0
    %2994 = vmatpush1.msra.mxu0 0.0
    %2995 = vmatprep.subr.mxu0 0.0
    %2996 = vmatpush1.msra.mxu0 0.0
    %2997 = vmatprep.subr.mxu0 0.0
    %2998 = vmatpush1.msra.mxu0 0.0
    %2999 = vmatprep.subr.mxu0 0.0
    %3000 = vmatpush1.msra.mxu0 0.0
    %3001 = vmatprep.subr.mxu0 0.0
    %3002 = vmatpush1.msra.mxu0 0.0
    %3003 = vmatprep.subr.mxu0 0.0
    %3004 = vmatpush1.msra.mxu0 0.0
    %3005 = vmatprep.subr.mxu0 0.0
    %3006 = vmatpush1.msra.mxu0 %v2798
    %3007 = vmatprep.subr.mxu0 0.0
    %3008 = vmatpush2.msra.mxu0 0.0
    %3009 = vmatprep.subr.mxu0 0.0
    %3010 = vmatpush2.msra.mxu0 0.0
    %3011 = vmatprep.subr.mxu0 0.0
    %3012 = vmatpush2.msra.mxu0 0.0
    %3013 = vmatprep.subr.mxu0 0.0
    %3014 = vmatpush2.msra.mxu0 0.0
    %3015 = vmatprep.subr.mxu0 0.0
    %3016 = vmatpush2.msra.mxu0 0.0
    %3017 = vmatprep.subr.mxu0 0.0
    %3018 = vmatpush2.msra.mxu0 0.0
    %3019 = vmatprep.subr.mxu0 0.0
    %3020 = vmatpush2.msra.mxu0 0.0
    %3021 = vmatprep.subr.mxu0 0.0
    %3022 = vmatpush2.msra.mxu0 0.0
    %3023 = vmatprep.subr.mxu0 0.0
    %3024 = vmatpush2.msra.mxu0 0.0
    %3025 = vmatprep.subr.mxu0 0.0
    %3026 = vmatpush2.msra.mxu0 0.0
    %3027 = vmatprep.subr.mxu0 0.0
    %3028 = vmatpush2.msra.mxu0 0.0
    %3029 = vmatprep.subr.mxu0 0.0
    %3030 = vmatpush2.msra.mxu0 0.0
    %3031 = vmatprep.subr.mxu0 0.0
    %3032 = vmatpush2.msra.mxu0 0.0
    %3033 = vmatprep.subr.mxu0 0.0
    %3034 = vmatpush2.msra.mxu0 0.0
    %3035 = vmatprep.subr.mxu0 0.0
    %3036 = vmatpush2.msra.mxu0 0.0
    %3037 = vmatprep.subr.mxu0 0.0
    %3038 = vmatpush2.msra.mxu0 0.0
    %3039 = vmatprep.mubr.f32.mxu0 0.0
    %3040 = vmatmul.mubr.f32.gmra.mxu0 %v2973
    %v3041 = vpop.f32.mrf.mxu0
    %v3042 = vadd.f32 0.0, %v3041
    %v3043 = vpop.f32.mrf.mxu0
    %3044 = vdwg.mxu0
    %v3047 = vsel %vm52, %v2970, 0
    %3049 = vmatprep.subr.mxu0 0.0
    %3050 = vmatpush1.msra.mxu0 0.0
    %3051 = vmatprep.subr.mxu0 0.0
    %3052 = vmatpush1.msra.mxu0 0.0
    %3053 = vmatprep.subr.mxu0 0.0
    %3054 = vmatpush1.msra.mxu0 0.0
    %3055 = vmatprep.subr.mxu0 0.0
    %3056 = vmatpush1.msra.mxu0 0.0
    %3057 = vmatprep.subr.mxu0 0.0
    %3058 = vmatpush1.msra.mxu0 0.0
    %3059 = vmatprep.subr.mxu0 0.0
    %3060 = vmatpush1.msra.mxu0 0.0
    %3061 = vmatprep.subr.mxu0 0.0
    %3062 = vmatpush1.msra.mxu0 0.0
    %3063 = vmatprep.subr.mxu0 0.0
    %3064 = vmatpush1.msra.mxu0 0.0
    %3065 = vmatprep.subr.mxu0 0.0
    %3066 = vmatpush1.msra.mxu0 0.0
    %3067 = vmatprep.subr.mxu0 0.0
    %3068 = vmatpush1.msra.mxu0 0.0
    %3069 = vmatprep.subr.mxu0 0.0
    %3070 = vmatpush1.msra.mxu0 0.0
    %3071 = vmatprep.subr.mxu0 0.0
    %3072 = vmatpush1.msra.mxu0 0.0
    %3073 = vmatprep.subr.mxu0 0.0
    %3074 = vmatpush1.msra.mxu0 0.0
    %3075 = vmatprep.subr.mxu0 0.0
    %3076 = vmatpush1.msra.mxu0 0.0
    %3077 = vmatprep.subr.mxu0 0.0
    %3078 = vmatpush1.msra.mxu0 0.0
    %3079 = vmatprep.subr.mxu0 0.0
    %3080 = vmatpush1.msra.mxu0 %v2872
    %3081 = vmatprep.subr.mxu0 0.0
    %3082 = vmatpush2.msra.mxu0 0.0
    %3083 = vmatprep.subr.mxu0 0.0
    %3084 = vmatpush2.msra.mxu0 0.0
    %3085 = vmatprep.subr.mxu0 0.0
    %3086 = vmatpush2.msra.mxu0 0.0
    %3087 = vmatprep.subr.mxu0 0.0
    %3088 = vmatpush2.msra.mxu0 0.0
    %3089 = vmatprep.subr.mxu0 0.0
    %3090 = vmatpush2.msra.mxu0 0.0
    %3091 = vmatprep.subr.mxu0 0.0
    %3092 = vmatpush2.msra.mxu0 0.0
    %3093 = vmatprep.subr.mxu0 0.0
    %3094 = vmatpush2.msra.mxu0 0.0
    %3095 = vmatprep.subr.mxu0 0.0
    %3096 = vmatpush2.msra.mxu0 0.0
    %3097 = vmatprep.subr.mxu0 0.0
    %3098 = vmatpush2.msra.mxu0 0.0
    %3099 = vmatprep.subr.mxu0 0.0
    %3100 = vmatpush2.msra.mxu0 0.0
    %3101 = vmatprep.subr.mxu0 0.0
    %3102 = vmatpush2.msra.mxu0 0.0
    %3103 = vmatprep.subr.mxu0 0.0
    %3104 = vmatpush2.msra.mxu0 0.0
    %3105 = vmatprep.subr.mxu0 0.0
    %3106 = vmatpush2.msra.mxu0 0.0
    %3107 = vmatprep.subr.mxu0 0.0
    %3108 = vmatpush2.msra.mxu0 0.0
    %3109 = vmatprep.subr.mxu0 0.0
    %3110 = vmatpush2.msra.mxu0 0.0
    %3111 = vmatprep.subr.mxu0 0.0
    %3112 = vmatpush2.msra.mxu0 0.0
    %3113 = vmatprep.mubr.f32.mxu0 0.0
    %3114 = vmatmul.mubr.f32.gmra.mxu0 %v3047
    %v3115 = vpop.f32.mrf.mxu0
    %v3116 = vadd.f32 0.0, %v3115
    %v3117 = vpop.f32.mrf.mxu0
    %3118 = vdwg.mxu0
    %3119 = vrot.lane.b32.xlu0 %v2149, 104
    %v3120 = vpop.permute.xlu0 %3119
    %v3121 = vsel %vm52, %v3120, 0
    %3123 = vmatprep.subr.mxu0 0.0
    %3124 = vmatpush1.xpose.msra.mxu0 0.0
    %3125 = vmatprep.subr.mxu0 0.0
    %3126 = vmatpush1.xpose.msra.mxu0 0.0
    %3127 = vmatprep.subr.mxu0 0.0
    %3128 = vmatpush1.xpose.msra.mxu0 0.0
    %3129 = vmatprep.subr.mxu0 0.0
    %3130 = vmatpush1.xpose.msra.mxu0 0.0
    %3131 = vmatprep.subr.mxu0 0.0
    %3132 = vmatpush1.xpose.msra.mxu0 0.0
    %3133 = vmatprep.subr.mxu0 0.0
    %3134 = vmatpush1.xpose.msra.mxu0 0.0
    %3135 = vmatprep.subr.mxu0 0.0
    %3136 = vmatpush1.xpose.msra.mxu0 0.0
    %3137 = vmatprep.subr.mxu0 0.0
    %3138 = vmatpush1.xpose.msra.mxu0 0.0
    %3139 = vmatprep.subr.mxu0 0.0
    %3140 = vmatpush1.xpose.msra.mxu0 0.0
    %3141 = vmatprep.subr.mxu0 0.0
    %3142 = vmatpush1.xpose.msra.mxu0 0.0
    %3143 = vmatprep.subr.mxu0 0.0
    %3144 = vmatpush1.xpose.msra.mxu0 0.0
    %3145 = vmatprep.subr.mxu0 0.0
    %3146 = vmatpush1.xpose.msra.mxu0 0.0
    %3147 = vmatprep.subr.mxu0 0.0
    %3148 = vmatpush1.xpose.msra.mxu0 0.0
    %3149 = vmatprep.subr.mxu0 0.0
    %3150 = vmatpush1.xpose.msra.mxu0 0.0
    %3151 = vmatprep.subr.mxu0 0.0
    %3152 = vmatpush1.xpose.msra.mxu0 0.0
    %3153 = vmatprep.subr.mxu0 0.0
    %3154 = vmatpush1.xpose.msra.mxu0 %v3121
    %3155 = vmatprep.subr.mxu0 0.0
    %3156 = vmatpush2.xpose.msra.mxu0 0.0
    %3157 = vmatprep.subr.mxu0 0.0
    %3158 = vmatpush2.xpose.msra.mxu0 0.0
    %3159 = vmatprep.subr.mxu0 0.0
    %3160 = vmatpush2.xpose.msra.mxu0 0.0
    %3161 = vmatprep.subr.mxu0 0.0
    %3162 = vmatpush2.xpose.msra.mxu0 0.0
    %3163 = vmatprep.subr.mxu0 0.0
    %3164 = vmatpush2.xpose.msra.mxu0 0.0
    %3165 = vmatprep.subr.mxu0 0.0
    %3166 = vmatpush2.xpose.msra.mxu0 0.0
    %3167 = vmatprep.subr.mxu0 0.0
    %3168 = vmatpush2.xpose.msra.mxu0 0.0
    %3169 = vmatprep.subr.mxu0 0.0
    %3170 = vmatpush2.xpose.msra.mxu0 0.0
    %3171 = vmatprep.subr.mxu0 0.0
    %3172 = vmatpush2.xpose.msra.mxu0 0.0
    %3173 = vmatprep.subr.mxu0 0.0
    %3174 = vmatpush2.xpose.msra.mxu0 0.0
    %3175 = vmatprep.subr.mxu0 0.0
    %3176 = vmatpush2.xpose.msra.mxu0 0.0
    %3177 = vmatprep.subr.mxu0 0.0
    %3178 = vmatpush2.xpose.msra.mxu0 0.0
    %3179 = vmatprep.subr.mxu0 0.0
    %3180 = vmatpush2.xpose.msra.mxu0 0.0
    %3181 = vmatprep.subr.mxu0 0.0
    %3182 = vmatpush2.xpose.msra.mxu0 0.0
    %3183 = vmatprep.subr.mxu0 0.0
    %3184 = vmatpush2.xpose.msra.mxu0 0.0
    %3185 = vmatprep.subr.mxu0 0.0
    %3186 = vmatpush2.xpose.msra.mxu0 0.0
    %3187 = vmatprep.mubr.f32.mxu0 0.0
    %3188 = vmatmul.mubr.f32.gmra.mxu0 %v3121
    %v3189 = vpop.f32.mrf.mxu0
    %v3190 = vadd.f32 0.0, %v3189
    %v3191 = vpop.f32.mrf.mxu0
    %3192 = vdwg.mxu0
    %3193 = vrot.lane.b32.xlu0 %v2154, 104
    %v3194 = vpop.permute.xlu0 %3193
    %v3195 = vsel %vm52, %v3194, 0
    %3197 = vmatprep.subr.mxu0 0.0
    %3198 = vmatpush1.xpose.msra.mxu0 0.0
    %3199 = vmatprep.subr.mxu0 0.0
    %3200 = vmatpush1.xpose.msra.mxu0 0.0
    %3201 = vmatprep.subr.mxu0 0.0
    %3202 = vmatpush1.xpose.msra.mxu0 0.0
    %3203 = vmatprep.subr.mxu0 0.0
    %3204 = vmatpush1.xpose.msra.mxu0 0.0
    %3205 = vmatprep.subr.mxu0 0.0
    %3206 = vmatpush1.xpose.msra.mxu0 0.0
    %3207 = vmatprep.subr.mxu0 0.0
    %3208 = vmatpush1.xpose.msra.mxu0 0.0
    %3209 = vmatprep.subr.mxu0 0.0
    %3210 = vmatpush1.xpose.msra.mxu0 0.0
    %3211 = vmatprep.subr.mxu0 0.0
    %3212 = vmatpush1.xpose.msra.mxu0 0.0
    %3213 = vmatprep.subr.mxu0 0.0
    %3214 = vmatpush1.xpose.msra.mxu0 0.0
    %3215 = vmatprep.subr.mxu0 0.0
    %3216 = vmatpush1.xpose.msra.mxu0 0.0
    %3217 = vmatprep.subr.mxu0 0.0
    %3218 = vmatpush1.xpose.msra.mxu0 0.0
    %3219 = vmatprep.subr.mxu0 0.0
    %3220 = vmatpush1.xpose.msra.mxu0 0.0
    %3221 = vmatprep.subr.mxu0 0.0
    %3222 = vmatpush1.xpose.msra.mxu0 0.0
    %3223 = vmatprep.subr.mxu0 0.0
    %3224 = vmatpush1.xpose.msra.mxu0 0.0
    %3225 = vmatprep.subr.mxu0 0.0
    %3226 = vmatpush1.xpose.msra.mxu0 0.0
    %3227 = vmatprep.subr.mxu0 0.0
    %3228 = vmatpush1.xpose.msra.mxu0 %v3195
    %3229 = vmatprep.subr.mxu0 0.0
    %3230 = vmatpush2.xpose.msra.mxu0 0.0
    %3231 = vmatprep.subr.mxu0 0.0
    %3232 = vmatpush2.xpose.msra.mxu0 0.0
    %3233 = vmatprep.subr.mxu0 0.0
    %3234 = vmatpush2.xpose.msra.mxu0 0.0
    %3235 = vmatprep.subr.mxu0 0.0
    %3236 = vmatpush2.xpose.msra.mxu0 0.0
    %3237 = vmatprep.subr.mxu0 0.0
    %3238 = vmatpush2.xpose.msra.mxu0 0.0
    %3239 = vmatprep.subr.mxu0 0.0
    %3240 = vmatpush2.xpose.msra.mxu0 0.0
    %3241 = vmatprep.subr.mxu0 0.0
    %3242 = vmatpush2.xpose.msra.mxu0 0.0
    %3243 = vmatprep.subr.mxu0 0.0
    %3244 = vmatpush2.xpose.msra.mxu0 0.0
    %3245 = vmatprep.subr.mxu0 0.0
    %3246 = vmatpush2.xpose.msra.mxu0 0.0
    %3247 = vmatprep.subr.mxu0 0.0
    %3248 = vmatpush2.xpose.msra.mxu0 0.0
    %3249 = vmatprep.subr.mxu0 0.0
    %3250 = vmatpush2.xpose.msra.mxu0 0.0
    %3251 = vmatprep.subr.mxu0 0.0
    %3252 = vmatpush2.xpose.msra.mxu0 0.0
    %3253 = vmatprep.subr.mxu0 0.0
    %3254 = vmatpush2.xpose.msra.mxu0 0.0
    %3255 = vmatprep.subr.mxu0 0.0
    %3256 = vmatpush2.xpose.msra.mxu0 0.0
    %3257 = vmatprep.subr.mxu0 0.0
    %3258 = vmatpush2.xpose.msra.mxu0 0.0
    %3259 = vmatprep.subr.mxu0 0.0
    %3260 = vmatpush2.xpose.msra.mxu0 0.0
    %3261 = vmatprep.mubr.f32.mxu0 0.0
    %3262 = vmatmul.mubr.f32.gmra.mxu0 %v3195
    %v3263 = vpop.f32.mrf.mxu0
    %v3264 = vadd.f32 0.0, %v3263
    %v3265 = vpop.f32.mrf.mxu0
    %3266 = vdwg.mxu0
    %v3267 = vmul.f32 %v3190, 0.35355338
    %v3268 = vmul.f32 %v3264, 0.35355338
    %v3269 = vsel %vm52, %v3267, -inf
    %3270 = vmax.xlane.f32.xlu0 %v3269
    %v3271 = vpop.xlane.xlu0 %3270
    %v3272 = vsel %vm52, %v3268, -inf
    %3273 = vmax.xlane.f32.xlu0 %v3272
    %v3274 = vpop.xlane.xlu0 %3273
    %v3275 = vsub.f32 %v3267, %v3271
    %v3276 = vsub.f32 %v3268, %v3274
    %v3277 = vmul.f32 %v3275, 1.442695
    %v3278 = vpow.pop %v3277
    %v3279 = vmul.f32 %v3276, 1.442695
    %v3280 = vpow.pop %v3279
    %v3281 = vsel %vm52, %v3278, 0.0
    %3282 = vadd.xlane.f32.xlu0 %v3281
    %v3283 = vpop.xlane.xlu0 %3282
    %v3284 = vsel %vm52, %v3280, 0.0
    %3285 = vadd.xlane.f32.xlu0 %v3284
    %v3286 = vpop.xlane.xlu0 %3285
    %v3287 = vrcp.pop %v3283
    %v3288 = vrcp.pop %v3286
    %v3289 = vmul.f32 %v3278, %v3287
    %v3290 = vmul.f32 %v3280, %v3288
    %v3291 = vmul.f32 %v3289, %v262
    %v3292 = vmul.f32 %v3290, %v263
    %v3295 = vsel %vm52, %v3291, 0
    %3297 = vmatprep.subr.mxu0 0.0
    %3298 = vmatpush1.msra.mxu0 0.0
    %3299 = vmatprep.subr.mxu0 0.0
    %3300 = vmatpush1.msra.mxu0 0.0
    %3301 = vmatprep.subr.mxu0 0.0
    %3302 = vmatpush1.msra.mxu0 0.0
    %3303 = vmatprep.subr.mxu0 0.0
    %3304 = vmatpush1.msra.mxu0 0.0
    %3305 = vmatprep.subr.mxu0 0.0
    %3306 = vmatpush1.msra.mxu0 0.0
    %3307 = vmatprep.subr.mxu0 0.0
    %3308 = vmatpush1.msra.mxu0 0.0
    %3309 = vmatprep.subr.mxu0 0.0
    %3310 = vmatpush1.msra.mxu0 0.0
    %3311 = vmatprep.subr.mxu0 0.0
    %3312 = vmatpush1.msra.mxu0 0.0
    %3313 = vmatprep.subr.mxu0 0.0
    %3314 = vmatpush1.msra.mxu0 0.0
    %3315 = vmatprep.subr.mxu0 0.0
    %3316 = vmatpush1.msra.mxu0 0.0
    %3317 = vmatprep.subr.mxu0 0.0
    %3318 = vmatpush1.msra.mxu0 0.0
    %3319 = vmatprep.subr.mxu0 0.0
    %3320 = vmatpush1.msra.mxu0 0.0
    %3321 = vmatprep.subr.mxu0 0.0
    %3322 = vmatpush1.msra.mxu0 0.0
    %3323 = vmatprep.subr.mxu0 0.0
    %3324 = vmatpush1.msra.mxu0 0.0
    %3325 = vmatprep.subr.mxu0 0.0
    %3326 = vmatpush1.msra.mxu0 0.0
    %3327 = vmatprep.subr.mxu0 0.0
    %3328 = vmatpush1.msra.mxu0 %v3120
    %3329 = vmatprep.subr.mxu0 0.0
    %3330 = vmatpush2.msra.mxu0 0.0
    %3331 = vmatprep.subr.mxu0 0.0
    %3332 = vmatpush2.msra.mxu0 0.0
    %3333 = vmatprep.subr.mxu0 0.0
    %3334 = vmatpush2.msra.mxu0 0.0
    %3335 = vmatprep.subr.mxu0 0.0
    %3336 = vmatpush2.msra.mxu0 0.0
    %3337 = vmatprep.subr.mxu0 0.0
    %3338 = vmatpush2.msra.mxu0 0.0
    %3339 = vmatprep.subr.mxu0 0.0
    %3340 = vmatpush2.msra.mxu0 0.0
    %3341 = vmatprep.subr.mxu0 0.0
    %3342 = vmatpush2.msra.mxu0 0.0
    %3343 = vmatprep.subr.mxu0 0.0
    %3344 = vmatpush2.msra.mxu0 0.0
    %3345 = vmatprep.subr.mxu0 0.0
    %3346 = vmatpush2.msra.mxu0 0.0
    %3347 = vmatprep.subr.mxu0 0.0
    %3348 = vmatpush2.msra.mxu0 0.0
    %3349 = vmatprep.subr.mxu0 0.0
    %3350 = vmatpush2.msra.mxu0 0.0
    %3351 = vmatprep.subr.mxu0 0.0
    %3352 = vmatpush2.msra.mxu0 0.0
    %3353 = vmatprep.subr.mxu0 0.0
    %3354 = vmatpush2.msra.mxu0 0.0
    %3355 = vmatprep.subr.mxu0 0.0
    %3356 = vmatpush2.msra.mxu0 0.0
    %3357 = vmatprep.subr.mxu0 0.0
    %3358 = vmatpush2.msra.mxu0 0.0
    %3359 = vmatprep.subr.mxu0 0.0
    %3360 = vmatpush2.msra.mxu0 0.0
    %3361 = vmatprep.mubr.f32.mxu0 0.0
    %3362 = vmatmul.mubr.f32.gmra.mxu0 %v3295
    %v3363 = vpop.f32.mrf.mxu0
    %v3364 = vadd.f32 0.0, %v3363
    %v3365 = vpop.f32.mrf.mxu0
    %3366 = vdwg.mxu0
    %v3369 = vsel %vm52, %v3292, 0
    %3371 = vmatprep.subr.mxu0 0.0
    %3372 = vmatpush1.msra.mxu0 0.0
    %3373 = vmatprep.subr.mxu0 0.0
    %3374 = vmatpush1.msra.mxu0 0.0
    %3375 = vmatprep.subr.mxu0 0.0
    %3376 = vmatpush1.msra.mxu0 0.0
    %3377 = vmatprep.subr.mxu0 0.0
    %3378 = vmatpush1.msra.mxu0 0.0
    %3379 = vmatprep.subr.mxu0 0.0
    %3380 = vmatpush1.msra.mxu0 0.0
    %3381 = vmatprep.subr.mxu0 0.0
    %3382 = vmatpush1.msra.mxu0 0.0
    %3383 = vmatprep.subr.mxu0 0.0
    %3384 = vmatpush1.msra.mxu0 0.0
    %3385 = vmatprep.subr.mxu0 0.0
    %3386 = vmatpush1.msra.mxu0 0.0
    %3387 = vmatprep.subr.mxu0 0.0
    %3388 = vmatpush1.msra.mxu0 0.0
    %3389 = vmatprep.subr.mxu0 0.0
    %3390 = vmatpush1.msra.mxu0 0.0
    %3391 = vmatprep.subr.mxu0 0.0
    %3392 = vmatpush1.msra.mxu0 0.0
    %3393 = vmatprep.subr.mxu0 0.0
    %3394 = vmatpush1.msra.mxu0 0.0
    %3395 = vmatprep.subr.mxu0 0.0
    %3396 = vmatpush1.msra.mxu0 0.0
    %3397 = vmatprep.subr.mxu0 0.0
    %3398 = vmatpush1.msra.mxu0 0.0
    %3399 = vmatprep.subr.mxu0 0.0
    %3400 = vmatpush1.msra.mxu0 0.0
    %3401 = vmatprep.subr.mxu0 0.0
    %3402 = vmatpush1.msra.mxu0 %v3194
    %3403 = vmatprep.subr.mxu0 0.0
    %3404 = vmatpush2.msra.mxu0 0.0
    %3405 = vmatprep.subr.mxu0 0.0
    %3406 = vmatpush2.msra.mxu0 0.0
    %3407 = vmatprep.subr.mxu0 0.0
    %3408 = vmatpush2.msra.mxu0 0.0
    %3409 = vmatprep.subr.mxu0 0.0
    %3410 = vmatpush2.msra.mxu0 0.0
    %3411 = vmatprep.subr.mxu0 0.0
    %3412 = vmatpush2.msra.mxu0 0.0
    %3413 = vmatprep.subr.mxu0 0.0
    %3414 = vmatpush2.msra.mxu0 0.0
    %3415 = vmatprep.subr.mxu0 0.0
    %3416 = vmatpush2.msra.mxu0 0.0
    %3417 = vmatprep.subr.mxu0 0.0
    %3418 = vmatpush2.msra.mxu0 0.0
    %3419 = vmatprep.subr.mxu0 0.0
    %3420 = vmatpush2.msra.mxu0 0.0
    %3421 = vmatprep.subr.mxu0 0.0
    %3422 = vmatpush2.msra.mxu0 0.0
    %3423 = vmatprep.subr.mxu0 0.0
    %3424 = vmatpush2.msra.mxu0 0.0
    %3425 = vmatprep.subr.mxu0 0.0
    %3426 = vmatpush2.msra.mxu0 0.0
    %3427 = vmatprep.subr.mxu0 0.0
    %3428 = vmatpush2.msra.mxu0 0.0
    %3429 = vmatprep.subr.mxu0 0.0
    %3430 = vmatpush2.msra.mxu0 0.0
    %3431 = vmatprep.subr.mxu0 0.0
    %3432 = vmatpush2.msra.mxu0 0.0
    %3433 = vmatprep.subr.mxu0 0.0
    %3434 = vmatpush2.msra.mxu0 0.0
    %3435 = vmatprep.mubr.f32.mxu0 0.0
    %3436 = vmatmul.mubr.f32.gmra.mxu0 %v3369
    %v3437 = vpop.f32.mrf.mxu0
    %v3438 = vadd.f32 0.0, %v3437
    %v3439 = vpop.f32.mrf.mxu0
    %3440 = vdwg.mxu0
    %3443 = vrot.lane.b32.xlu0 %v2720, 8
    %v3444 = vpop.permute.xlu0 %3443
    %3445 = vrot.lane.b32.xlu0 %v2794, 8
    %v3446 = vpop.permute.xlu0 %3445
    %3451 = vrot.lane.b32.xlu0 %v3042, 16
    %v3452 = vpop.permute.xlu0 %3451
    %3453 = vrot.lane.b32.xlu0 %v3116, 16
    %v3454 = vpop.permute.xlu0 %3453
    %3459 = vrot.lane.b32.xlu0 %v3364, 24
    %v3460 = vpop.permute.xlu0 %3459
    %3461 = vrot.lane.b32.xlu0 %v3438, 24
    %v3462 = vpop.permute.xlu0 %3461
    %v3465 = vsel %vm52, %v2399, %v3444
    %v3466 = vsel %vm52, %v2472, %v3446
    %v3467 = vsel %vm1714, %v3465, %v3452
    %v3468 = vsel %vm1714, %v3466, %v3454
    %v3469 = vsel %vm1717, %v3467, %v3460
    %v3470 = vsel %vm1717, %v3468, %v3462
    %v3471 = vlaneseq
    %v3472 = vshrl.u32 %v3471, 7
    %v3473 = vsub.s32 0, %v3472
    %v3474 = vrot.slane %v2019, %v3473
    %v3476 = vsel %vm222, %v3469, 0
    %v3479 = vsel %vm222, %v3470, 0
    %3481 = vmatprep.subr.mxu0 0.0
    %3482 = vmatpush1.msra.mxu0 0.0
    %3483 = vmatprep.subr.mxu0 0.0
    %3484 = vmatpush1.msra.mxu0 0.0
    %3485 = vmatprep.subr.mxu0 0.0
    %3486 = vmatpush1.msra.mxu0 0.0
    %3487 = vmatprep.subr.mxu0 0.0
    %3488 = vmatpush1.msra.mxu0 0.0
    %3489 = vmatprep.subr.mxu0 0.0
    %3490 = vmatpush1.msra.mxu0 0.0
    %3491 = vmatprep.subr.mxu0 0.0
    %3492 = vmatpush1.msra.mxu0 0.0
    %3493 = vmatprep.subr.mxu0 0.0
    %3494 = vmatpush1.msra.mxu0 0.0
    %3495 = vmatprep.subr.mxu0 0.0
    %3496 = vmatpush1.msra.mxu0 0.0
    %3497 = vmatprep.subr.mxu0 0.0
    %3498 = vmatpush1.msra.mxu0 0.0
    %3499 = vmatprep.subr.mxu0 0.0
    %3500 = vmatpush1.msra.mxu0 0.0
    %3501 = vmatprep.subr.mxu0 0.0
    %3502 = vmatpush1.msra.mxu0 0.0
    %3503 = vmatprep.subr.mxu0 0.0
    %3504 = vmatpush1.msra.mxu0 0.0
    %3505 = vmatprep.subr.mxu0 0.0
    %3506 = vmatpush1.msra.mxu0 %v2029
    %3507 = vmatprep.subr.mxu0 0.0
    %3508 = vmatpush1.msra.mxu0 %v2028
    %3509 = vmatprep.subr.mxu0 0.0
    %3510 = vmatpush1.msra.mxu0 %v2027
    %3511 = vmatprep.subr.mxu0 0.0
    %3512 = vmatpush1.msra.mxu0 %v2026
    %3513 = vmatprep.subr.mxu0 0.0
    %3514 = vmatpush2.msra.mxu0 0.0
    %3515 = vmatprep.subr.mxu0 0.0
    %3516 = vmatpush2.msra.mxu0 0.0
    %3517 = vmatprep.subr.mxu0 0.0
    %3518 = vmatpush2.msra.mxu0 0.0
    %3519 = vmatprep.subr.mxu0 0.0
    %3520 = vmatpush2.msra.mxu0 0.0
    %3521 = vmatprep.subr.mxu0 0.0
    %3522 = vmatpush2.msra.mxu0 0.0
    %3523 = vmatprep.subr.mxu0 0.0
    %3524 = vmatpush2.msra.mxu0 0.0
    %3525 = vmatprep.subr.mxu0 0.0
    %3526 = vmatpush2.msra.mxu0 0.0
    %3527 = vmatprep.subr.mxu0 0.0
    %3528 = vmatpush2.msra.mxu0 0.0
    %3529 = vmatprep.subr.mxu0 0.0
    %3530 = vmatpush2.msra.mxu0 0.0
    %3531 = vmatprep.subr.mxu0 0.0
    %3532 = vmatpush2.msra.mxu0 0.0
    %3533 = vmatprep.subr.mxu0 0.0
    %3534 = vmatpush2.msra.mxu0 0.0
    %3535 = vmatprep.subr.mxu0 0.0
    %3536 = vmatpush2.msra.mxu0 0.0
    %3537 = vmatprep.subr.mxu0 0.0
    %3538 = vmatpush2.msra.mxu0 0.0
    %3539 = vmatprep.subr.mxu0 0.0
    %3540 = vmatpush2.msra.mxu0 0.0
    %3541 = vmatprep.subr.mxu0 0.0
    %3542 = vmatpush2.msra.mxu0 0.0
    %3543 = vmatprep.subr.mxu0 0.0
    %3544 = vmatpush2.msra.mxu0 0.0
    %3545 = vmatprep.mubr.f32.mxu0 0.0
    %3546 = vmatmul.mubr.f32.gmra.mxu0 %v3476
    %v3547 = vpop.f32.mrf.mxu0
    %v3548 = vadd.f32 %v3474, %v3547
    %v3549 = vpop.f32.mrf.mxu0
    %3550 = vmatprep.mubr.f32.mxu0 0.0
    %3551 = vmatmul.mubr.f32.gmra.mxu0 %v3479
    %v3552 = vpop.f32.mrf.mxu0
    %v3553 = vadd.f32 %v3474, %v3552
    %v3554 = vpop.f32.mrf.mxu0
    %3555 = vdwg.mxu0
    %v3556 = vadd.f32 %v3548, %v2015
    %v3557 = vadd.f32 %v3553, %v2016
    %v3558 = vsel %vm222, %v3556, 0.0
    %3559 = vadd.xlane.f32.xlu0 %v3558
    %v3560 = vpop.xlane.xlu0 %3559
    %v3561 = vsel %vm222, %v3557, 0.0
    %3562 = vadd.xlane.f32.xlu0 %v3561
    %v3563 = vpop.xlane.xlu0 %3562
    %v3564 = vmul.f32 %v3560, %v229
    %v3565 = vmul.f32 %v3563, %v229
    %v3566 = vsub.f32 %v3556, %v3564
    %v3567 = vsub.f32 %v3557, %v3565
    %v3568 = vmul.f32 %v3566, %v3566
    %v3569 = vmul.f32 %v3567, %v3567
    %v3570 = vsel %vm222, %v3568, 0.0
    %3571 = vadd.xlane.f32.xlu0 %v3570
    %v3572 = vpop.xlane.xlu0 %3571
    %v3573 = vsel %vm222, %v3569, 0.0
    %3574 = vadd.xlane.f32.xlu0 %v3573
    %v3575 = vpop.xlane.xlu0 %3574
    %v3576 = vmul.f32 %v3572, %v229
    %v3577 = vmul.f32 %v3575, %v229
    %v3578 = vadd.f32 %v3576, 1e-05
    %v3579 = vadd.f32 %v3577, 1e-05
    %v3580 = vrsqrt.pop %v3578
    %v3581 = vrsqrt.pop %v3579
    %v3582 = vmul.f32 %v3566, %v3580
    %v3583 = vmul.f32 %v3567, %v3581
    %v3584 = vlaneseq
    %v3585 = vshrl.u32 %v3584, 7
    %v3586 = vsub.s32 0, %v3585
    %v3587 = vrot.slane %v2020, %v3586
    %v3588 = vmul.f32 %v3582, %v3587
    %v3589 = vmul.f32 %v3583, %v3587
    %v3590 = vlaneseq
    %v3591 = vshrl.u32 %v3590, 7
    %v3592 = vsub.s32 0, %v3591
    %v3593 = vrot.slane %v2021, %v3592
    %v3594 = vadd.f32 %v3588, %v3593
    %v3595 = vadd.f32 %v3589, %v3593
    %v3597 = vsel %vm222, %v3594, 0
    %v3600 = vsel %vm222, %v3595, 0
    %3602 = vmatprep.subr.mxu0 0.0
    %3603 = vmatpush1.msra.mxu0 0.0
    %3604 = vmatprep.subr.mxu0 0.0
    %3605 = vmatpush1.msra.mxu0 0.0
    %3606 = vmatprep.subr.mxu0 0.0
    %3607 = vmatpush1.msra.mxu0 0.0
    %3608 = vmatprep.subr.mxu0 0.0
    %3609 = vmatpush1.msra.mxu0 0.0
    %3610 = vmatprep.subr.mxu0 0.0
    %3611 = vmatpush1.msra.mxu0 0.0
    %3612 = vmatprep.subr.mxu0 0.0
    %3613 = vmatpush1.msra.mxu0 0.0
    %3614 = vmatprep.subr.mxu0 0.0
    %3615 = vmatpush1.msra.mxu0 0.0
    %3616 = vmatprep.subr.mxu0 0.0
    %3617 = vmatpush1.msra.mxu0 0.0
    %3618 = vmatprep.subr.mxu0 0.0
    %3619 = vmatpush1.msra.mxu0 0.0
    %3620 = vmatprep.subr.mxu0 0.0
    %3621 = vmatpush1.msra.mxu0 0.0
    %3622 = vmatprep.subr.mxu0 0.0
    %3623 = vmatpush1.msra.mxu0 0.0
    %3624 = vmatprep.subr.mxu0 0.0
    %3625 = vmatpush1.msra.mxu0 0.0
    %3626 = vmatprep.subr.mxu0 0.0
    %3627 = vmatpush1.msra.mxu0 %v2033
    %3628 = vmatprep.subr.mxu0 0.0
    %3629 = vmatpush1.msra.mxu0 %v2032
    %3630 = vmatprep.subr.mxu0 0.0
    %3631 = vmatpush1.msra.mxu0 %v2031
    %3632 = vmatprep.subr.mxu0 0.0
    %3633 = vmatpush1.msra.mxu0 %v2030
    %3634 = vmatprep.subr.mxu0 0.0
    %3635 = vmatpush2.msra.mxu0 0.0
    %3636 = vmatprep.subr.mxu0 0.0
    %3637 = vmatpush2.msra.mxu0 0.0
    %3638 = vmatprep.subr.mxu0 0.0
    %3639 = vmatpush2.msra.mxu0 0.0
    %3640 = vmatprep.subr.mxu0 0.0
    %3641 = vmatpush2.msra.mxu0 0.0
    %3642 = vmatprep.subr.mxu0 0.0
    %3643 = vmatpush2.msra.mxu0 0.0
    %3644 = vmatprep.subr.mxu0 0.0
    %3645 = vmatpush2.msra.mxu0 0.0
    %3646 = vmatprep.subr.mxu0 0.0
    %3647 = vmatpush2.msra.mxu0 0.0
    %3648 = vmatprep.subr.mxu0 0.0
    %3649 = vmatpush2.msra.mxu0 0.0
    %3650 = vmatprep.subr.mxu0 0.0
    %3651 = vmatpush2.msra.mxu0 0.0
    %3652 = vmatprep.subr.mxu0 0.0
    %3653 = vmatpush2.msra.mxu0 0.0
    %3654 = vmatprep.subr.mxu0 0.0
    %3655 = vmatpush2.msra.mxu0 0.0
    %3656 = vmatprep.subr.mxu0 0.0
    %3657 = vmatpush2.msra.mxu0 0.0
    %3658 = vmatprep.subr.mxu0 0.0
    %3659 = vmatpush2.msra.mxu0 0.0
    %3660 = vmatprep.subr.mxu0 0.0
    %3661 = vmatpush2.msra.mxu0 0.0
    %3662 = vmatprep.subr.mxu0 0.0
    %3663 = vmatpush2.msra.mxu0 0.0
    %3664 = vmatprep.subr.mxu0 0.0
    %3665 = vmatpush2.msra.mxu0 0.0
    %3666 = vmatprep.mubr.f32.mxu0 0.0
    %3667 = vmatmul.mubr.f32.gmra.mxu0 %v3597
    %v3668 = vpop.f32.mrf.mxu0
    %v3669 = vadd.f32 0.0, %v3668
    %v3670 = vpop.f32.mrf.mxu0
    %3671 = vmatprep.mubr.f32.mxu0 0.0
    %3672 = vmatmul.mubr.f32.gmra.mxu0 %v3600
    %v3673 = vpop.f32.mrf.mxu0
    %v3674 = vadd.f32 0.0, %v3673
    %v3675 = vpop.f32.mrf.mxu0
    %3676 = vdwg.mxu0
    %v3677 = vsub.f32 %v3594, %v3669
    %v3678 = vsub.f32 %v3595, %v3674
    %v3680 = vsel %vm222, %v3677, 0
    %v3683 = vsel %vm222, %v3678, 0
    %3685 = vmatprep.subr.mxu0 0.0
    %3686 = vmatpush1.msra.mxu0 0.0
    %3687 = vmatprep.subr.mxu0 0.0
    %3688 = vmatpush1.msra.mxu0 0.0
    %3689 = vmatprep.subr.mxu0 0.0
    %3690 = vmatpush1.msra.mxu0 0.0
    %3691 = vmatprep.subr.mxu0 0.0
    %3692 = vmatpush1.msra.mxu0 0.0
    %3693 = vmatprep.subr.mxu0 0.0
    %3694 = vmatpush1.msra.mxu0 0.0
    %3695 = vmatprep.subr.mxu0 0.0
    %3696 = vmatpush1.msra.mxu0 0.0
    %3697 = vmatprep.subr.mxu0 0.0
    %3698 = vmatpush1.msra.mxu0 0.0
    %3699 = vmatprep.subr.mxu0 0.0
    %3700 = vmatpush1.msra.mxu0 0.0
    %3701 = vmatprep.subr.mxu0 0.0
    %3702 = vmatpush1.msra.mxu0 0.0
    %3703 = vmatprep.subr.mxu0 0.0
    %3704 = vmatpush1.msra.mxu0 0.0
    %3705 = vmatprep.subr.mxu0 0.0
    %3706 = vmatpush1.msra.mxu0 0.0
    %3707 = vmatprep.subr.mxu0 0.0
    %3708 = vmatpush1.msra.mxu0 0.0
    %3709 = vmatprep.subr.mxu0 0.0
    %3710 = vmatpush1.msra.mxu0 %v2037
    %3711 = vmatprep.subr.mxu0 0.0
    %3712 = vmatpush1.msra.mxu0 %v2036
    %3713 = vmatprep.subr.mxu0 0.0
    %3714 = vmatpush1.msra.mxu0 %v2035
    %3715 = vmatprep.subr.mxu0 0.0
    %3716 = vmatpush1.msra.mxu0 %v2034
    %3717 = vmatprep.subr.mxu0 0.0
    %3718 = vmatpush2.msra.mxu0 0.0
    %3719 = vmatprep.subr.mxu0 0.0
    %3720 = vmatpush2.msra.mxu0 0.0
    %3721 = vmatprep.subr.mxu0 0.0
    %3722 = vmatpush2.msra.mxu0 0.0
    %3723 = vmatprep.subr.mxu0 0.0
    %3724 = vmatpush2.msra.mxu0 0.0
    %3725 = vmatprep.subr.mxu0 0.0
    %3726 = vmatpush2.msra.mxu0 0.0
    %3727 = vmatprep.subr.mxu0 0.0
    %3728 = vmatpush2.msra.mxu0 0.0
    %3729 = vmatprep.subr.mxu0 0.0
    %3730 = vmatpush2.msra.mxu0 0.0
    %3731 = vmatprep.subr.mxu0 0.0
    %3732 = vmatpush2.msra.mxu0 0.0
    %3733 = vmatprep.subr.mxu0 0.0
    %3734 = vmatpush2.msra.mxu0 0.0
    %3735 = vmatprep.subr.mxu0 0.0
    %3736 = vmatpush2.msra.mxu0 0.0
    %3737 = vmatprep.subr.mxu0 0.0
    %3738 = vmatpush2.msra.mxu0 0.0
    %3739 = vmatprep.subr.mxu0 0.0
    %3740 = vmatpush2.msra.mxu0 0.0
    %3741 = vmatprep.subr.mxu0 0.0
    %3742 = vmatpush2.msra.mxu0 0.0
    %3743 = vmatprep.subr.mxu0 0.0
    %3744 = vmatpush2.msra.mxu0 0.0
    %3745 = vmatprep.subr.mxu0 0.0
    %3746 = vmatpush2.msra.mxu0 0.0
    %3747 = vmatprep.subr.mxu0 0.0
    %3748 = vmatpush2.msra.mxu0 0.0
    %3749 = vmatprep.mubr.f32.mxu0 0.0
    %3750 = vmatmul.mubr.f32.gmra.mxu0 %v3680
    %v3751 = vpop.f32.mrf.mxu0
    %v3752 = vadd.f32 0.0, %v3751
    %v3753 = vpop.f32.mrf.mxu0
    %3754 = vmatprep.mubr.f32.mxu0 0.0
    %3755 = vmatmul.mubr.f32.gmra.mxu0 %v3683
    %v3756 = vpop.f32.mrf.mxu0
    %v3757 = vadd.f32 0.0, %v3756
    %v3758 = vpop.f32.mrf.mxu0
    %3759 = vdwg.mxu0
    %v3760 = vmul.f32 %v3752, 0.1
    %v3761 = vmul.f32 %v3757, 0.1
    %v3762 = vsub.f32 %v3760, 0.01
    %v3763 = vsub.f32 %v3761, 0.01
    %v3764 = vadd.f32 %v3594, %v3762
    %v3765 = vadd.f32 %v3595, %v3763
    %v3766 = vmax.f32 %v3764, 0.0
    %v3767 = vmax.f32 %v3765, 0.0
    %3768 = vst.msk [vmem:[#allocation2] sm:$0xff] %vm222, %v3766
    %3769 = vst.msk [vmem:[#allocation2 + $0x8] sm:$0xff] %vm222, %v3767
    // Predicated region
    $region10: #{transformer_forward.1} parent=1 // pred_check
      _
    $region11: #{transformer_forward.1} parent=1 // pred_check_branch
      %3771 = sbr.rel (0) target = $region13
    $region12: #{transformer_forward.1} parent=1 // pred_region
      %s3773 = ssub.s32 256, 256
      %3774 = vsyncadd [#allocation3], %s3773
      %s3775 = sshll.u32 [#allocation2], 4
      %s3776 = int_to_ptr.vmem [resolvable:$true] %s3775
      %3781 = dma.vmem_to_hbm [thread:$0]  %s3776, 256, %s2, [#allocation3], 128, 128, 8
    $region13: #{transformer_forward.1} parent=1 // pred_fallthru
      _
    // Predicated region
    $region14: #{transformer_forward.1} parent=1 // pred_check
      _
    $region15: #{transformer_forward.1} parent=1 // pred_check_branch
      %3783 = sbr.rel (0) target = $region17
    $region16: #{transformer_forward.1} parent=1 // pred_region
      %3784 = dma.done [#allocation3], 256
    $region17: #{transformer_forward.1} parent=1 // pred_fallthru
      _
    %3785 = vsyncpa [#allocation3], 1

</llo_original>
